<compile_context>
chip_gen: v6e
topology: v6e:2x2x1
jax: 0.10.0
libtpu: 0.0.40
codegen_flags: <defaults>
</compile_context>

<pallas_src>
import jax
import jax.numpy as jnp
from jax.experimental import pallas as pl
from jax.experimental.pallas import tpu as pltpu


# Fixed LeNet geometry (the third 5x5 conv requires a 3x32x32 input).
_K = 5
_H0, _W0, _C0 = 32, 32, 3          # input
_OH1, _OW1, _C1 = 28, 28, 6        # after conv1 (+ReLU)
_OH2, _OW2, _C2 = 10, 10, 16       # after pool1 + conv2 (+ReLU)
_C3, _C3P = 120, 128               # after pool2 + conv3 (+ReLU), padded to 128 lanes


# ---------------------------------------------------------------------------
# Fused Pallas kernel: one batch sample per grid step, everything in VMEM.
# ---------------------------------------------------------------------------

def _lenet_kernel(a0e_ref, a0o_ref, w1_ref, b1_ref, w2_ref, b2_ref,
                  w3_ref, b3_ref, out_ref, r1e_ref, r1o_ref, r2_ref):
    f32 = jnp.float32

    # ---- conv1 + ReLU ------------------------------------------------------
    # Input rows arrive pre-split into even/odd image rows so that the even and
    # odd conv1 output rows (what pool1 consumes) need only contiguous slices.
    o1e = jnp.zeros((_OH1 // 2, _OW1 * _C1), f32)
    o1o = jnp.zeros((_OH1 // 2, _OW1 * _C1), f32)
    for ki in range(_K):
        m = ki // 2
        w = w1_ref[ki]                                   # (W0*C0, OW1*C1)
        if ki % 2 == 0:
            src_e = a0e_ref[0, m:m + 14, :]
            src_o = a0o_ref[0, m:m + 14, :]
        else:
            src_e = a0o_ref[0, m:m + 14, :]
            src_o = a0e_ref[0, m + 1:m + 15, :]
        o1e += jnp.dot(src_e, w, preferred_element_type=f32)
        o1o += jnp.dot(src_o, w, preferred_element_type=f32)
    r1e_ref[...] = jnp.maximum(o1e + b1_ref[...], 0.0)   # even rows of relu(conv1)
    r1o_ref[...] = jnp.maximum(o1o + b1_ref[...], 0.0)   # odd rows

    # ---- avgpool1 (folded into w2) + conv2 + ReLU --------------------------
    o2 = jnp.zeros((_OH2, _OW2 * _C2), f32)
    for a in range(_K):
        lhs = r1e_ref[a:a + _OH2, :] + r1o_ref[a:a + _OH2, :]
        o2 += jnp.dot(lhs, w2_ref[a], preferred_element_type=f32)
    r2_ref[...] = jnp.maximum(o2 + b2_ref[...], 0.0)

    # ---- avgpool2 (folded into w3) + conv3 + ReLU --------------------------
    o3 = jnp.zeros((1, _C3P), f32)
    for a in range(_K):
        row = r2_ref[2 * a:2 * a + 1, :] + r2_ref[2 * a + 1:2 * a + 2, :]
        o3 += jnp.dot(row, w3_ref[a], preferred_element_type=f32)
    out_ref[0] = jnp.maximum(o3 + b3_ref[...], 0.0)      # lane-dense (1, 128) store


# ---------------------------------------------------------------------------
# Wrapper-side weight folding (tiny, runs once per call under jit).
# ---------------------------------------------------------------------------

def _band_conv(w_oihw, bias, w_in, ow):
    """Stride-1 valid conv -> k banded matrices of shape (k, w_in*cin, ow*cout)."""
    wp = jnp.transpose(w_oihw, (2, 3, 1, 0)).astype(jnp.float32)   # (k,k,cin,cout)
    k, _, cin, cout = wp.shape
    wg = jnp.arange(w_in)[:, None, None]
    og = jnp.arange(ow)[None, :, None]
    kg = jnp.arange(k)[None, None, :]
    sel = (wg == og + kg).astype(jnp.float32)                       # (w_in, ow, k)
    m = jnp.einsum("wok,ikcd->iwcod", sel, wp).reshape(k, w_in * cin, ow * cout)
    brow = jnp.tile(bias.astype(jnp.float32), ow)[None, :]
    return m, brow


def _band_pool_conv(w_oihw, bias, w_in, ow, cout_pad=None):
    """AvgPool2x2(stride 2) followed by a stride-1 valid conv, folded into banded
    matrices acting on the even+odd row-summed pre-pool activation."""
    wp = jnp.transpose(w_oihw, (2, 3, 1, 0)).astype(jnp.float32)   # (k,k,cin,cout)
    b = bias.astype(jnp.float32)
    if cout_pad is not None and cout_pad > wp.shape[3]:
        pad = cout_pad - wp.shape[3]
        wp = jnp.pad(wp, ((0, 0), (0, 0), (0, 0), (0, pad)))
        b = jnp.pad(b, (0, pad))
    k, _, cin, cout = wp.shape
    wg = jnp.arange(w_in)[:, None, None]
    og = jnp.arange(ow)[None, :, None]
    kg = jnp.arange(k)[None, None, :]
    d = wg - 2 * og
    sel = 0.25 * ((d == 2 * kg) | (d == 2 * kg + 1)).astype(jnp.float32)
    m = jnp.einsum("wok,ikcd->iwcod", sel, wp).reshape(k, w_in * cin, ow * cout)
    brow = jnp.tile(b, ow)[None, :]
    return m, brow


# ---------------------------------------------------------------------------
# Forward
# ---------------------------------------------------------------------------

def init_params(key):
    """Deterministic parameter init matching the PyTorch module's shapes."""
    ks = jax.random.split(key, 6)

    def conv_init(kw, kb, cout, cin, k):
        fan_in = cin * k * k
        bound = 1.0 / jnp.sqrt(fan_in)
        w = jax.random.uniform(kw, (cout, cin, k, k), jnp.float32, -bound, bound)
        b = jax.random.uniform(kb, (cout,), jnp.float32, -bound, bound)
        return w, b

    w1, b1 = conv_init(ks[0], ks[1], 6, 3, 5)
    w2, b2 = conv_init(ks[2], ks[3], 16, 6, 5)
    w3, b3 = conv_init(ks[4], ks[5], 120, 16, 5)
    return dict(w1=w1, b1=b1, w2=w2, b2=b2, w3=w3, b3=b3)


@jax.jit
def lenet_forward(x_nchw, params):
    n, c, h, w = x_nchw.shape
    assert (c, h, w) == (_C0, _H0, _W0), "LeNet feature extractor expects 3x32x32 input"

    # NCHW -> (N, H, W*C) rows with (w, c) interleaved along lanes; split into
    # even / odd image rows (cheap XLA on the tiny input).
    x = jnp.transpose(x_nchw, (0, 2, 3, 1)).astype(jnp.float32)
    x = x.reshape(n, _H0, _W0 * _C0)
    a0e, a0o = x[:, 0::2, :], x[:, 1::2, :]                         # (N, 16, 96) each

    w1m, b1r = _band_conv(params["w1"], params["b1"], _W0, _OW1)           # (5,96,168)
    w2m, b2r = _band_pool_conv(params["w2"], params["b2"], _OW1, _OW2)     # (5,168,160)
    w3m, b3r = _band_pool_conv(params["w3"], params["b3"], _OW2, 1,
                               cout_pad=_C3P)                              # (5,160,128)

    out = pl.pallas_call(
        _lenet_kernel,
        out_shape=jax.ShapeDtypeStruct((n, 1, _C3P), jnp.float32),
        grid=(n,),
        in_specs=[
            pl.BlockSpec((1, _H0 // 2, _W0 * _C0), lambda i: (i, 0, 0)),
            pl.BlockSpec((1, _H0 // 2, _W0 * _C0), lambda i: (i, 0, 0)),
            pl.BlockSpec(w1m.shape, lambda i: (0, 0, 0)),   # weights stay VMEM-resident
            pl.BlockSpec(b1r.shape, lambda i: (0, 0)),
            pl.BlockSpec(w2m.shape, lambda i: (0, 0, 0)),
            pl.BlockSpec(b2r.shape, lambda i: (0, 0)),
            pl.BlockSpec(w3m.shape, lambda i: (0, 0, 0)),
            pl.BlockSpec(b3r.shape, lambda i: (0, 0)),
        ],
        out_specs=pl.BlockSpec((1, 1, _C3P), lambda i: (i, 0, 0)),
        scratch_shapes=[
            pltpu.VMEM((_OH1 // 2, _OW1 * _C1), jnp.float32),   # relu(conv1) even rows
            pltpu.VMEM((_OH1 // 2, _OW1 * _C1), jnp.float32),   # relu(conv1) odd rows
            pltpu.VMEM((_OH2, _OW2 * _C2), jnp.float32),        # relu(conv2)
        ],
        compiler_params=pltpu.CompilerParams(
            dimension_semantics=("parallel",),      # pipelining + v7x megacore sharding
            vmem_limit_bytes=32 * 1024 * 1024,      # sized for v7x's 64 MiB VMEM
        ),
    )(a0e, a0o, w1m, b1r, w2m, b2r, w3m, b3r)

    # Drop channel padding; return NCHW like the PyTorch module: (N, 120, 1, 1).
    return out[:, 0, :_C3].reshape(n, _C3, 1, 1)


# ---------------------------------------------------------------------------
# Plain-XLA reference (exactly the PyTorch module) for a numerics self-check.
# ---------------------------------------------------------------------------

def _reference_forward(x_nchw, params):
    def conv_relu(x, w, b):
        y = jax.lax.conv_general_dilated(
            x, w, window_strides=(1, 1), padding="VALID",
            dimension_numbers=("NCHW", "OIHW", "NCHW"))
        return jax.nn.relu(y + b[None, :, None, None])

    def avgpool2(x):
        s = jax.lax.reduce_window(x, 0.0, jax.lax.add,
                                  (1, 1, 2, 2), (1, 1, 2, 2), "VALID")
        return s * 0.25

    x = avgpool2(conv_relu(x_nchw, params["w1"], params["b1"]))
    x = avgpool2(conv_relu(x, params["w2"], params["b2"]))
    return conv_relu(x, params["w3"], params["b3"])


if __name__ == "__main__":
    key = jax.random.PRNGKey(0)
    k_x, k_p = jax.random.split(key)
    x = jax.random.normal(k_x, (2, 3, 32, 32), dtype=jnp.float32)
    params = init_params(k_p)

    out = jax.block_until_ready(lenet_forward(x, params))
    assert out.shape == (2, 120, 1, 1), out.shape
    assert out.dtype == jnp.float32

    ref = jax.block_until_ready(_reference_forward(x, params))
    max_err = float(jnp.max(jnp.abs(out - ref)))
    assert max_err < 3e-2, f"numerics mismatch vs XLA reference: {max_err}"

    print("KERNEL_OK")
</pallas_src>

<mosaic_0001>
module attributes {stable_mosaic.version = 11 : i64} {
  func.func @_lenet_kernel(%arg0: i32, %arg1: memref<1x16x96xf32, #tpu.memory_space<vmem>>, %arg2: memref<1x16x96xf32, #tpu.memory_space<vmem>>, %arg3: memref<5x96x168xf32, #tpu.memory_space<vmem>>, %arg4: memref<1x168xf32, #tpu.memory_space<vmem>>, %arg5: memref<5x168x160xf32, #tpu.memory_space<vmem>>, %arg6: memref<1x160xf32, #tpu.memory_space<vmem>>, %arg7: memref<5x160x128xf32, #tpu.memory_space<vmem>>, %arg8: memref<1x128xf32, #tpu.memory_space<vmem>>, %arg9: memref<1x1x128xf32, #tpu.memory_space<vmem>>, %arg10: memref<14x168xf32, #tpu.memory_space<vmem>>, %arg11: memref<14x168xf32, #tpu.memory_space<vmem>>, %arg12: memref<10x160xf32, #tpu.memory_space<vmem>>) attributes {dimension_semantics = [#tpu.dimension_semantics<parallel>], iteration_bounds = array<i64: 2>, scalar_prefetch = 0 : i64, scratch_operands = 3 : i64, tpu.core_type = #tpu.core_type<tc>, window_params = [{transform_indices = @transform_0, window_bounds = array<i64: 1, 16, 96>}, {transform_indices = @transform_1, window_bounds = array<i64: 1, 16, 96>}, {pipeline_mode = #tpu.pipeline_mode<synchronous>, transform_indices = @transform_2, window_bounds = array<i64: 5, 96, 168>}, {pipeline_mode = #tpu.pipeline_mode<synchronous>, transform_indices = @transform_3, window_bounds = array<i64: 1, 168>}, {pipeline_mode = #tpu.pipeline_mode<synchronous>, transform_indices = @transform_4, window_bounds = array<i64: 5, 168, 160>}, {pipeline_mode = #tpu.pipeline_mode<synchronous>, transform_indices = @transform_5, window_bounds = array<i64: 1, 160>}, {pipeline_mode = #tpu.pipeline_mode<synchronous>, transform_indices = @transform_6, window_bounds = array<i64: 5, 160, 128>}, {pipeline_mode = #tpu.pipeline_mode<synchronous>, transform_indices = @transform_7, window_bounds = array<i64: 1, 128>}, {transform_indices = @transform_8, window_bounds = array<i64: 1, 1, 128>}]} {
    %cst = arith.constant 0.000000e+00 : f32
    %0 = vector.broadcast %cst : f32 to vector<14x168xf32>
    %cst_0 = arith.constant 0.000000e+00 : f32
    %1 = vector.broadcast %cst_0 : f32 to vector<14x168xf32>
    %c0 = arith.constant 0 : index
    %c0_1 = arith.constant 0 : index
    %c0_2 = arith.constant 0 : index
    %2 = vector.load %arg3[%c0, %c0_1, %c0_2] : memref<5x96x168xf32, #tpu.memory_space<vmem>>, vector<1x96x168xf32>
    %3 = vector.shape_cast %2 : vector<1x96x168xf32> to vector<96x168xf32>
    %c0_3 = arith.constant 0 : index
    %c0_4 = arith.constant 0 : index
    %c0_5 = arith.constant 0 : index
    %4 = vector.load %arg1[%c0_3, %c0_4, %c0_5] : memref<1x16x96xf32, #tpu.memory_space<vmem>>, vector<1x14x96xf32>
    %5 = vector.shape_cast %4 : vector<1x14x96xf32> to vector<14x96xf32>
    %c0_6 = arith.constant 0 : index
    %c0_7 = arith.constant 0 : index
    %c0_8 = arith.constant 0 : index
    %6 = vector.load %arg2[%c0_6, %c0_7, %c0_8] : memref<1x16x96xf32, #tpu.memory_space<vmem>>, vector<1x14x96xf32>
    %7 = vector.shape_cast %6 : vector<1x14x96xf32> to vector<14x96xf32>
    %cst_9 = arith.constant dense<0.000000e+00> : vector<14x168xf32>
    %8 = tpu.matmul %5, %3, %cst_9 {dimension_numbers = #tpu.dot_dimension_numbers<[1], [0], [0], [1], [0, 0, 1, 1], [], []>} : vector<14x96xf32>, vector<96x168xf32>, vector<14x168xf32> -> vector<14x168xf32>
    %9 = arith.addf %0, %8 : vector<14x168xf32>
    %cst_10 = arith.constant dense<0.000000e+00> : vector<14x168xf32>
    %10 = tpu.matmul %7, %3, %cst_10 {dimension_numbers = #tpu.dot_dimension_numbers<[1], [0], [0], [1], [0, 0, 1, 1], [], []>} : vector<14x96xf32>, vector<96x168xf32>, vector<14x168xf32> -> vector<14x168xf32>
    %11 = arith.addf %1, %10 : vector<14x168xf32>
    %c1 = arith.constant 1 : index
    %c0_11 = arith.constant 0 : index
    %c0_12 = arith.constant 0 : index
    %12 = vector.load %arg3[%c1, %c0_11, %c0_12] : memref<5x96x168xf32, #tpu.memory_space<vmem>>, vector<1x96x168xf32>
    %13 = vector.shape_cast %12 : vector<1x96x168xf32> to vector<96x168xf32>
    %c0_13 = arith.constant 0 : index
    %c0_14 = arith.constant 0 : index
    %c0_15 = arith.constant 0 : index
    %14 = vector.load %arg2[%c0_13, %c0_14, %c0_15] : memref<1x16x96xf32, #tpu.memory_space<vmem>>, vector<1x14x96xf32>
    %15 = vector.shape_cast %14 : vector<1x14x96xf32> to vector<14x96xf32>
    %c0_16 = arith.constant 0 : index
    %c1_17 = arith.constant 1 : index
    %c0_18 = arith.constant 0 : index
    %16 = vector.load %arg1[%c0_16, %c1_17, %c0_18] : memref<1x16x96xf32, #tpu.memory_space<vmem>>, vector<1x14x96xf32>
    %17 = vector.shape_cast %16 : vector<1x14x96xf32> to vector<14x96xf32>
    %cst_19 = arith.constant dense<0.000000e+00> : vector<14x168xf32>
    %18 = tpu.matmul %15, %13, %cst_19 {dimension_numbers = #tpu.dot_dimension_numbers<[1], [0], [0], [1], [0, 0, 1, 1], [], []>} : vector<14x96xf32>, vector<96x168xf32>, vector<14x168xf32> -> vector<14x168xf32>
    %19 = arith.addf %9, %18 : vector<14x168xf32>
    %cst_20 = arith.constant dense<0.000000e+00> : vector<14x168xf32>
    %20 = tpu.matmul %17, %13, %cst_20 {dimension_numbers = #tpu.dot_dimension_numbers<[1], [0], [0], [1], [0, 0, 1, 1], [], []>} : vector<14x96xf32>, vector<96x168xf32>, vector<14x168xf32> -> vector<14x168xf32>
    %21 = arith.addf %11, %20 : vector<14x168xf32>
    %c2 = arith.constant 2 : index
    %c0_21 = arith.constant 0 : index
    %c0_22 = arith.constant 0 : index
    %22 = vector.load %arg3[%c2, %c0_21, %c0_22] : memref<5x96x168xf32, #tpu.memory_space<vmem>>, vector<1x96x168xf32>
    %23 = vector.shape_cast %22 : vector<1x96x168xf32> to vector<96x168xf32>
    %c0_23 = arith.constant 0 : index
    %c1_24 = arith.constant 1 : index
    %c0_25 = arith.constant 0 : index
    %24 = vector.load %arg1[%c0_23, %c1_24, %c0_25] : memref<1x16x96xf32, #tpu.memory_space<vmem>>, vector<1x14x96xf32>
    %25 = vector.shape_cast %24 : vector<1x14x96xf32> to vector<14x96xf32>
    %c0_26 = arith.constant 0 : index
    %c1_27 = arith.constant 1 : index
    %c0_28 = arith.constant 0 : index
    %26 = vector.load %arg2[%c0_26, %c1_27, %c0_28] : memref<1x16x96xf32, #tpu.memory_space<vmem>>, vector<1x14x96xf32>
    %27 = vector.shape_cast %26 : vector<1x14x96xf32> to vector<14x96xf32>
    %cst_29 = arith.constant dense<0.000000e+00> : vector<14x168xf32>
    %28 = tpu.matmul %25, %23, %cst_29 {dimension_numbers = #tpu.dot_dimension_numbers<[1], [0], [0], [1], [0, 0, 1, 1], [], []>} : vector<14x96xf32>, vector<96x168xf32>, vector<14x168xf32> -> vector<14x168xf32>
    %29 = arith.addf %19, %28 : vector<14x168xf32>
    %cst_30 = arith.constant dense<0.000000e+00> : vector<14x168xf32>
    %30 = tpu.matmul %27, %23, %cst_30 {dimension_numbers = #tpu.dot_dimension_numbers<[1], [0], [0], [1], [0, 0, 1, 1], [], []>} : vector<14x96xf32>, vector<96x168xf32>, vector<14x168xf32> -> vector<14x168xf32>
    %31 = arith.addf %21, %30 : vector<14x168xf32>
    %c3 = arith.constant 3 : index
    %c0_31 = arith.constant 0 : index
    %c0_32 = arith.constant 0 : index
    %32 = vector.load %arg3[%c3, %c0_31, %c0_32] : memref<5x96x168xf32, #tpu.memory_space<vmem>>, vector<1x96x168xf32>
    %33 = vector.shape_cast %32 : vector<1x96x168xf32> to vector<96x168xf32>
    %c0_33 = arith.constant 0 : index
    %c1_34 = arith.constant 1 : index
    %c0_35 = arith.constant 0 : index
    %34 = vector.load %arg2[%c0_33, %c1_34, %c0_35] : memref<1x16x96xf32, #tpu.memory_space<vmem>>, vector<1x14x96xf32>
    %35 = vector.shape_cast %34 : vector<1x14x96xf32> to vector<14x96xf32>
    %c0_36 = arith.constant 0 : index
    %c2_37 = arith.constant 2 : index
    %c0_38 = arith.constant 0 : index
    %36 = vector.load %arg1[%c0_36, %c2_37, %c0_38] : memref<1x16x96xf32, #tpu.memory_space<vmem>>, vector<1x14x96xf32>
    %37 = vector.shape_cast %36 : vector<1x14x96xf32> to vector<14x96xf32>
    %cst_39 = arith.constant dense<0.000000e+00> : vector<14x168xf32>
    %38 = tpu.matmul %35, %33, %cst_39 {dimension_numbers = #tpu.dot_dimension_numbers<[1], [0], [0], [1], [0, 0, 1, 1], [], []>} : vector<14x96xf32>, vector<96x168xf32>, vector<14x168xf32> -> vector<14x168xf32>
    %39 = arith.addf %29, %38 : vector<14x168xf32>
    %cst_40 = arith.constant dense<0.000000e+00> : vector<14x168xf32>
    %40 = tpu.matmul %37, %33, %cst_40 {dimension_numbers = #tpu.dot_dimension_numbers<[1], [0], [0], [1], [0, 0, 1, 1], [], []>} : vector<14x96xf32>, vector<96x168xf32>, vector<14x168xf32> -> vector<14x168xf32>
    %41 = arith.addf %31, %40 : vector<14x168xf32>
    %c4 = arith.constant 4 : index
    %c0_41 = arith.constant 0 : index
    %c0_42 = arith.constant 0 : index
    %42 = vector.load %arg3[%c4, %c0_41, %c0_42] : memref<5x96x168xf32, #tpu.memory_space<vmem>>, vector<1x96x168xf32>
    %43 = vector.shape_cast %42 : vector<1x96x168xf32> to vector<96x168xf32>
    %c0_43 = arith.constant 0 : index
    %c2_44 = arith.constant 2 : index
    %c0_45 = arith.constant 0 : index
    %44 = vector.load %arg1[%c0_43, %c2_44, %c0_45] : memref<1x16x96xf32, #tpu.memory_space<vmem>>, vector<1x14x96xf32>
    %45 = vector.shape_cast %44 : vector<1x14x96xf32> to vector<14x96xf32>
    %c0_46 = arith.constant 0 : index
    %c2_47 = arith.constant 2 : index
    %c0_48 = arith.constant 0 : index
    %46 = vector.load %arg2[%c0_46, %c2_47, %c0_48] : memref<1x16x96xf32, #tpu.memory_space<vmem>>, vector<1x14x96xf32>
    %47 = vector.shape_cast %46 : vector<1x14x96xf32> to vector<14x96xf32>
    %cst_49 = arith.constant dense<0.000000e+00> : vector<14x168xf32>
    %48 = tpu.matmul %45, %43, %cst_49 {dimension_numbers = #tpu.dot_dimension_numbers<[1], [0], [0], [1], [0, 0, 1, 1], [], []>} : vector<14x96xf32>, vector<96x168xf32>, vector<14x168xf32> -> vector<14x168xf32>
    %49 = arith.addf %39, %48 : vector<14x168xf32>
    %cst_50 = arith.constant dense<0.000000e+00> : vector<14x168xf32>
    %50 = tpu.matmul %47, %43, %cst_50 {dimension_numbers = #tpu.dot_dimension_numbers<[1], [0], [0], [1], [0, 0, 1, 1], [], []>} : vector<14x96xf32>, vector<96x168xf32>, vector<14x168xf32> -> vector<14x168xf32>
    %51 = arith.addf %41, %50 : vector<14x168xf32>
    %c0_51 = arith.constant 0 : index
    %c0_52 = arith.constant 0 : index
    %52 = vector.load %arg4[%c0_51, %c0_52] : memref<1x168xf32, #tpu.memory_space<vmem>>, vector<1x168xf32>
    %53 = vector.broadcast %52 : vector<1x168xf32> to vector<14x168xf32>
    %54 = arith.addf %49, %53 : vector<14x168xf32>
    %cst_53 = arith.constant 0.000000e+00 : f32
    %55 = vector.broadcast %cst_53 : f32 to vector<14x168xf32>
    %56 = arith.maximumf %54, %55 : vector<14x168xf32>
    %c0_54 = arith.constant 0 : index
    %c0_55 = arith.constant 0 : index
    %57 = vector.load %arg10[%c0_54, %c0_55] : memref<14x168xf32, #tpu.memory_space<vmem>>, vector<14x168xf32>
    tpu.vector_store %arg10[%c0_54, %c0_55], %56 {strides = array<i32>} : memref<14x168xf32, #tpu.memory_space<vmem>>, vector<14x168xf32>,
    %c0_56 = arith.constant 0 : index
    %c0_57 = arith.constant 0 : index
    %58 = vector.load %arg4[%c0_56, %c0_57] : memref<1x168xf32, #tpu.memory_space<vmem>>, vector<1x168xf32>
    %59 = vector.broadcast %58 : vector<1x168xf32> to vector<14x168xf32>
    %60 = arith.addf %51, %59 : vector<14x168xf32>
    %cst_58 = arith.constant 0.000000e+00 : f32
    %61 = vector.broadcast %cst_58 : f32 to vector<14x168xf32>
    %62 = arith.maximumf %60, %61 : vector<14x168xf32>
    %c0_59 = arith.constant 0 : index
    %c0_60 = arith.constant 0 : index
    %63 = vector.load %arg11[%c0_59, %c0_60] : memref<14x168xf32, #tpu.memory_space<vmem>>, vector<14x168xf32>
    tpu.vector_store %arg11[%c0_59, %c0_60], %62 {strides = array<i32>} : memref<14x168xf32, #tpu.memory_space<vmem>>, vector<14x168xf32>,
    %cst_61 = arith.constant 0.000000e+00 : f32
    %64 = vector.broadcast %cst_61 : f32 to vector<10x160xf32>
    %c0_62 = arith.constant 0 : index
    %c0_63 = arith.constant 0 : index
    %65 = vector.load %arg10[%c0_62, %c0_63] : memref<14x168xf32, #tpu.memory_space<vmem>>, vector<10x168xf32>
    %c0_64 = arith.constant 0 : index
    %c0_65 = arith.constant 0 : index
    %66 = vector.load %arg11[%c0_64, %c0_65] : memref<14x168xf32, #tpu.memory_space<vmem>>, vector<10x168xf32>
    %67 = arith.addf %65, %66 : vector<10x168xf32>
    %c0_66 = arith.constant 0 : index
    %c0_67 = arith.constant 0 : index
    %c0_68 = arith.constant 0 : index
    %68 = vector.load %arg5[%c0_66, %c0_67, %c0_68] : memref<5x168x160xf32, #tpu.memory_space<vmem>>, vector<1x168x160xf32>
    %69 = vector.shape_cast %68 : vector<1x168x160xf32> to vector<168x160xf32>
    %cst_69 = arith.constant dense<0.000000e+00> : vector<10x160xf32>
    %70 = tpu.matmul %67, %69, %cst_69 {dimension_numbers = #tpu.dot_dimension_numbers<[1], [0], [0], [1], [0, 0, 1, 1], [], []>} : vector<10x168xf32>, vector<168x160xf32>, vector<10x160xf32> -> vector<10x160xf32>
    %71 = arith.addf %64, %70 : vector<10x160xf32>
    %c1_70 = arith.constant 1 : index
    %c0_71 = arith.constant 0 : index
    %72 = vector.load %arg10[%c1_70, %c0_71] : memref<14x168xf32, #tpu.memory_space<vmem>>, vector<10x168xf32>
    %c1_72 = arith.constant 1 : index
    %c0_73 = arith.constant 0 : index
    %73 = vector.load %arg11[%c1_72, %c0_73] : memref<14x168xf32, #tpu.memory_space<vmem>>, vector<10x168xf32>
    %74 = arith.addf %72, %73 : vector<10x168xf32>
    %c1_74 = arith.constant 1 : index
    %c0_75 = arith.constant 0 : index
    %c0_76 = arith.constant 0 : index
    %75 = vector.load %arg5[%c1_74, %c0_75, %c0_76] : memref<5x168x160xf32, #tpu.memory_space<vmem>>, vector<1x168x160xf32>
    %76 = vector.shape_cast %75 : vector<1x168x160xf32> to vector<168x160xf32>
    %cst_77 = arith.constant dense<0.000000e+00> : vector<10x160xf32>
    %77 = tpu.matmul %74, %76, %cst_77 {dimension_numbers = #tpu.dot_dimension_numbers<[1], [0], [0], [1], [0, 0, 1, 1], [], []>} : vector<10x168xf32>, vector<168x160xf32>, vector<10x160xf32> -> vector<10x160xf32>
    %78 = arith.addf %71, %77 : vector<10x160xf32>
    %c2_78 = arith.constant 2 : index
    %c0_79 = arith.constant 0 : index
    %79 = vector.load %arg10[%c2_78, %c0_79] : memref<14x168xf32, #tpu.memory_space<vmem>>, vector<10x168xf32>
    %c2_80 = arith.constant 2 : index
    %c0_81 = arith.constant 0 : index
    %80 = vector.load %arg11[%c2_80, %c0_81] : memref<14x168xf32, #tpu.memory_space<vmem>>, vector<10x168xf32>
    %81 = arith.addf %79, %80 : vector<10x168xf32>
    %c2_82 = arith.constant 2 : index
    %c0_83 = arith.constant 0 : index
    %c0_84 = arith.constant 0 : index
    %82 = vector.load %arg5[%c2_82, %c0_83, %c0_84] : memref<5x168x160xf32, #tpu.memory_space<vmem>>, vector<1x168x160xf32>
    %83 = vector.shape_cast %82 : vector<1x168x160xf32> to vector<168x160xf32>
    %cst_85 = arith.constant dense<0.000000e+00> : vector<10x160xf32>
    %84 = tpu.matmul %81, %83, %cst_85 {dimension_numbers = #tpu.dot_dimension_numbers<[1], [0], [0], [1], [0, 0, 1, 1], [], []>} : vector<10x168xf32>, vector<168x160xf32>, vector<10x160xf32> -> vector<10x160xf32>
    %85 = arith.addf %78, %84 : vector<10x160xf32>
    %c3_86 = arith.constant 3 : index
    %c0_87 = arith.constant 0 : index
    %86 = vector.load %arg10[%c3_86, %c0_87] : memref<14x168xf32, #tpu.memory_space<vmem>>, vector<10x168xf32>
    %c3_88 = arith.constant 3 : index
    %c0_89 = arith.constant 0 : index
    %87 = vector.load %arg11[%c3_88, %c0_89] : memref<14x168xf32, #tpu.memory_space<vmem>>, vector<10x168xf32>
    %88 = arith.addf %86, %87 : vector<10x168xf32>
    %c3_90 = arith.constant 3 : index
    %c0_91 = arith.constant 0 : index
    %c0_92 = arith.constant 0 : index
    %89 = vector.load %arg5[%c3_90, %c0_91, %c0_92] : memref<5x168x160xf32, #tpu.memory_space<vmem>>, vector<1x168x160xf32>
    %90 = vector.shape_cast %89 : vector<1x168x160xf32> to vector<168x160xf32>
    %cst_93 = arith.constant dense<0.000000e+00> : vector<10x160xf32>
    %91 = tpu.matmul %88, %90, %cst_93 {dimension_numbers = #tpu.dot_dimension_numbers<[1], [0], [0], [1], [0, 0, 1, 1], [], []>} : vector<10x168xf32>, vector<168x160xf32>, vector<10x160xf32> -> vector<10x160xf32>
    %92 = arith.addf %85, %91 : vector<10x160xf32>
    %c4_94 = arith.constant 4 : index
    %c0_95 = arith.constant 0 : index
    %93 = vector.load %arg10[%c4_94, %c0_95] : memref<14x168xf32, #tpu.memory_space<vmem>>, vector<10x168xf32>
    %c4_96 = arith.constant 4 : index
    %c0_97 = arith.constant 0 : index
    %94 = vector.load %arg11[%c4_96, %c0_97] : memref<14x168xf32, #tpu.memory_space<vmem>>, vector<10x168xf32>
    %95 = arith.addf %93, %94 : vector<10x168xf32>
    %c4_98 = arith.constant 4 : index
    %c0_99 = arith.constant 0 : index
    %c0_100 = arith.constant 0 : index
    %96 = vector.load %arg5[%c4_98, %c0_99, %c0_100] : memref<5x168x160xf32, #tpu.memory_space<vmem>>, vector<1x168x160xf32>
    %97 = vector.shape_cast %96 : vector<1x168x160xf32> to vector<168x160xf32>
    %cst_101 = arith.constant dense<0.000000e+00> : vector<10x160xf32>
    %98 = tpu.matmul %95, %97, %cst_101 {dimension_numbers = #tpu.dot_dimension_numbers<[1], [0], [0], [1], [0, 0, 1, 1], [], []>} : vector<10x168xf32>, vector<168x160xf32>, vector<10x160xf32> -> vector<10x160xf32>
    %99 = arith.addf %92, %98 : vector<10x160xf32>
    %c0_102 = arith.constant 0 : index
    %c0_103 = arith.constant 0 : index
    %100 = vector.load %arg6[%c0_102, %c0_103] : memref<1x160xf32, #tpu.memory_space<vmem>>, vector<1x160xf32>
    %101 = vector.broadcast %100 : vector<1x160xf32> to vector<10x160xf32>
    %102 = arith.addf %99, %101 : vector<10x160xf32>
    %cst_104 = arith.constant 0.000000e+00 : f32
    %103 = vector.broadcast %cst_104 : f32 to vector<10x160xf32>
    %104 = arith.maximumf %102, %103 : vector<10x160xf32>
    %c0_105 = arith.constant 0 : index
    %c0_106 = arith.constant 0 : index
    %105 = vector.load %arg12[%c0_105, %c0_106] : memref<10x160xf32, #tpu.memory_space<vmem>>, vector<10x160xf32>
    tpu.vector_store %arg12[%c0_105, %c0_106], %104 {strides = array<i32>} : memref<10x160xf32, #tpu.memory_space<vmem>>, vector<10x160xf32>,
    %cst_107 = arith.constant 0.000000e+00 : f32
    %106 = vector.broadcast %cst_107 : f32 to vector<1x128xf32>
    %c0_108 = arith.constant 0 : index
    %c0_109 = arith.constant 0 : index
    %107 = vector.load %arg12[%c0_108, %c0_109] : memref<10x160xf32, #tpu.memory_space<vmem>>, vector<1x160xf32>
    %c1_110 = arith.constant 1 : index
    %c0_111 = arith.constant 0 : index
    %108 = vector.load %arg12[%c1_110, %c0_111] : memref<10x160xf32, #tpu.memory_space<vmem>>, vector<1x160xf32>
    %109 = arith.addf %107, %108 : vector<1x160xf32>
    %c0_112 = arith.constant 0 : index
    %c0_113 = arith.constant 0 : index
    %c0_114 = arith.constant 0 : index
    %110 = vector.load %arg7[%c0_112, %c0_113, %c0_114] : memref<5x160x128xf32, #tpu.memory_space<vmem>>, vector<1x160x128xf32>
    %111 = vector.shape_cast %110 : vector<1x160x128xf32> to vector<160x128xf32>
    %cst_115 = arith.constant dense<0.000000e+00> : vector<1x128xf32>
    %112 = tpu.matmul %109, %111, %cst_115 {dimension_numbers = #tpu.dot_dimension_numbers<[1], [0], [0], [1], [0, 0, 1, 1], [], []>} : vector<1x160xf32>, vector<160x128xf32>, vector<1x128xf32> -> vector<1x128xf32>
    %113 = arith.addf %106, %112 : vector<1x128xf32>
    %c2_116 = arith.constant 2 : index
    %c0_117 = arith.constant 0 : index
    %114 = vector.load %arg12[%c2_116, %c0_117] : memref<10x160xf32, #tpu.memory_space<vmem>>, vector<1x160xf32>
    %c3_118 = arith.constant 3 : index
    %c0_119 = arith.constant 0 : index
    %115 = vector.load %arg12[%c3_118, %c0_119] : memref<10x160xf32, #tpu.memory_space<vmem>>, vector<1x160xf32>
    %116 = arith.addf %114, %115 : vector<1x160xf32>
    %c1_120 = arith.constant 1 : index
    %c0_121 = arith.constant 0 : index
    %c0_122 = arith.constant 0 : index
    %117 = vector.load %arg7[%c1_120, %c0_121, %c0_122] : memref<5x160x128xf32, #tpu.memory_space<vmem>>, vector<1x160x128xf32>
    %118 = vector.shape_cast %117 : vector<1x160x128xf32> to vector<160x128xf32>
    %cst_123 = arith.constant dense<0.000000e+00> : vector<1x128xf32>
    %119 = tpu.matmul %116, %118, %cst_123 {dimension_numbers = #tpu.dot_dimension_numbers<[1], [0], [0], [1], [0, 0, 1, 1], [], []>} : vector<1x160xf32>, vector<160x128xf32>, vector<1x128xf32> -> vector<1x128xf32>
    %120 = arith.addf %113, %119 : vector<1x128xf32>
    %c4_124 = arith.constant 4 : index
    %c0_125 = arith.constant 0 : index
    %121 = vector.load %arg12[%c4_124, %c0_125] : memref<10x160xf32, #tpu.memory_space<vmem>>, vector<1x160xf32>
    %c5 = arith.constant 5 : index
    %c0_126 = arith.constant 0 : index
    %122 = vector.load %arg12[%c5, %c0_126] : memref<10x160xf32, #tpu.memory_space<vmem>>, vector<1x160xf32>
    %123 = arith.addf %121, %122 : vector<1x160xf32>
    %c2_127 = arith.constant 2 : index
    %c0_128 = arith.constant 0 : index
    %c0_129 = arith.constant 0 : index
    %124 = vector.load %arg7[%c2_127, %c0_128, %c0_129] : memref<5x160x128xf32, #tpu.memory_space<vmem>>, vector<1x160x128xf32>
    %125 = vector.shape_cast %124 : vector<1x160x128xf32> to vector<160x128xf32>
    %cst_130 = arith.constant dense<0.000000e+00> : vector<1x128xf32>
    %126 = tpu.matmul %123, %125, %cst_130 {dimension_numbers = #tpu.dot_dimension_numbers<[1], [0], [0], [1], [0, 0, 1, 1], [], []>} : vector<1x160xf32>, vector<160x128xf32>, vector<1x128xf32> -> vector<1x128xf32>
    %127 = arith.addf %120, %126 : vector<1x128xf32>
    %c6 = arith.constant 6 : index
    %c0_131 = arith.constant 0 : index
    %128 = vector.load %arg12[%c6, %c0_131] : memref<10x160xf32, #tpu.memory_space<vmem>>, vector<1x160xf32>
    %c7 = arith.constant 7 : index
    %c0_132 = arith.constant 0 : index
    %129 = vector.load %arg12[%c7, %c0_132] : memref<10x160xf32, #tpu.memory_space<vmem>>, vector<1x160xf32>
    %130 = arith.addf %128, %129 : vector<1x160xf32>
    %c3_133 = arith.constant 3 : index
    %c0_134 = arith.constant 0 : index
    %c0_135 = arith.constant 0 : index
    %131 = vector.load %arg7[%c3_133, %c0_134, %c0_135] : memref<5x160x128xf32, #tpu.memory_space<vmem>>, vector<1x160x128xf32>
    %132 = vector.shape_cast %131 : vector<1x160x128xf32> to vector<160x128xf32>
    %cst_136 = arith.constant dense<0.000000e+00> : vector<1x128xf32>
    %133 = tpu.matmul %130, %132, %cst_136 {dimension_numbers = #tpu.dot_dimension_numbers<[1], [0], [0], [1], [0, 0, 1, 1], [], []>} : vector<1x160xf32>, vector<160x128xf32>, vector<1x128xf32> -> vector<1x128xf32>
    %134 = arith.addf %127, %133 : vector<1x128xf32>
    %c8 = arith.constant 8 : index
    %c0_137 = arith.constant 0 : index
    %135 = vector.load %arg12[%c8, %c0_137] : memref<10x160xf32, #tpu.memory_space<vmem>>, vector<1x160xf32>
    %c9 = arith.constant 9 : index
    %c0_138 = arith.constant 0 : index
    %136 = vector.load %arg12[%c9, %c0_138] : memref<10x160xf32, #tpu.memory_space<vmem>>, vector<1x160xf32>
    %137 = arith.addf %135, %136 : vector<1x160xf32>
    %c4_139 = arith.constant 4 : index
    %c0_140 = arith.constant 0 : index
    %c0_141 = arith.constant 0 : index
    %138 = vector.load %arg7[%c4_139, %c0_140, %c0_141] : memref<5x160x128xf32, #tpu.memory_space<vmem>>, vector<1x160x128xf32>
    %139 = vector.shape_cast %138 : vector<1x160x128xf32> to vector<160x128xf32>
    %cst_142 = arith.constant dense<0.000000e+00> : vector<1x128xf32>
    %140 = tpu.matmul %137, %139, %cst_142 {dimension_numbers = #tpu.dot_dimension_numbers<[1], [0], [0], [1], [0, 0, 1, 1], [], []>} : vector<1x160xf32>, vector<160x128xf32>, vector<1x128xf32> -> vector<1x128xf32>
    %141 = arith.addf %134, %140 : vector<1x128xf32>
    %c0_143 = arith.constant 0 : index
    %c0_144 = arith.constant 0 : index
    %142 = vector.load %arg8[%c0_143, %c0_144] : memref<1x128xf32, #tpu.memory_space<vmem>>, vector<1x128xf32>
    %143 = arith.addf %141, %142 : vector<1x128xf32>
    %cst_145 = arith.constant 0.000000e+00 : f32
    %144 = vector.broadcast %cst_145 : f32 to vector<1x128xf32>
    %145 = arith.maximumf %143, %144 : vector<1x128xf32>
    %c0_146 = arith.constant 0 : index
    %c0_147 = arith.constant 0 : index
    %c0_148 = arith.constant 0 : index
    %146 = vector.load %arg9[%c0_146, %c0_147, %c0_148] : memref<1x1x128xf32, #tpu.memory_space<vmem>>, vector<1x1x128xf32>
    %147 = vector.shape_cast %146 : vector<1x1x128xf32> to vector<1x128xf32>
    %148 = vector.shape_cast %145 : vector<1x128xf32> to vector<1x1x128xf32>
    tpu.vector_store %arg9[%c0_146, %c0_147, %c0_148], %148 {strides = array<i32>} : memref<1x1x128xf32, #tpu.memory_space<vmem>>, vector<1x1x128xf32>,
    return
  }
  func.func @transform_0(%arg0: i32) -> (i32, i32, i32) {
    %c0_i32 = arith.constant 0 : i32
    %c0_i32_0 = arith.constant 0 : i32
    %c0_i32_1 = arith.constant 0 : i32
    return %arg0, %c0_i32, %c0_i32_0 : i32, i32, i32
  }
  func.func @transform_1(%arg0: i32) -> (i32, i32, i32) {
    %c0_i32 = arith.constant 0 : i32
    %c0_i32_0 = arith.constant 0 : i32
    %c0_i32_1 = arith.constant 0 : i32
    return %arg0, %c0_i32, %c0_i32_0 : i32, i32, i32
  }
  func.func @transform_2(%arg0: i32) -> (i32, i32, i32) {
    %c0_i32 = arith.constant 0 : i32
    %c0_i32_0 = arith.constant 0 : i32
    %c0_i32_1 = arith.constant 0 : i32
    %c0_i32_2 = arith.constant 0 : i32
    return %c0_i32, %c0_i32_0, %c0_i32_1 : i32, i32, i32
  }
  func.func @transform_3(%arg0: i32) -> (i32, i32) {
    %c0_i32 = arith.constant 0 : i32
    %c0_i32_0 = arith.constant 0 : i32
    %c0_i32_1 = arith.constant 0 : i32
    return %c0_i32, %c0_i32_0 : i32, i32
  }
  func.func @transform_4(%arg0: i32) -> (i32, i32, i32) {
    %c0_i32 = arith.constant 0 : i32
    %c0_i32_0 = arith.constant 0 : i32
    %c0_i32_1 = arith.constant 0 : i32
    %c0_i32_2 = arith.constant 0 : i32
    return %c0_i32, %c0_i32_0, %c0_i32_1 : i32, i32, i32
  }
  func.func @transform_5(%arg0: i32) -> (i32, i32) {
    %c0_i32 = arith.constant 0 : i32
    %c0_i32_0 = arith.constant 0 : i32
    %c0_i32_1 = arith.constant 0 : i32
    return %c0_i32, %c0_i32_0 : i32, i32
  }
  func.func @transform_6(%arg0: i32) -> (i32, i32, i32) {
    %c0_i32 = arith.constant 0 : i32
    %c0_i32_0 = arith.constant 0 : i32
    %c0_i32_1 = arith.constant 0 : i32
    %c0_i32_2 = arith.constant 0 : i32
    return %c0_i32, %c0_i32_0, %c0_i32_1 : i32, i32, i32
  }
  func.func @transform_7(%arg0: i32) -> (i32, i32) {
    %c0_i32 = arith.constant 0 : i32
    %c0_i32_0 = arith.constant 0 : i32
    %c0_i32_1 = arith.constant 0 : i32
    return %c0_i32, %c0_i32_0 : i32, i32
  }
  func.func @transform_8(%arg0: i32) -> (i32, i32, i32) {
    %c0_i32 = arith.constant 0 : i32
    %c0_i32_0 = arith.constant 0 : i32
    %c0_i32_1 = arith.constant 0 : i32
    return %arg0, %c0_i32, %c0_i32_0 : i32, i32, i32
  }
}

</mosaic_0001>

<llo_original>
// kernel: tile.14
$region0: #{tile.14}
  #allocation0 [shape = 's32[1]{0}', space=sflag, size = 0x4, scoped, tag = 'scoped memory for tile.14']
  %s0 = inlined_call_operand.vmem [shape: f32[6], index: 0, kind: input, shape index: {}]
  %s1 = inlined_call_operand.vmem [shape: f32[28,6], index: 1, kind: output, shape index: {}]
  // Predicated region
  $region2: #{tile.14} parent=0 // pred_check
    _
  $region3: #{tile.14} parent=0 // pred_check_branch
    %3 = sbr.rel (0) target = $region5
  $region4: #{tile.14} parent=0 // pred_region
    _
  $region5: #{tile.14} parent=0 // pred_fallthru
    _
  %v4 = vld [vmem:[%s0] ss:$0 sm:$0xff]
  %5 = vst [vmem:[%s1] sm:$0xff] %v4
  %s6 = scalar_lea.vmem %s1, 8
  %7 = vst [vmem:[%s6] sm:$0xff] %v4
  %s8 = scalar_lea.vmem %s1, 16
  %9 = vst [vmem:[%s8] sm:$0xff] %v4
  %s10 = scalar_lea.vmem %s1, 24
  %11 = vst [vmem:[%s10] sm:$0xff] %v4

// kernel: tile.15
$region0: #{tile.15}
  %s0 = inlined_call_operand.vmem [shape: f32[28,6], index: 0, kind: input, shape index: {}]
  %s1 = inlined_call_operand.vmem [shape: f32[1,168], index: 1, kind: output, shape index: {}]
  $region1: #{tile.15} parent=0
    #allocation0 [shape = 'u8[8192]{0}', space=vmem, size = 0x2000, scoped, tag = 'scoped mem for output reshape']
    %v2 = vld [vmem:[%s0] sm:$0x1]
    %vm3 = vcmask 48128
    %4 = vst.msk [vmem:[#allocation0] sm:$0x1] %vm3, %v2
    %s5 = scalar_lea.vmem %s0, 21
    %v6 = vld [vmem:[%s5] sm:$0x1]
    %s7 = scalar_lea.vmem %s0, 21
    %v8 = vld [vmem:[%s7] sm:$0x1]
    %vm9 = vcmask 15360
    %v10 = vsel %vm9, %v8, %v6
    %11 = vrot.lane.b32.xlu0 %v10, 126
    %v12 = vpop.permute.xlu0 %11
    %vm13 = vcmask 31744
    %s14 = scalar_lea.vmem [#allocation0], 8
    %15 = vst.msk [vmem:[%s14] sm:$0x1] %vm13, %v12
    %vm16 = vcmask 1048560
    %17 = vst.msk [vmem:[#allocation0] sm:$0x1] %vm16, %v12
    %s18 = scalar_lea.vmem %s0, 20
    %v19 = vld [vmem:[%s18] sm:$0x1]
    %20 = vrot.lane.b32.xlu0 %v19, 120
    %v21 = vpop.permute.xlu0 %20
    %vm22 = vcmask 1032128
    %23 = vst.msk [vmem:[#allocation0] sm:$0x1] %vm22, %v21
    %s24 = scalar_lea.vmem %s0, 19
    %v25 = vld [vmem:[%s24] sm:$0x1]
    %26 = vrot.lane.b32.xlu0 %v25, 114
    %v27 = vpop.permute.xlu0 %26
    %vm28 = vcmask 982928
    %29 = vst.msk [vmem:[#allocation0] sm:$0x1] %vm28, %v27
    %s30 = scalar_lea.vmem %s0, 18
    %v31 = vld [vmem:[%s30] sm:$0x1]
    %32 = vrot.lane.b32.xlu0 %v31, 108
    %v33 = vpop.permute.xlu0 %32
    %vm34 = vcmask 933728
    %35 = vst.msk [vmem:[#allocation0] sm:$0x1] %vm34, %v33
    %s36 = scalar_lea.vmem %s0, 17
    %v37 = vld [vmem:[%s36] sm:$0x1]
    %38 = vrot.lane.b32.xlu0 %v37, 102
    %v39 = vpop.permute.xlu0 %38
    %vm40 = vcmask 884528
    %41 = vst.msk [vmem:[#allocation0] sm:$0x1] %vm40, %v39
    %s42 = scalar_lea.vmem %s0, 16
    %v43 = vld [vmem:[%s42] sm:$0x1]
    %44 = vrot.lane.b32.xlu0 %v43, 96
    %v45 = vpop.permute.xlu0 %44
    %vm46 = vcmask 835328
    %47 = vst.msk [vmem:[#allocation0] sm:$0x1] %vm46, %v45
    %s48 = scalar_lea.vmem %s0, 15
    %v49 = vld [vmem:[%s48] sm:$0x1]
    %50 = vrot.lane.b32.xlu0 %v49, 90
    %v51 = vpop.permute.xlu0 %50
    %vm52 = vcmask 786128
    %53 = vst.msk [vmem:[#allocation0] sm:$0x1] %vm52, %v51
    %s54 = scalar_lea.vmem %s0, 14
    %v55 = vld [vmem:[%s54] sm:$0x1]
    %56 = vrot.lane.b32.xlu0 %v55, 84
    %v57 = vpop.permute.xlu0 %56
    %vm58 = vcmask 736928
    %59 = vst.msk [vmem:[#allocation0] sm:$0x1] %vm58, %v57
    %s60 = scalar_lea.vmem %s0, 13
    %v61 = vld [vmem:[%s60] sm:$0x1]
    %62 = vrot.lane.b32.xlu0 %v61, 78
    %v63 = vpop.permute.xlu0 %62
    %vm64 = vcmask 687728
    %65 = vst.msk [vmem:[#allocation0] sm:$0x1] %vm64, %v63
    %s66 = scalar_lea.vmem %s0, 12
    %v67 = vld [vmem:[%s66] sm:$0x1]
    %68 = vrot.lane.b32.xlu0 %v67, 72
    %v69 = vpop.permute.xlu0 %68
    %vm70 = vcmask 638528
    %71 = vst.msk [vmem:[#allocation0] sm:$0x1] %vm70, %v69
    %s72 = scalar_lea.vmem %s0, 11
    %v73 = vld [vmem:[%s72] sm:$0x1]
    %74 = vrot.lane.b32.xlu0 %v73, 66
    %v75 = vpop.permute.xlu0 %74
    %vm76 = vcmask 589328
    %77 = vst.msk [vmem:[#allocation0] sm:$0x1] %vm76, %v75
    %s78 = scalar_lea.vmem %s0, 10
    %v79 = vld [vmem:[%s78] sm:$0x1]
    %80 = vrot.lane.b32.xlu0 %v79, 60
    %v81 = vpop.permute.xlu0 %80
    %vm82 = vcmask 540128
    %83 = vst.msk [vmem:[#allocation0] sm:$0x1] %vm82, %v81
    %s84 = scalar_lea.vmem %s0, 9
    %v85 = vld [vmem:[%s84] sm:$0x1]
    %86 = vrot.lane.b32.xlu0 %v85, 54
    %v87 = vpop.permute.xlu0 %86
    %vm88 = vcmask 490928
    %89 = vst.msk [vmem:[#allocation0] sm:$0x1] %vm88, %v87
    %s90 = scalar_lea.vmem %s0, 8
    %v91 = vld [vmem:[%s90] sm:$0x1]
    %92 = vrot.lane.b32.xlu0 %v91, 48
    %v93 = vpop.permute.xlu0 %92
    %vm94 = vcmask 441728
    %95 = vst.msk [vmem:[#allocation0] sm:$0x1] %vm94, %v93
    %s96 = scalar_lea.vmem %s0, 7
    %v97 = vld [vmem:[%s96] sm:$0x1]
    %98 = vrot.lane.b32.xlu0 %v97, 42
    %v99 = vpop.permute.xlu0 %98
    %vm100 = vcmask 392528
    %101 = vst.msk [vmem:[#allocation0] sm:$0x1] %vm100, %v99
    %s102 = scalar_lea.vmem %s0, 6
    %v103 = vld [vmem:[%s102] sm:$0x1]
    %104 = vrot.lane.b32.xlu0 %v103, 36
    %v105 = vpop.permute.xlu0 %104
    %vm106 = vcmask 343328
    %107 = vst.msk [vmem:[#allocation0] sm:$0x1] %vm106, %v105
    %s108 = scalar_lea.vmem %s0, 27
    %v109 = vld [vmem:[%s108] sm:$0x1]
    %110 = vrot.lane.b32.xlu0 %v109, 34
    %v111 = vpop.permute.xlu0 %110
    %vm112 = vcmask 326928
    %s113 = scalar_lea.vmem [#allocation0], 8
    %114 = vst.msk [vmem:[%s113] sm:$0x1] %vm112, %v111
    %s115 = scalar_lea.vmem %s0, 5
    %v116 = vld [vmem:[%s115] sm:$0x1]
    %117 = vrot.lane.b32.xlu0 %v116, 30
    %v118 = vpop.permute.xlu0 %117
    %vm119 = vcmask 294128
    %120 = vst.msk [vmem:[#allocation0] sm:$0x1] %vm119, %v118
    %s121 = scalar_lea.vmem %s0, 26
    %v122 = vld [vmem:[%s121] sm:$0x1]
    %123 = vrot.lane.b32.xlu0 %v122, 28
    %v124 = vpop.permute.xlu0 %123
    %vm125 = vcmask 277728
    %s126 = scalar_lea.vmem [#allocation0], 8
    %127 = vst.msk [vmem:[%s126] sm:$0x1] %vm125, %v124
    %s128 = scalar_lea.vmem %s0, 4
    %v129 = vld [vmem:[%s128] sm:$0x1]
    %130 = vrot.lane.b32.xlu0 %v129, 24
    %v131 = vpop.permute.xlu0 %130
    %vm132 = vcmask 244928
    %133 = vst.msk [vmem:[#allocation0] sm:$0x1] %vm132, %v131
    %s134 = scalar_lea.vmem %s0, 25
    %v135 = vld [vmem:[%s134] sm:$0x1]
    %136 = vrot.lane.b32.xlu0 %v135, 22
    %v137 = vpop.permute.xlu0 %136
    %vm138 = vcmask 228528
    %s139 = scalar_lea.vmem [#allocation0], 8
    %140 = vst.msk [vmem:[%s139] sm:$0x1] %vm138, %v137
    %s141 = scalar_lea.vmem %s0, 3
    %v142 = vld [vmem:[%s141] sm:$0x1]
    %143 = vrot.lane.b32.xlu0 %v142, 18
    %v144 = vpop.permute.xlu0 %143
    %vm145 = vcmask 195728
    %146 = vst.msk [vmem:[#allocation0] sm:$0x1] %vm145, %v144
    %s147 = scalar_lea.vmem %s0, 24
    %v148 = vld [vmem:[%s147] sm:$0x1]
    %149 = vrot.lane.b32.xlu0 %v148, 16
    %v150 = vpop.permute.xlu0 %149
    %vm151 = vcmask 179328
    %s152 = scalar_lea.vmem [#allocation0], 8
    %153 = vst.msk [vmem:[%s152] sm:$0x1] %vm151, %v150
    %s154 = scalar_lea.vmem %s0, 2
    %v155 = vld [vmem:[%s154] sm:$0x1]
    %156 = vrot.lane.b32.xlu0 %v155, 12
    %v157 = vpop.permute.xlu0 %156
    %vm158 = vcmask 146528
    %159 = vst.msk [vmem:[#allocation0] sm:$0x1] %vm158, %v157
    %s160 = scalar_lea.vmem %s0, 23
    %v161 = vld [vmem:[%s160] sm:$0x1]
    %162 = vrot.lane.b32.xlu0 %v161, 10
    %v163 = vpop.permute.xlu0 %162
    %vm164 = vcmask 130128
    %s165 = scalar_lea.vmem [#allocation0], 8
    %166 = vst.msk [vmem:[%s165] sm:$0x1] %vm164, %v163
    %s167 = scalar_lea.vmem %s0, 1
    %v168 = vld [vmem:[%s167] sm:$0x1]
    %169 = vrot.lane.b32.xlu0 %v168, 6
    %v170 = vpop.permute.xlu0 %169
    %vm171 = vcmask 97328
    %172 = vst.msk [vmem:[#allocation0] sm:$0x1] %vm171, %v170
    %s173 = scalar_lea.vmem %s0, 22
    %v174 = vld [vmem:[%s173] sm:$0x1]
    %175 = vrot.lane.b32.xlu0 %v174, 4
    %v176 = vpop.permute.xlu0 %175
    %vm177 = vcmask 80928
    %s178 = scalar_lea.vmem [#allocation0], 8
    %179 = vst.msk [vmem:[%s178] sm:$0x1] %vm177, %v176
    %s181 = sshll.u32 1, 1
    %s182 = ssub.s32 %s181, 1
    %v184 = vld [vmem:[#allocation0] sm:%s182]
    %s185 = sshll.u32 1, 1
    %s186 = ssub.s32 %s185, 1
    %187 = vst [vmem:[%s1] sm:%s186] %v184
    %s188 = scalar_lea.vmem [#allocation0], 8
    %v189 = vld [vmem:[%s188] sm:%s182]
    %s190 = sshll.u32 1, 1
    %s191 = ssub.s32 %s190, 1
    %s192 = scalar_lea.vmem %s1, 1
    %193 = vst [vmem:[%s192] sm:%s191] %v189

// kernel: tile.19
$region0: #{tile.19}
  #allocation0 [shape = 's32[1]{0}', space=sflag, size = 0x4, scoped, tag = 'scoped memory for tile.19']
  %s0 = inlined_call_operand.vmem [shape: f32[16], index: 0, kind: input, shape index: {}]
  %s1 = inlined_call_operand.vmem [shape: f32[10,16], index: 1, kind: output, shape index: {}]
  // Predicated region
  $region2: #{tile.19} parent=0 // pred_check
    _
  $region3: #{tile.19} parent=0 // pred_check_branch
    %3 = sbr.rel (0) target = $region5
  $region4: #{tile.19} parent=0 // pred_region
    _
  $region5: #{tile.19} parent=0 // pred_fallthru
    _
  %v4 = vld [vmem:[%s0] ss:$0 sm:$0xff]
  %5 = vst [vmem:[%s1] sm:$0xff] %v4
  %s6 = scalar_lea.vmem %s1, 8
  %7 = vst [vmem:[%s6] sm:$0xff] %v4

// kernel: tile.20
$region0: #{tile.20}
  %s0 = inlined_call_operand.vmem [shape: f32[10,16], index: 0, kind: input, shape index: {}]
  %s1 = inlined_call_operand.vmem [shape: f32[1,160], index: 1, kind: output, shape index: {}]
  $region1: #{tile.20} parent=0
    #allocation0 [shape = 'u8[8192]{0}', space=vmem, size = 0x2000, scoped, tag = 'scoped mem for output reshape']
    %s2 = smov 3
    %v3 = vld [vmem:[%s0] ss:$8 sm:%s2]
    %vm4 = vcmask 130048
    %5 = vst.msk [vmem:[#allocation0] ss:$8 sm:$0x3] %vm4, %v3
    %s6 = scalar_lea.vmem %s0, 7
    %v7 = vld [vmem:[%s6] sm:$0x1]
    %8 = vrot.lane.b32.xlu0 %v7, 112
    %v9 = vpop.permute.xlu0 %8
    %vm10 = vcmask 1048448
    %11 = vst.msk [vmem:[#allocation0] sm:$0x1] %vm10, %v9
    %s12 = scalar_lea.vmem %s0, 6
    %v13 = vld [vmem:[%s12] sm:$0x1]
    %14 = vrot.lane.b32.xlu0 %v13, 96
    %v15 = vpop.permute.xlu0 %14
    %vm16 = vcmask 917248
    %17 = vst.msk [vmem:[#allocation0] sm:$0x1] %vm16, %v15
    %s18 = scalar_lea.vmem %s0, 5
    %v19 = vld [vmem:[%s18] sm:$0x1]
    %20 = vrot.lane.b32.xlu0 %v19, 80
    %v21 = vpop.permute.xlu0 %20
    %vm22 = vcmask 786048
    %23 = vst.msk [vmem:[#allocation0] sm:$0x1] %vm22, %v21
    %s24 = scalar_lea.vmem %s0, 4
    %v25 = vld [vmem:[%s24] sm:$0x1]
    %26 = vrot.lane.b32.xlu0 %v25, 64
    %v27 = vpop.permute.xlu0 %26
    %vm28 = vcmask 654848
    %29 = vst.msk [vmem:[#allocation0] sm:$0x1] %vm28, %v27
    %s30 = scalar_lea.vmem %s0, 3
    %v31 = vld [vmem:[%s30] sm:$0x1]
    %32 = vrot.lane.b32.xlu0 %v31, 48
    %v33 = vpop.permute.xlu0 %32
    %vm34 = vcmask 523648
    %35 = vst.msk [vmem:[#allocation0] sm:$0x1] %vm34, %v33
    %s36 = scalar_lea.vmem %s0, 2
    %v37 = vld [vmem:[%s36] sm:$0x1]
    %38 = vrot.lane.b32.xlu0 %v37, 32
    %v39 = vpop.permute.xlu0 %38
    %vm40 = vcmask 392448
    %41 = vst.msk [vmem:[#allocation0] sm:$0x1] %vm40, %v39
    %s42 = scalar_lea.vmem %s0, 1
    %s43 = smov 3
    %v44 = vld [vmem:[%s42] ss:$8 sm:%s43]
    %45 = vrot.lane.b32.xlu0 %v44, 16
    %v46 = vpop.permute.xlu0 %45
    %vm47 = vcmask 261248
    %48 = vst.msk [vmem:[#allocation0] ss:$8 sm:$0x3] %vm47, %v46
    %s50 = sshll.u32 1, 1
    %s51 = ssub.s32 %s50, 1
    %v53 = vld [vmem:[#allocation0] sm:%s51]
    %s54 = sshll.u32 1, 1
    %s55 = ssub.s32 %s54, 1
    %56 = vst [vmem:[%s1] sm:%s55] %v53
    %s57 = scalar_lea.vmem [#allocation0], 8
    %v58 = vld [vmem:[%s57] sm:%s51]
    %s59 = sshll.u32 1, 1
    %s60 = ssub.s32 %s59, 1
    %s61 = scalar_lea.vmem %s1, 1
    %62 = vst [vmem:[%s61] sm:%s60] %v58

// kernel: lenet_forward.1
$region0: #{lenet_forward.1}
  #allocation0 [shape = 'u32[]', space=smem, size = 0x4, offset = 0x4, fixed_abs, tag = 'smem constant byte address 0x4 - core index']
  #allocation1 [shape = 'u32[144,128]{1,0:T(1,128)}', space=vmem, size = 0x12000, scoped, tag = 'internal scratch']
  #allocation2 [shape = 'f32[14,168]{1,0:T(8,128)}', space=vmem, size = 0x4000, scoped, tag = 'scratch operand']
  #allocation3 [shape = 'f32[14,168]{1,0:T(8,128)}', space=vmem, size = 0x4000, scoped, tag = 'scratch operand']
  #allocation4 [shape = 'f32[10,160]{1,0:T(8,128)}', space=vmem, size = 0x4000, scoped, tag = 'scratch operand']
  %s0 = inlined_call_operand.vmem [shape: f32[2,16,96], index: 0, kind: input, shape index: {}]
  %s1 = inlined_call_operand.vmem [shape: f32[2,16,96], index: 1, kind: input, shape index: {}]
  %s2 = inlined_call_operand.vmem [shape: f32[5,96,168], index: 2, kind: input, shape index: {}]
  %s3 = inlined_call_operand.vmem [shape: f32[1,168], index: 3, kind: input, shape index: {}]
  %s4 = inlined_call_operand.vmem [shape: f32[5,168,160], index: 4, kind: input, shape index: {}]
  %s5 = inlined_call_operand.vmem [shape: f32[1,160], index: 5, kind: input, shape index: {}]
  %s6 = inlined_call_operand.vmem [shape: f32[5,160,128], index: 6, kind: input, shape index: {}]
  %s7 = inlined_call_operand.vmem [shape: f32[1,128], index: 7, kind: input, shape index: {}]
  %s8 = inlined_call_operand.vmem [shape: f32[2,1,128], index: 8, kind: output, shape index: {}]
  %s9 = sld [smem:[#allocation0]]
  $region65: #{lenet_forward.1} parent=0
    _
  %s11 = ssub.s32 1, %s9
  %s12 = scalar_select 0, %s11, %s9
  loop: start=0, step=1, limit=4
  $region2: #{lenet_forward.1} parent=0 // loop_pre_header
    _
  $region3: #{lenet_forward.1} parent=0 // loop_header
    %s14 = sphi 0, %s18
    %p15 = scmp.ge.s32.totalorder %s14, 4
    %s24 = sphi 0, %s26
    %s27 = sphi 0, %s24
    %s28 = sphi 0, %s27
    %s44 = sphi 0, %s28
    %s50 = sphi 0, %s52
    %s53 = sphi 0, %s50
    %s54 = sphi 0, %s53
    %s70 = sphi 0, %s54
    %s74 = sphi 0, %s74
    %s76 = sphi 0, %s74
    %s77 = sphi 0, %s76
    %s91 = sphi 0, %s77
    %s95 = sphi 0, %s95
    %s97 = sphi 0, %s95
    %s98 = sphi 0, %s97
    %s112 = sphi 0, %s98
    %s116 = sphi 0, %s116
    %s118 = sphi 0, %s116
    %s119 = sphi 0, %s118
    %s133 = sphi 0, %s119
    %s137 = sphi 0, %s137
    %s139 = sphi 0, %s137
    %s140 = sphi 0, %s139
    %s154 = sphi 0, %s140
    %s158 = sphi 0, %s158
    %s160 = sphi 0, %s158
    %s161 = sphi 0, %s160
    %s175 = sphi 0, %s161
    %s179 = sphi 0, %s179
    %s181 = sphi 0, %s179
    %s182 = sphi 0, %s181
    %s196 = sphi 0, %s182
    %s202 = sphi 0, %s204
    %s205 = sphi 0, %s202
    %s206 = sphi 0, %s205
    %s222 = sphi 0, %s206
  $region4: #{lenet_forward.1} parent=0 // loop_header_branch
    %17 = sbr.rel (%p15) target = $region8
  $region5: #{lenet_forward.1} parent=0 // loop_body
    %s19 = ssub.s32 %s14, 1
    %s20 = ssub.s32 %s14, 2
    %s21 = sadd.s32 %s14, 1
    %s22 = ssub.s32 %s14, %s21
    %p23 = scmp.eq.s32.totalorder %s22, 0
    %s25 = sadd.s32 %s24, 1
    %s26 = scalar_select %p23, %s24, %s25
    %p29 = pneg %p23
    %p30 = scmp.eq.s32.totalorder %s14, 1
    %p31 = por %p29, %p30
    %p32 = scmp.ne.s32.totalorder %s24, %s27
    %p33 = scmp.eq.s32.totalorder %s14, 0
    %p34 = por %p32, %p33
    %p35 = scmp.ne.s32.totalorder %s24, %s27
    %p36 = scmp.eq.s32.totalorder %s19, 1
    %p37 = por %p35, %p36
    %p38 = scmp.ne.s32.totalorder %s27, %s28
    %p39 = scmp.eq.s32.totalorder %s19, 0
    %p40 = por %p38, %p39
    %p41 = scmp.ne.s32.totalorder %s27, %s28
    %p42 = scmp.eq.s32.totalorder %s20, 1
    %p43 = por %p41, %p42
    %p45 = scmp.ne.s32.totalorder %s28, %s44
    %p46 = scmp.eq.s32.totalorder %s20, 0
    %p47 = por %p45, %p46
    %s48 = ssub.s32 %s14, %s21
    %p49 = scmp.eq.s32.totalorder %s48, 0
    %s51 = sadd.s32 %s50, 1
    %s52 = scalar_select %p49, %s50, %s51
    %p55 = pneg %p49
    %p56 = scmp.eq.s32.totalorder %s14, 1
    %p57 = por %p55, %p56
    %p58 = scmp.ne.s32.totalorder %s50, %s53
    %p59 = scmp.eq.s32.totalorder %s14, 0
    %p60 = por %p58, %p59
    %p61 = scmp.ne.s32.totalorder %s50, %s53
    %p62 = scmp.eq.s32.totalorder %s19, 1
    %p63 = por %p61, %p62
    %p64 = scmp.ne.s32.totalorder %s53, %s54
    %p65 = scmp.eq.s32.totalorder %s19, 0
    %p66 = por %p64, %p65
    %p67 = scmp.ne.s32.totalorder %s53, %s54
    %p68 = scmp.eq.s32.totalorder %s20, 1
    %p69 = por %p67, %p68
    %p71 = scmp.ne.s32.totalorder %s54, %s70
    %p72 = scmp.eq.s32.totalorder %s20, 0
    %p73 = por %p71, %p72
    %s75 = sadd.s32 %s74, 1
    %p78 = scmp.eq.s32.totalorder %s14, 1
    %p79 = scmp.ne.s32.totalorder %s74, %s76
    %p80 = scmp.eq.s32.totalorder %s14, 0
    %p81 = por %p79, %p80
    %p82 = scmp.ne.s32.totalorder %s74, %s76
    %p83 = scmp.eq.s32.totalorder %s19, 1
    %p84 = por %p82, %p83
    %p85 = scmp.ne.s32.totalorder %s76, %s77
    %p86 = scmp.eq.s32.totalorder %s19, 0
    %p87 = por %p85, %p86
    %p88 = scmp.ne.s32.totalorder %s76, %s77
    %p89 = scmp.eq.s32.totalorder %s20, 1
    %p90 = por %p88, %p89
    %p92 = scmp.ne.s32.totalorder %s77, %s91
    %p93 = scmp.eq.s32.totalorder %s20, 0
    %p94 = por %p92, %p93
    %s96 = sadd.s32 %s95, 1
    %p99 = scmp.eq.s32.totalorder %s14, 1
    %p100 = scmp.ne.s32.totalorder %s95, %s97
    %p101 = scmp.eq.s32.totalorder %s14, 0
    %p102 = por %p100, %p101
    %p103 = scmp.ne.s32.totalorder %s95, %s97
    %p104 = scmp.eq.s32.totalorder %s19, 1
    %p105 = por %p103, %p104
    %p106 = scmp.ne.s32.totalorder %s97, %s98
    %p107 = scmp.eq.s32.totalorder %s19, 0
    %p108 = por %p106, %p107
    %p109 = scmp.ne.s32.totalorder %s97, %s98
    %p110 = scmp.eq.s32.totalorder %s20, 1
    %p111 = por %p109, %p110
    %p113 = scmp.ne.s32.totalorder %s98, %s112
    %p114 = scmp.eq.s32.totalorder %s20, 0
    %p115 = por %p113, %p114
    %s117 = sadd.s32 %s116, 1
    %p120 = scmp.eq.s32.totalorder %s14, 1
    %p121 = scmp.ne.s32.totalorder %s116, %s118
    %p122 = scmp.eq.s32.totalorder %s14, 0
    %p123 = por %p121, %p122
    %p124 = scmp.ne.s32.totalorder %s116, %s118
    %p125 = scmp.eq.s32.totalorder %s19, 1
    %p126 = por %p124, %p125
    %p127 = scmp.ne.s32.totalorder %s118, %s119
    %p128 = scmp.eq.s32.totalorder %s19, 0
    %p129 = por %p127, %p128
    %p130 = scmp.ne.s32.totalorder %s118, %s119
    %p131 = scmp.eq.s32.totalorder %s20, 1
    %p132 = por %p130, %p131
    %p134 = scmp.ne.s32.totalorder %s119, %s133
    %p135 = scmp.eq.s32.totalorder %s20, 0
    %p136 = por %p134, %p135
    %s138 = sadd.s32 %s137, 1
    %p141 = scmp.eq.s32.totalorder %s14, 1
    %p142 = scmp.ne.s32.totalorder %s137, %s139
    %p143 = scmp.eq.s32.totalorder %s14, 0
    %p144 = por %p142, %p143
    %p145 = scmp.ne.s32.totalorder %s137, %s139
    %p146 = scmp.eq.s32.totalorder %s19, 1
    %p147 = por %p145, %p146
    %p148 = scmp.ne.s32.totalorder %s139, %s140
    %p149 = scmp.eq.s32.totalorder %s19, 0
    %p150 = por %p148, %p149
    %p151 = scmp.ne.s32.totalorder %s139, %s140
    %p152 = scmp.eq.s32.totalorder %s20, 1
    %p153 = por %p151, %p152
    %p155 = scmp.ne.s32.totalorder %s140, %s154
    %p156 = scmp.eq.s32.totalorder %s20, 0
    %p157 = por %p155, %p156
    %s159 = sadd.s32 %s158, 1
    %p162 = scmp.eq.s32.totalorder %s14, 1
    %p163 = scmp.ne.s32.totalorder %s158, %s160
    %p164 = scmp.eq.s32.totalorder %s14, 0
    %p165 = por %p163, %p164
    %p166 = scmp.ne.s32.totalorder %s158, %s160
    %p167 = scmp.eq.s32.totalorder %s19, 1
    %p168 = por %p166, %p167
    %p169 = scmp.ne.s32.totalorder %s160, %s161
    %p170 = scmp.eq.s32.totalorder %s19, 0
    %p171 = por %p169, %p170
    %p172 = scmp.ne.s32.totalorder %s160, %s161
    %p173 = scmp.eq.s32.totalorder %s20, 1
    %p174 = por %p172, %p173
    %p176 = scmp.ne.s32.totalorder %s161, %s175
    %p177 = scmp.eq.s32.totalorder %s20, 0
    %p178 = por %p176, %p177
    %s180 = sadd.s32 %s179, 1
    %p183 = scmp.eq.s32.totalorder %s14, 1
    %p184 = scmp.ne.s32.totalorder %s179, %s181
    %p185 = scmp.eq.s32.totalorder %s14, 0
    %p186 = por %p184, %p185
    %p187 = scmp.ne.s32.totalorder %s179, %s181
    %p188 = scmp.eq.s32.totalorder %s19, 1
    %p189 = por %p187, %p188
    %p190 = scmp.ne.s32.totalorder %s181, %s182
    %p191 = scmp.eq.s32.totalorder %s19, 0
    %p192 = por %p190, %p191
    %p193 = scmp.ne.s32.totalorder %s181, %s182
    %p194 = scmp.eq.s32.totalorder %s20, 1
    %p195 = por %p193, %p194
    %p197 = scmp.ne.s32.totalorder %s182, %s196
    %p198 = scmp.eq.s32.totalorder %s20, 0
    %p199 = por %p197, %p198
    %s200 = ssub.s32 %s14, %s21
    %p201 = scmp.eq.s32.totalorder %s200, 0
    %s203 = sadd.s32 %s202, 1
    %s204 = scalar_select %p201, %s202, %s203
    %p207 = pneg %p201
    %p208 = scmp.eq.s32.totalorder %s14, 1
    %p209 = por %p207, %p208
    %p210 = scmp.ne.s32.totalorder %s202, %s205
    %p211 = scmp.eq.s32.totalorder %s14, 0
    %p212 = por %p210, %p211
    %p213 = scmp.ne.s32.totalorder %s202, %s205
    %p214 = scmp.eq.s32.totalorder %s19, 1
    %p215 = por %p213, %p214
    %p216 = scmp.ne.s32.totalorder %s205, %s206
    %p217 = scmp.eq.s32.totalorder %s19, 0
    %p218 = por %p216, %p217
    %p219 = scmp.ne.s32.totalorder %s205, %s206
    %p220 = scmp.eq.s32.totalorder %s20, 1
    %p221 = por %p219, %p220
    %p223 = scmp.ne.s32.totalorder %s206, %s222
    %p224 = scmp.eq.s32.totalorder %s20, 0
    %p225 = por %p223, %p224
    %p226 = scmp.le.s32.totalorder 1, %s14
    %p227 = scmp.lt.s32.totalorder %s14, 3
    %p228 = pnand %p226, %p227
    %p229 = pneg %p228
    // Predicated region
    $region9: #{lenet_forward.1} parent=5 // pred_check
      _
    $region10: #{lenet_forward.1} parent=5 // pred_check_branch
      %231 = sbr.rel (%p228) target = $region12
    $region11: #{lenet_forward.1} parent=5 // pred_region
      %s232 = ssub.s32 %s14, 1
      // Predicated region
      $region13: #{lenet_forward.1} parent=11 // pred_check
        %p233 = pneg %p87
      $region14: #{lenet_forward.1} parent=11 // pred_check_branch
        %235 = sbr.rel (%p233) target = $region16
      $region15: #{lenet_forward.1} parent=11 // pred_region
        _
      $region16: #{lenet_forward.1} parent=11 // pred_fallthru
        _
      // Predicated region
      $region17: #{lenet_forward.1} parent=11 // pred_check
        %p236 = pneg %p108
      $region18: #{lenet_forward.1} parent=11 // pred_check_branch
        %238 = sbr.rel (%p236) target = $region20
      $region19: #{lenet_forward.1} parent=11 // pred_region
        _
      $region20: #{lenet_forward.1} parent=11 // pred_fallthru
        _
      // Predicated region
      $region21: #{lenet_forward.1} parent=11 // pred_check
        %p239 = pneg %p129
      $region22: #{lenet_forward.1} parent=11 // pred_check_branch
        %241 = sbr.rel (%p239) target = $region24
      $region23: #{lenet_forward.1} parent=11 // pred_region
        _
      $region24: #{lenet_forward.1} parent=11 // pred_fallthru
        _
      // Predicated region
      $region25: #{lenet_forward.1} parent=11 // pred_check
        %p242 = pneg %p150
      $region26: #{lenet_forward.1} parent=11 // pred_check_branch
        %244 = sbr.rel (%p242) target = $region28
      $region27: #{lenet_forward.1} parent=11 // pred_region
        _
      $region28: #{lenet_forward.1} parent=11 // pred_fallthru
        _
      // Predicated region
      $region29: #{lenet_forward.1} parent=11 // pred_check
        %p245 = pneg %p171
      $region30: #{lenet_forward.1} parent=11 // pred_check_branch
        %247 = sbr.rel (%p245) target = $region32
      $region31: #{lenet_forward.1} parent=11 // pred_region
        _
      $region32: #{lenet_forward.1} parent=11 // pred_fallthru
        _
      // Predicated region
      $region33: #{lenet_forward.1} parent=11 // pred_check
        %p248 = pneg %p192
      $region34: #{lenet_forward.1} parent=11 // pred_check_branch
        %250 = sbr.rel (%p248) target = $region36
      $region35: #{lenet_forward.1} parent=11 // pred_region
        _
      $region36: #{lenet_forward.1} parent=11 // pred_fallthru
        _
    $region12: #{lenet_forward.1} parent=5 // pred_fallthru
      _
    %p251 = scmp.lt.s32.totalorder %s14, 2
    // Predicated region
    $region37: #{lenet_forward.1} parent=5 // pred_check
      %p252 = pneg %p251
    $region38: #{lenet_forward.1} parent=5 // pred_check_branch
      %254 = sbr.rel (%p252) target = $region40
    $region39: #{lenet_forward.1} parent=5 // pred_region
      // Predicated region
      $region41: #{lenet_forward.1} parent=39 // pred_check
        %p255 = pneg %p34
      $region42: #{lenet_forward.1} parent=39 // pred_check_branch
        %257 = sbr.rel (%p255) target = $region44
      $region43: #{lenet_forward.1} parent=39 // pred_region
        %p258 = scmp.lt.s32.totalorder %s14, 1
        %s259 = scalar_select %p258, %s14, 1
        %s260 = smul.addr %s259, 2
        %s261 = smul.addr %s260, 8
        %s262 = scalar_lea.vmem %s0, %s261
      $region44: #{lenet_forward.1} parent=39 // pred_fallthru
        _
      // Predicated region
      $region45: #{lenet_forward.1} parent=39 // pred_check
        %p263 = pneg %p60
      $region46: #{lenet_forward.1} parent=39 // pred_check_branch
        %265 = sbr.rel (%p263) target = $region48
      $region47: #{lenet_forward.1} parent=39 // pred_region
        %p266 = scmp.lt.s32.totalorder %s14, 1
        %s267 = scalar_select %p266, %s14, 1
        %s268 = smul.addr %s267, 2
        %s269 = smul.addr %s268, 8
        %s270 = scalar_lea.vmem %s1, %s269
      $region48: #{lenet_forward.1} parent=39 // pred_fallthru
        _
    $region40: #{lenet_forward.1} parent=5 // pred_fallthru
      _
    %p271 = scmp.le.s32.totalorder 1, %s14
    %p272 = scmp.lt.s32.totalorder %s14, 3
    %p273 = pnand %p271, %p272
    %p274 = pneg %p273
    // Predicated region
    $region49: #{lenet_forward.1} parent=5 // pred_check
      _
    $region50: #{lenet_forward.1} parent=5 // pred_check_branch
      %276 = sbr.rel (%p273) target = $region52
    $region51: #{lenet_forward.1} parent=5 // pred_region
      %s277 = ssub.s32 %s14, 1
      %p278 = scmp.lt.s32.totalorder %s19, 1
      %s279 = scalar_select %p278, %s19, 1
      %s280 = smul.addr %s279, 2
      %s281 = smul.addr %s280, 8
      %s282 = scalar_lea.vmem %s0, %s281
      %p283 = pneg %p40
      %p284 = pneg %p37
      %p285 = scmp.lt.s32.totalorder %s19, 1
      %s286 = scalar_select %p285, %s19, 1
      %s287 = smul.addr %s286, 2
      %s288 = smul.addr %s287, 8
      %s289 = scalar_lea.vmem %s1, %s288
      %p290 = pneg %p66
      %p291 = pneg %p63
      %p292 = pneg %p87
      %p293 = pneg %p84
      %p294 = pneg %p108
      %p295 = pneg %p105
      %p296 = pneg %p129
      %p297 = pneg %p126
      %p298 = pneg %p150
      %p299 = pneg %p147
      %p300 = pneg %p171
      %p301 = pneg %p168
      %p302 = pneg %p192
      %p303 = pneg %p189
      %p304 = pneg %p218
      %p305 = pneg %p215
      %p306 = scmp.lt.s32.totalorder %s19, 1
      %s307 = scalar_select %p306, %s19, 1
      %s308 = scalar_lea.vmem %s8, %s307
      %p309 = scmp.lt.s32.totalorder %s19, 1
      %s310 = scalar_select %p309, %s19, 1
      %s311 = smul.addr %s310, 2
      %s312 = smul.addr %s311, 8
      %s313 = scalar_lea.vmem %s0, %s312
      %p314 = scmp.lt.s32.totalorder %s19, 1
      %s315 = scalar_select %p314, %s19, 1
      %s316 = smul.addr %s315, 2
      %s317 = smul.addr %s316, 8
      %s318 = scalar_lea.vmem %s1, %s317
      %p319 = scmp.lt.s32.totalorder %s19, 1
      %s320 = scalar_select %p319, %s19, 1
      %s321 = scalar_lea.vmem %s8, %s320
      %v322 = vld [vmem:[%s2] sm:$0xff]
      %v323 = vld [vmem:[%s2 + $0x8] sm:$0xff]
      %v324 = vld [vmem:[%s2 + $0x10] sm:$0xff]
      %v325 = vld [vmem:[%s2 + $0x18] sm:$0xff]
      %v326 = vld [vmem:[%s2 + $0x20] sm:$0xff]
      %v327 = vld [vmem:[%s2 + $0x28] sm:$0xff]
      %v328 = vld [vmem:[%s2 + $0x30] sm:$0xff]
      %v329 = vld [vmem:[%s2 + $0x38] sm:$0xff]
      %v330 = vld [vmem:[%s2 + $0x40] sm:$0xff]
      %v331 = vld [vmem:[%s2 + $0x48] sm:$0xff]
      %v332 = vld [vmem:[%s2 + $0x50] sm:$0xff]
      %v333 = vld [vmem:[%s2 + $0x58] sm:$0xff]
      %v334 = vld [vmem:[%s2 + $0x60] sm:$0xff]
      %v335 = vld [vmem:[%s2 + $0x68] sm:$0xff]
      %v336 = vld [vmem:[%s2 + $0x70] sm:$0xff]
      %v337 = vld [vmem:[%s2 + $0x78] sm:$0xff]
      %v338 = vld [vmem:[%s2 + $0x80] sm:$0xff]
      %v339 = vld [vmem:[%s2 + $0x88] sm:$0xff]
      %v340 = vld [vmem:[%s2 + $0x90] sm:$0xff]
      %v341 = vld [vmem:[%s2 + $0x98] sm:$0xff]
      %v342 = vld [vmem:[%s2 + $0xa0] sm:$0xff]
      %v343 = vld [vmem:[%s2 + $0xa8] sm:$0xff]
      %v344 = vld [vmem:[%s2 + $0xb0] sm:$0xff]
      %v345 = vld [vmem:[%s2 + $0xb8] sm:$0xff]
      %v346 = vld [vmem:[%s313] sm:$0xff]
      %v347 = vld [vmem:[%s313 + $0x8] sm:$0x3f]
      %v348 = vld [vmem:[%s318] sm:$0xff]
      %v349 = vld [vmem:[%s318 + $0x8] sm:$0x3f]
      %s350 = scalar_lea.vmem %s2, 192
      %v351 = vld [vmem:[%s350] sm:$0xff]
      %v352 = vld [vmem:[%s350 + $0x8] sm:$0xff]
      %v353 = vld [vmem:[%s350 + $0x10] sm:$0xff]
      %v354 = vld [vmem:[%s350 + $0x18] sm:$0xff]
      %v355 = vld [vmem:[%s350 + $0x20] sm:$0xff]
      %v356 = vld [vmem:[%s350 + $0x28] sm:$0xff]
      %v357 = vld [vmem:[%s350 + $0x30] sm:$0xff]
      %v358 = vld [vmem:[%s350 + $0x38] sm:$0xff]
      %v359 = vld [vmem:[%s350 + $0x40] sm:$0xff]
      %v360 = vld [vmem:[%s350 + $0x48] sm:$0xff]
      %v361 = vld [vmem:[%s350 + $0x50] sm:$0xff]
      %v362 = vld [vmem:[%s350 + $0x58] sm:$0xff]
      %v363 = vld [vmem:[%s350 + $0x60] sm:$0xff]
      %v364 = vld [vmem:[%s350 + $0x68] sm:$0xff]
      %v365 = vld [vmem:[%s350 + $0x70] sm:$0xff]
      %v366 = vld [vmem:[%s350 + $0x78] sm:$0xff]
      %v367 = vld [vmem:[%s350 + $0x80] sm:$0xff]
      %v368 = vld [vmem:[%s350 + $0x88] sm:$0xff]
      %v369 = vld [vmem:[%s350 + $0x90] sm:$0xff]
      %v370 = vld [vmem:[%s350 + $0x98] sm:$0xff]
      %v371 = vld [vmem:[%s350 + $0xa0] sm:$0xff]
      %v372 = vld [vmem:[%s350 + $0xa8] sm:$0xff]
      %v373 = vld [vmem:[%s350 + $0xb0] sm:$0xff]
      %v374 = vld [vmem:[%s350 + $0xb8] sm:$0xff]
      %v375 = vld [vmem:[%s313 + $0x1] sm:$0xff]
      %v376 = vld [vmem:[%s313 + $0x9] sm:$0x3f]
      %vm377 = vcmask 785408
      %v379 = vsel %vm377, %v348, 0
      %v382 = vsel %vm377, %v349, 0
      %384 = vmatprep.subr.mxu0 0.0
      %385 = vmatpush1.msra.mxu0 0.0
      %386 = vmatprep.subr.mxu0 0.0
      %387 = vmatpush1.msra.mxu0 0.0
      %388 = vmatprep.subr.mxu0 0.0
      %389 = vmatpush1.msra.mxu0 0.0
      %390 = vmatprep.subr.mxu0 0.0
      %391 = vmatpush1.msra.mxu0 0.0
      %392 = vmatprep.subr.mxu0 %v374
      %393 = vmatpush1.msra.mxu0 %v373
      %394 = vmatprep.subr.mxu0 %v372
      %395 = vmatpush1.msra.mxu0 %v371
      %396 = vmatprep.subr.mxu0 %v370
      %397 = vmatpush1.msra.mxu0 %v369
      %398 = vmatprep.subr.mxu0 %v368
      %399 = vmatpush1.msra.mxu0 %v367
      %400 = vmatprep.subr.mxu0 %v366
      %401 = vmatpush1.msra.mxu0 %v365
      %402 = vmatprep.subr.mxu0 %v364
      %403 = vmatpush1.msra.mxu0 %v363
      %404 = vmatprep.subr.mxu0 %v362
      %405 = vmatpush1.msra.mxu0 %v361
      %406 = vmatprep.subr.mxu0 %v360
      %407 = vmatpush1.msra.mxu0 %v359
      %408 = vmatprep.subr.mxu0 %v358
      %409 = vmatpush1.msra.mxu0 %v357
      %410 = vmatprep.subr.mxu0 %v356
      %411 = vmatpush1.msra.mxu0 %v355
      %412 = vmatprep.subr.mxu0 %v354
      %413 = vmatpush1.msra.mxu0 %v353
      %414 = vmatprep.subr.mxu0 %v352
      %415 = vmatpush1.msra.mxu0 %v351
      %416 = vmatprep.subr.mxu0 0.0
      %417 = vmatpush2.msra.mxu0 0.0
      %418 = vmatprep.subr.mxu0 0.0
      %419 = vmatpush2.msra.mxu0 0.0
      %420 = vmatprep.subr.mxu0 0.0
      %421 = vmatpush2.msra.mxu0 0.0
      %422 = vmatprep.subr.mxu0 0.0
      %423 = vmatpush2.msra.mxu0 0.0
      %424 = vmatprep.subr.mxu0 0.0
      %425 = vmatpush2.msra.mxu0 0.0
      %426 = vmatprep.subr.mxu0 0.0
      %427 = vmatpush2.msra.mxu0 0.0
      %428 = vmatprep.subr.mxu0 0.0
      %429 = vmatpush2.msra.mxu0 0.0
      %430 = vmatprep.subr.mxu0 0.0
      %431 = vmatpush2.msra.mxu0 0.0
      %432 = vmatprep.subr.mxu0 0.0
      %433 = vmatpush2.msra.mxu0 0.0
      %434 = vmatprep.subr.mxu0 0.0
      %435 = vmatpush2.msra.mxu0 0.0
      %436 = vmatprep.subr.mxu0 0.0
      %437 = vmatpush2.msra.mxu0 0.0
      %438 = vmatprep.subr.mxu0 0.0
      %439 = vmatpush2.msra.mxu0 0.0
      %440 = vmatprep.subr.mxu0 0.0
      %441 = vmatpush2.msra.mxu0 0.0
      %442 = vmatprep.subr.mxu0 0.0
      %443 = vmatpush2.msra.mxu0 0.0
      %444 = vmatprep.subr.mxu0 0.0
      %445 = vmatpush2.msra.mxu0 0.0
      %446 = vmatprep.subr.mxu0 0.0
      %447 = vmatpush2.msra.mxu0 0.0
      %448 = vmatprep.mubr.f32.mxu0 0.0
      %449 = vmatmul.mubr.f32.gmra.mxu0 %v379
      %v450 = vpop.f32.mrf.mxu0
      %v451 = vadd.f32 0.0, %v450
      %v452 = vpop.f32.mrf.mxu0
      %v453 = vadd.f32 0.0, %v452
      %454 = vmatprep.mubr.f32.mxu0 0.0
      %455 = vmatmul.mubr.f32.gmra.mxu0 %v382
      %v456 = vpop.f32.mrf.mxu0
      %v457 = vadd.f32 0.0, %v456
      %v458 = vpop.f32.mrf.mxu0
      %v459 = vadd.f32 0.0, %v458
      %460 = vdwg.mxu0
      %v462 = vsel %vm377, %v346, 0
      %v465 = vsel %vm377, %v347, 0
      %467 = vmatprep.subr.mxu0 0.0
      %468 = vmatpush1.msra.mxu0 0.0
      %469 = vmatprep.subr.mxu0 0.0
      %470 = vmatpush1.msra.mxu0 0.0
      %471 = vmatprep.subr.mxu0 0.0
      %472 = vmatpush1.msra.mxu0 0.0
      %473 = vmatprep.subr.mxu0 0.0
      %474 = vmatpush1.msra.mxu0 0.0
      %475 = vmatprep.subr.mxu0 %v345
      %476 = vmatpush1.msra.mxu0 %v344
      %477 = vmatprep.subr.mxu0 %v343
      %478 = vmatpush1.msra.mxu0 %v342
      %479 = vmatprep.subr.mxu0 %v341
      %480 = vmatpush1.msra.mxu0 %v340
      %481 = vmatprep.subr.mxu0 %v339
      %482 = vmatpush1.msra.mxu0 %v338
      %483 = vmatprep.subr.mxu0 %v337
      %484 = vmatpush1.msra.mxu0 %v336
      %485 = vmatprep.subr.mxu0 %v335
      %486 = vmatpush1.msra.mxu0 %v334
      %487 = vmatprep.subr.mxu0 %v333
      %488 = vmatpush1.msra.mxu0 %v332
      %489 = vmatprep.subr.mxu0 %v331
      %490 = vmatpush1.msra.mxu0 %v330
      %491 = vmatprep.subr.mxu0 %v329
      %492 = vmatpush1.msra.mxu0 %v328
      %493 = vmatprep.subr.mxu0 %v327
      %494 = vmatpush1.msra.mxu0 %v326
      %495 = vmatprep.subr.mxu0 %v325
      %496 = vmatpush1.msra.mxu0 %v324
      %497 = vmatprep.subr.mxu0 %v323
      %498 = vmatpush1.msra.mxu0 %v322
      %499 = vmatprep.subr.mxu0 0.0
      %500 = vmatpush2.msra.mxu0 0.0
      %501 = vmatprep.subr.mxu0 0.0
      %502 = vmatpush2.msra.mxu0 0.0
      %503 = vmatprep.subr.mxu0 0.0
      %504 = vmatpush2.msra.mxu0 0.0
      %505 = vmatprep.subr.mxu0 0.0
      %506 = vmatpush2.msra.mxu0 0.0
      %507 = vmatprep.subr.mxu0 0.0
      %508 = vmatpush2.msra.mxu0 0.0
      %509 = vmatprep.subr.mxu0 0.0
      %510 = vmatpush2.msra.mxu0 0.0
      %511 = vmatprep.subr.mxu0 0.0
      %512 = vmatpush2.msra.mxu0 0.0
      %513 = vmatprep.subr.mxu0 0.0
      %514 = vmatpush2.msra.mxu0 0.0
      %515 = vmatprep.subr.mxu0 0.0
      %516 = vmatpush2.msra.mxu0 0.0
      %517 = vmatprep.subr.mxu0 0.0
      %518 = vmatpush2.msra.mxu0 0.0
      %519 = vmatprep.subr.mxu0 0.0
      %520 = vmatpush2.msra.mxu0 0.0
      %521 = vmatprep.subr.mxu0 0.0
      %522 = vmatpush2.msra.mxu0 0.0
      %523 = vmatprep.subr.mxu0 0.0
      %524 = vmatpush2.msra.mxu0 0.0
      %525 = vmatprep.subr.mxu0 0.0
      %526 = vmatpush2.msra.mxu0 0.0
      %527 = vmatprep.subr.mxu0 0.0
      %528 = vmatpush2.msra.mxu0 0.0
      %529 = vmatprep.subr.mxu0 0.0
      %530 = vmatpush2.msra.mxu0 0.0
      %531 = vmatprep.mubr.f32.mxu0 0.0
      %532 = vmatmul.mubr.f32.gmra.mxu0 %v462
      %v533 = vpop.f32.mrf.mxu0
      %v534 = vadd.f32 %v451, %v533
      %v535 = vpop.f32.mrf.mxu0
      %v536 = vadd.f32 %v453, %v535
      %537 = vmatprep.mubr.f32.mxu0 0.0
      %538 = vmatmul.mubr.f32.gmra.mxu0 %v465
      %v539 = vpop.f32.mrf.mxu0
      %v540 = vadd.f32 %v457, %v539
      %v541 = vpop.f32.mrf.mxu0
      %v542 = vadd.f32 %v459, %v541
      %543 = vdwg.mxu0
      %v545 = vsel %vm377, %v375, 0
      %v548 = vsel %vm377, %v376, 0
      %550 = vmatprep.subr.mxu0 0.0
      %551 = vmatpush1.msra.mxu0 0.0
      %552 = vmatprep.subr.mxu0 0.0
      %553 = vmatpush1.msra.mxu0 0.0
      %554 = vmatprep.subr.mxu0 0.0
      %555 = vmatpush1.msra.mxu0 0.0
      %556 = vmatprep.subr.mxu0 0.0
      %557 = vmatpush1.msra.mxu0 0.0
      %558 = vmatprep.subr.mxu0 %v374
      %559 = vmatpush1.msra.mxu0 %v373
      %560 = vmatprep.subr.mxu0 %v372
      %561 = vmatpush1.msra.mxu0 %v371
      %562 = vmatprep.subr.mxu0 %v370
      %563 = vmatpush1.msra.mxu0 %v369
      %564 = vmatprep.subr.mxu0 %v368
      %565 = vmatpush1.msra.mxu0 %v367
      %566 = vmatprep.subr.mxu0 %v366
      %567 = vmatpush1.msra.mxu0 %v365
      %568 = vmatprep.subr.mxu0 %v364
      %569 = vmatpush1.msra.mxu0 %v363
      %570 = vmatprep.subr.mxu0 %v362
      %571 = vmatpush1.msra.mxu0 %v361
      %572 = vmatprep.subr.mxu0 %v360
      %573 = vmatpush1.msra.mxu0 %v359
      %574 = vmatprep.subr.mxu0 %v358
      %575 = vmatpush1.msra.mxu0 %v357
      %576 = vmatprep.subr.mxu0 %v356
      %577 = vmatpush1.msra.mxu0 %v355
      %578 = vmatprep.subr.mxu0 %v354
      %579 = vmatpush1.msra.mxu0 %v353
      %580 = vmatprep.subr.mxu0 %v352
      %581 = vmatpush1.msra.mxu0 %v351
      %582 = vmatprep.subr.mxu0 0.0
      %583 = vmatpush2.msra.mxu0 0.0
      %584 = vmatprep.subr.mxu0 0.0
      %585 = vmatpush2.msra.mxu0 0.0
      %586 = vmatprep.subr.mxu0 0.0
      %587 = vmatpush2.msra.mxu0 0.0
      %588 = vmatprep.subr.mxu0 0.0
      %589 = vmatpush2.msra.mxu0 0.0
      %590 = vmatprep.subr.mxu0 0.0
      %591 = vmatpush2.msra.mxu0 0.0
      %592 = vmatprep.subr.mxu0 0.0
      %593 = vmatpush2.msra.mxu0 0.0
      %594 = vmatprep.subr.mxu0 0.0
      %595 = vmatpush2.msra.mxu0 0.0
      %596 = vmatprep.subr.mxu0 0.0
      %597 = vmatpush2.msra.mxu0 0.0
      %598 = vmatprep.subr.mxu0 0.0
      %599 = vmatpush2.msra.mxu0 0.0
      %600 = vmatprep.subr.mxu0 0.0
      %601 = vmatpush2.msra.mxu0 0.0
      %602 = vmatprep.subr.mxu0 0.0
      %603 = vmatpush2.msra.mxu0 0.0
      %604 = vmatprep.subr.mxu0 0.0
      %605 = vmatpush2.msra.mxu0 0.0
      %606 = vmatprep.subr.mxu0 0.0
      %607 = vmatpush2.msra.mxu0 0.0
      %608 = vmatprep.subr.mxu0 0.0
      %609 = vmatpush2.msra.mxu0 0.0
      %610 = vmatprep.subr.mxu0 0.0
      %611 = vmatpush2.msra.mxu0 0.0
      %612 = vmatprep.subr.mxu0 0.0
      %613 = vmatpush2.msra.mxu0 0.0
      %614 = vmatprep.mubr.f32.mxu0 0.0
      %615 = vmatmul.mubr.f32.gmra.mxu0 %v545
      %v616 = vpop.f32.mrf.mxu0
      %v617 = vadd.f32 0.0, %v616
      %v618 = vpop.f32.mrf.mxu0
      %v619 = vadd.f32 0.0, %v618
      %620 = vmatprep.mubr.f32.mxu0 0.0
      %621 = vmatmul.mubr.f32.gmra.mxu0 %v548
      %v622 = vpop.f32.mrf.mxu0
      %v623 = vadd.f32 0.0, %v622
      %v624 = vpop.f32.mrf.mxu0
      %v625 = vadd.f32 0.0, %v624
      %626 = vdwg.mxu0
      %627 = vmatprep.subr.mxu0 0.0
      %628 = vmatpush1.msra.mxu0 0.0
      %629 = vmatprep.subr.mxu0 0.0
      %630 = vmatpush1.msra.mxu0 0.0
      %631 = vmatprep.subr.mxu0 0.0
      %632 = vmatpush1.msra.mxu0 0.0
      %633 = vmatprep.subr.mxu0 0.0
      %634 = vmatpush1.msra.mxu0 0.0
      %635 = vmatprep.subr.mxu0 %v345
      %636 = vmatpush1.msra.mxu0 %v344
      %637 = vmatprep.subr.mxu0 %v343
      %638 = vmatpush1.msra.mxu0 %v342
      %639 = vmatprep.subr.mxu0 %v341
      %640 = vmatpush1.msra.mxu0 %v340
      %641 = vmatprep.subr.mxu0 %v339
      %642 = vmatpush1.msra.mxu0 %v338
      %643 = vmatprep.subr.mxu0 %v337
      %644 = vmatpush1.msra.mxu0 %v336
      %645 = vmatprep.subr.mxu0 %v335
      %646 = vmatpush1.msra.mxu0 %v334
      %647 = vmatprep.subr.mxu0 %v333
      %648 = vmatpush1.msra.mxu0 %v332
      %649 = vmatprep.subr.mxu0 %v331
      %650 = vmatpush1.msra.mxu0 %v330
      %651 = vmatprep.subr.mxu0 %v329
      %652 = vmatpush1.msra.mxu0 %v328
      %653 = vmatprep.subr.mxu0 %v327
      %654 = vmatpush1.msra.mxu0 %v326
      %655 = vmatprep.subr.mxu0 %v325
      %656 = vmatpush1.msra.mxu0 %v324
      %657 = vmatprep.subr.mxu0 %v323
      %658 = vmatpush1.msra.mxu0 %v322
      %659 = vmatprep.subr.mxu0 0.0
      %660 = vmatpush2.msra.mxu0 0.0
      %661 = vmatprep.subr.mxu0 0.0
      %662 = vmatpush2.msra.mxu0 0.0
      %663 = vmatprep.subr.mxu0 0.0
      %664 = vmatpush2.msra.mxu0 0.0
      %665 = vmatprep.subr.mxu0 0.0
      %666 = vmatpush2.msra.mxu0 0.0
      %667 = vmatprep.subr.mxu0 0.0
      %668 = vmatpush2.msra.mxu0 0.0
      %669 = vmatprep.subr.mxu0 0.0
      %670 = vmatpush2.msra.mxu0 0.0
      %671 = vmatprep.subr.mxu0 0.0
      %672 = vmatpush2.msra.mxu0 0.0
      %673 = vmatprep.subr.mxu0 0.0
      %674 = vmatpush2.msra.mxu0 0.0
      %675 = vmatprep.subr.mxu0 0.0
      %676 = vmatpush2.msra.mxu0 0.0
      %677 = vmatprep.subr.mxu0 0.0
      %678 = vmatpush2.msra.mxu0 0.0
      %679 = vmatprep.subr.mxu0 0.0
      %680 = vmatpush2.msra.mxu0 0.0
      %681 = vmatprep.subr.mxu0 0.0
      %682 = vmatpush2.msra.mxu0 0.0
      %683 = vmatprep.subr.mxu0 0.0
      %684 = vmatpush2.msra.mxu0 0.0
      %685 = vmatprep.subr.mxu0 0.0
      %686 = vmatpush2.msra.mxu0 0.0
      %687 = vmatprep.subr.mxu0 0.0
      %688 = vmatpush2.msra.mxu0 0.0
      %689 = vmatprep.subr.mxu0 0.0
      %690 = vmatpush2.msra.mxu0 0.0
      %691 = vmatprep.mubr.f32.mxu0 0.0
      %692 = vmatmul.mubr.f32.gmra.mxu0 %v379
      %v693 = vpop.f32.mrf.mxu0
      %v694 = vadd.f32 %v617, %v693
      %v695 = vpop.f32.mrf.mxu0
      %v696 = vadd.f32 %v619, %v695
      %697 = vmatprep.mubr.f32.mxu0 0.0
      %698 = vmatmul.mubr.f32.gmra.mxu0 %v382
      %v699 = vpop.f32.mrf.mxu0
      %v700 = vadd.f32 %v623, %v699
      %v701 = vpop.f32.mrf.mxu0
      %v702 = vadd.f32 %v625, %v701
      %703 = vdwg.mxu0
      %s704 = scalar_lea.vmem %s2, 384
      %v705 = vld [vmem:[%s704] sm:$0xff]
      %v706 = vld [vmem:[%s704 + $0x8] sm:$0xff]
      %v707 = vld [vmem:[%s704 + $0x10] sm:$0xff]
      %v708 = vld [vmem:[%s704 + $0x18] sm:$0xff]
      %v709 = vld [vmem:[%s704 + $0x20] sm:$0xff]
      %v710 = vld [vmem:[%s704 + $0x28] sm:$0xff]
      %v711 = vld [vmem:[%s704 + $0x30] sm:$0xff]
      %v712 = vld [vmem:[%s704 + $0x38] sm:$0xff]
      %v713 = vld [vmem:[%s704 + $0x40] sm:$0xff]
      %v714 = vld [vmem:[%s704 + $0x48] sm:$0xff]
      %v715 = vld [vmem:[%s704 + $0x50] sm:$0xff]
      %v716 = vld [vmem:[%s704 + $0x58] sm:$0xff]
      %v717 = vld [vmem:[%s704 + $0x60] sm:$0xff]
      %v718 = vld [vmem:[%s704 + $0x68] sm:$0xff]
      %v719 = vld [vmem:[%s704 + $0x70] sm:$0xff]
      %v720 = vld [vmem:[%s704 + $0x78] sm:$0xff]
      %v721 = vld [vmem:[%s704 + $0x80] sm:$0xff]
      %v722 = vld [vmem:[%s704 + $0x88] sm:$0xff]
      %v723 = vld [vmem:[%s704 + $0x90] sm:$0xff]
      %v724 = vld [vmem:[%s704 + $0x98] sm:$0xff]
      %v725 = vld [vmem:[%s704 + $0xa0] sm:$0xff]
      %v726 = vld [vmem:[%s704 + $0xa8] sm:$0xff]
      %v727 = vld [vmem:[%s704 + $0xb0] sm:$0xff]
      %v728 = vld [vmem:[%s704 + $0xb8] sm:$0xff]
      %v729 = vld [vmem:[%s318 + $0x1] sm:$0xff]
      %v730 = vld [vmem:[%s318 + $0x9] sm:$0x3f]
      %731 = vmatprep.subr.mxu0 0.0
      %732 = vmatpush1.msra.mxu0 0.0
      %733 = vmatprep.subr.mxu0 0.0
      %734 = vmatpush1.msra.mxu0 0.0
      %735 = vmatprep.subr.mxu0 0.0
      %736 = vmatpush1.msra.mxu0 0.0
      %737 = vmatprep.subr.mxu0 0.0
      %738 = vmatpush1.msra.mxu0 0.0
      %739 = vmatprep.subr.mxu0 %v728
      %740 = vmatpush1.msra.mxu0 %v727
      %741 = vmatprep.subr.mxu0 %v726
      %742 = vmatpush1.msra.mxu0 %v725
      %743 = vmatprep.subr.mxu0 %v724
      %744 = vmatpush1.msra.mxu0 %v723
      %745 = vmatprep.subr.mxu0 %v722
      %746 = vmatpush1.msra.mxu0 %v721
      %747 = vmatprep.subr.mxu0 %v720
      %748 = vmatpush1.msra.mxu0 %v719
      %749 = vmatprep.subr.mxu0 %v718
      %750 = vmatpush1.msra.mxu0 %v717
      %751 = vmatprep.subr.mxu0 %v716
      %752 = vmatpush1.msra.mxu0 %v715
      %753 = vmatprep.subr.mxu0 %v714
      %754 = vmatpush1.msra.mxu0 %v713
      %755 = vmatprep.subr.mxu0 %v712
      %756 = vmatpush1.msra.mxu0 %v711
      %757 = vmatprep.subr.mxu0 %v710
      %758 = vmatpush1.msra.mxu0 %v709
      %759 = vmatprep.subr.mxu0 %v708
      %760 = vmatpush1.msra.mxu0 %v707
      %761 = vmatprep.subr.mxu0 %v706
      %762 = vmatpush1.msra.mxu0 %v705
      %763 = vmatprep.subr.mxu0 0.0
      %764 = vmatpush2.msra.mxu0 0.0
      %765 = vmatprep.subr.mxu0 0.0
      %766 = vmatpush2.msra.mxu0 0.0
      %767 = vmatprep.subr.mxu0 0.0
      %768 = vmatpush2.msra.mxu0 0.0
      %769 = vmatprep.subr.mxu0 0.0
      %770 = vmatpush2.msra.mxu0 0.0
      %771 = vmatprep.subr.mxu0 0.0
      %772 = vmatpush2.msra.mxu0 0.0
      %773 = vmatprep.subr.mxu0 0.0
      %774 = vmatpush2.msra.mxu0 0.0
      %775 = vmatprep.subr.mxu0 0.0
      %776 = vmatpush2.msra.mxu0 0.0
      %777 = vmatprep.subr.mxu0 0.0
      %778 = vmatpush2.msra.mxu0 0.0
      %779 = vmatprep.subr.mxu0 0.0
      %780 = vmatpush2.msra.mxu0 0.0
      %781 = vmatprep.subr.mxu0 0.0
      %782 = vmatpush2.msra.mxu0 0.0
      %783 = vmatprep.subr.mxu0 0.0
      %784 = vmatpush2.msra.mxu0 0.0
      %785 = vmatprep.subr.mxu0 0.0
      %786 = vmatpush2.msra.mxu0 0.0
      %787 = vmatprep.subr.mxu0 0.0
      %788 = vmatpush2.msra.mxu0 0.0
      %789 = vmatprep.subr.mxu0 0.0
      %790 = vmatpush2.msra.mxu0 0.0
      %791 = vmatprep.subr.mxu0 0.0
      %792 = vmatpush2.msra.mxu0 0.0
      %793 = vmatprep.subr.mxu0 0.0
      %794 = vmatpush2.msra.mxu0 0.0
      %795 = vmatprep.mubr.f32.mxu0 0.0
      %796 = vmatmul.mubr.f32.gmra.mxu0 %v545
      %v797 = vpop.f32.mrf.mxu0
      %v798 = vadd.f32 0.0, %v797
      %v799 = vpop.f32.mrf.mxu0
      %v800 = vadd.f32 0.0, %v799
      %801 = vmatprep.mubr.f32.mxu0 0.0
      %802 = vmatmul.mubr.f32.gmra.mxu0 %v548
      %v803 = vpop.f32.mrf.mxu0
      %v804 = vadd.f32 0.0, %v803
      %v805 = vpop.f32.mrf.mxu0
      %v806 = vadd.f32 0.0, %v805
      %807 = vdwg.mxu0
      %v808 = vadd.f32 %v534, %v798
      %v809 = vadd.f32 %v536, %v800
      %v810 = vadd.f32 %v540, %v804
      %v811 = vadd.f32 %v542, %v806
      %v813 = vsel %vm377, %v729, 0
      %v816 = vsel %vm377, %v730, 0
      %818 = vmatprep.subr.mxu0 0.0
      %819 = vmatpush1.msra.mxu0 0.0
      %820 = vmatprep.subr.mxu0 0.0
      %821 = vmatpush1.msra.mxu0 0.0
      %822 = vmatprep.subr.mxu0 0.0
      %823 = vmatpush1.msra.mxu0 0.0
      %824 = vmatprep.subr.mxu0 0.0
      %825 = vmatpush1.msra.mxu0 0.0
      %826 = vmatprep.subr.mxu0 %v728
      %827 = vmatpush1.msra.mxu0 %v727
      %828 = vmatprep.subr.mxu0 %v726
      %829 = vmatpush1.msra.mxu0 %v725
      %830 = vmatprep.subr.mxu0 %v724
      %831 = vmatpush1.msra.mxu0 %v723
      %832 = vmatprep.subr.mxu0 %v722
      %833 = vmatpush1.msra.mxu0 %v721
      %834 = vmatprep.subr.mxu0 %v720
      %835 = vmatpush1.msra.mxu0 %v719
      %836 = vmatprep.subr.mxu0 %v718
      %837 = vmatpush1.msra.mxu0 %v717
      %838 = vmatprep.subr.mxu0 %v716
      %839 = vmatpush1.msra.mxu0 %v715
      %840 = vmatprep.subr.mxu0 %v714
      %841 = vmatpush1.msra.mxu0 %v713
      %842 = vmatprep.subr.mxu0 %v712
      %843 = vmatpush1.msra.mxu0 %v711
      %844 = vmatprep.subr.mxu0 %v710
      %845 = vmatpush1.msra.mxu0 %v709
      %846 = vmatprep.subr.mxu0 %v708
      %847 = vmatpush1.msra.mxu0 %v707
      %848 = vmatprep.subr.mxu0 %v706
      %849 = vmatpush1.msra.mxu0 %v705
      %850 = vmatprep.subr.mxu0 0.0
      %851 = vmatpush2.msra.mxu0 0.0
      %852 = vmatprep.subr.mxu0 0.0
      %853 = vmatpush2.msra.mxu0 0.0
      %854 = vmatprep.subr.mxu0 0.0
      %855 = vmatpush2.msra.mxu0 0.0
      %856 = vmatprep.subr.mxu0 0.0
      %857 = vmatpush2.msra.mxu0 0.0
      %858 = vmatprep.subr.mxu0 0.0
      %859 = vmatpush2.msra.mxu0 0.0
      %860 = vmatprep.subr.mxu0 0.0
      %861 = vmatpush2.msra.mxu0 0.0
      %862 = vmatprep.subr.mxu0 0.0
      %863 = vmatpush2.msra.mxu0 0.0
      %864 = vmatprep.subr.mxu0 0.0
      %865 = vmatpush2.msra.mxu0 0.0
      %866 = vmatprep.subr.mxu0 0.0
      %867 = vmatpush2.msra.mxu0 0.0
      %868 = vmatprep.subr.mxu0 0.0
      %869 = vmatpush2.msra.mxu0 0.0
      %870 = vmatprep.subr.mxu0 0.0
      %871 = vmatpush2.msra.mxu0 0.0
      %872 = vmatprep.subr.mxu0 0.0
      %873 = vmatpush2.msra.mxu0 0.0
      %874 = vmatprep.subr.mxu0 0.0
      %875 = vmatpush2.msra.mxu0 0.0
      %876 = vmatprep.subr.mxu0 0.0
      %877 = vmatpush2.msra.mxu0 0.0
      %878 = vmatprep.subr.mxu0 0.0
      %879 = vmatpush2.msra.mxu0 0.0
      %880 = vmatprep.subr.mxu0 0.0
      %881 = vmatpush2.msra.mxu0 0.0
      %882 = vmatprep.mubr.f32.mxu0 0.0
      %883 = vmatmul.mubr.f32.gmra.mxu0 %v813
      %v884 = vpop.f32.mrf.mxu0
      %v885 = vadd.f32 0.0, %v884
      %v886 = vpop.f32.mrf.mxu0
      %v887 = vadd.f32 0.0, %v886
      %888 = vmatprep.mubr.f32.mxu0 0.0
      %889 = vmatmul.mubr.f32.gmra.mxu0 %v816
      %v890 = vpop.f32.mrf.mxu0
      %v891 = vadd.f32 0.0, %v890
      %v892 = vpop.f32.mrf.mxu0
      %v893 = vadd.f32 0.0, %v892
      %894 = vdwg.mxu0
      %v895 = vadd.f32 %v694, %v885
      %v896 = vadd.f32 %v696, %v887
      %v897 = vadd.f32 %v700, %v891
      %v898 = vadd.f32 %v702, %v893
      %s899 = scalar_lea.vmem %s2, 576
      %v900 = vld [vmem:[%s899] sm:$0xff]
      %v901 = vld [vmem:[%s899 + $0x8] sm:$0xff]
      %v902 = vld [vmem:[%s899 + $0x10] sm:$0xff]
      %v903 = vld [vmem:[%s899 + $0x18] sm:$0xff]
      %v904 = vld [vmem:[%s899 + $0x20] sm:$0xff]
      %v905 = vld [vmem:[%s899 + $0x28] sm:$0xff]
      %v906 = vld [vmem:[%s899 + $0x30] sm:$0xff]
      %v907 = vld [vmem:[%s899 + $0x38] sm:$0xff]
      %v908 = vld [vmem:[%s899 + $0x40] sm:$0xff]
      %v909 = vld [vmem:[%s899 + $0x48] sm:$0xff]
      %v910 = vld [vmem:[%s899 + $0x50] sm:$0xff]
      %v911 = vld [vmem:[%s899 + $0x58] sm:$0xff]
      %v912 = vld [vmem:[%s899 + $0x60] sm:$0xff]
      %v913 = vld [vmem:[%s899 + $0x68] sm:$0xff]
      %v914 = vld [vmem:[%s899 + $0x70] sm:$0xff]
      %v915 = vld [vmem:[%s899 + $0x78] sm:$0xff]
      %v916 = vld [vmem:[%s899 + $0x80] sm:$0xff]
      %v917 = vld [vmem:[%s899 + $0x88] sm:$0xff]
      %v918 = vld [vmem:[%s899 + $0x90] sm:$0xff]
      %v919 = vld [vmem:[%s899 + $0x98] sm:$0xff]
      %v920 = vld [vmem:[%s899 + $0xa0] sm:$0xff]
      %v921 = vld [vmem:[%s899 + $0xa8] sm:$0xff]
      %v922 = vld [vmem:[%s899 + $0xb0] sm:$0xff]
      %v923 = vld [vmem:[%s899 + $0xb8] sm:$0xff]
      %v924 = vld [vmem:[%s313 + $0x2] sm:$0xff]
      %v925 = vld [vmem:[%s313 + $0xa] sm:$0x3f]
      %926 = vmatprep.subr.mxu0 0.0
      %927 = vmatpush1.msra.mxu0 0.0
      %928 = vmatprep.subr.mxu0 0.0
      %929 = vmatpush1.msra.mxu0 0.0
      %930 = vmatprep.subr.mxu0 0.0
      %931 = vmatpush1.msra.mxu0 0.0
      %932 = vmatprep.subr.mxu0 0.0
      %933 = vmatpush1.msra.mxu0 0.0
      %934 = vmatprep.subr.mxu0 %v923
      %935 = vmatpush1.msra.mxu0 %v922
      %936 = vmatprep.subr.mxu0 %v921
      %937 = vmatpush1.msra.mxu0 %v920
      %938 = vmatprep.subr.mxu0 %v919
      %939 = vmatpush1.msra.mxu0 %v918
      %940 = vmatprep.subr.mxu0 %v917
      %941 = vmatpush1.msra.mxu0 %v916
      %942 = vmatprep.subr.mxu0 %v915
      %943 = vmatpush1.msra.mxu0 %v914
      %944 = vmatprep.subr.mxu0 %v913
      %945 = vmatpush1.msra.mxu0 %v912
      %946 = vmatprep.subr.mxu0 %v911
      %947 = vmatpush1.msra.mxu0 %v910
      %948 = vmatprep.subr.mxu0 %v909
      %949 = vmatpush1.msra.mxu0 %v908
      %950 = vmatprep.subr.mxu0 %v907
      %951 = vmatpush1.msra.mxu0 %v906
      %952 = vmatprep.subr.mxu0 %v905
      %953 = vmatpush1.msra.mxu0 %v904
      %954 = vmatprep.subr.mxu0 %v903
      %955 = vmatpush1.msra.mxu0 %v902
      %956 = vmatprep.subr.mxu0 %v901
      %957 = vmatpush1.msra.mxu0 %v900
      %958 = vmatprep.subr.mxu0 0.0
      %959 = vmatpush2.msra.mxu0 0.0
      %960 = vmatprep.subr.mxu0 0.0
      %961 = vmatpush2.msra.mxu0 0.0
      %962 = vmatprep.subr.mxu0 0.0
      %963 = vmatpush2.msra.mxu0 0.0
      %964 = vmatprep.subr.mxu0 0.0
      %965 = vmatpush2.msra.mxu0 0.0
      %966 = vmatprep.subr.mxu0 0.0
      %967 = vmatpush2.msra.mxu0 0.0
      %968 = vmatprep.subr.mxu0 0.0
      %969 = vmatpush2.msra.mxu0 0.0
      %970 = vmatprep.subr.mxu0 0.0
      %971 = vmatpush2.msra.mxu0 0.0
      %972 = vmatprep.subr.mxu0 0.0
      %973 = vmatpush2.msra.mxu0 0.0
      %974 = vmatprep.subr.mxu0 0.0
      %975 = vmatpush2.msra.mxu0 0.0
      %976 = vmatprep.subr.mxu0 0.0
      %977 = vmatpush2.msra.mxu0 0.0
      %978 = vmatprep.subr.mxu0 0.0
      %979 = vmatpush2.msra.mxu0 0.0
      %980 = vmatprep.subr.mxu0 0.0
      %981 = vmatpush2.msra.mxu0 0.0
      %982 = vmatprep.subr.mxu0 0.0
      %983 = vmatpush2.msra.mxu0 0.0
      %984 = vmatprep.subr.mxu0 0.0
      %985 = vmatpush2.msra.mxu0 0.0
      %986 = vmatprep.subr.mxu0 0.0
      %987 = vmatpush2.msra.mxu0 0.0
      %988 = vmatprep.subr.mxu0 0.0
      %989 = vmatpush2.msra.mxu0 0.0
      %990 = vmatprep.mubr.f32.mxu0 0.0
      %991 = vmatmul.mubr.f32.gmra.mxu0 %v813
      %v992 = vpop.f32.mrf.mxu0
      %v993 = vadd.f32 0.0, %v992
      %v994 = vpop.f32.mrf.mxu0
      %v995 = vadd.f32 0.0, %v994
      %996 = vmatprep.mubr.f32.mxu0 0.0
      %997 = vmatmul.mubr.f32.gmra.mxu0 %v816
      %v998 = vpop.f32.mrf.mxu0
      %v999 = vadd.f32 0.0, %v998
      %v1000 = vpop.f32.mrf.mxu0
      %v1001 = vadd.f32 0.0, %v1000
      %1002 = vdwg.mxu0
      %v1003 = vadd.f32 %v808, %v993
      %v1004 = vadd.f32 %v809, %v995
      %v1005 = vadd.f32 %v810, %v999
      %v1006 = vadd.f32 %v811, %v1001
      %v1008 = vsel %vm377, %v924, 0
      %v1011 = vsel %vm377, %v925, 0
      %1013 = vmatprep.subr.mxu0 0.0
      %1014 = vmatpush1.msra.mxu0 0.0
      %1015 = vmatprep.subr.mxu0 0.0
      %1016 = vmatpush1.msra.mxu0 0.0
      %1017 = vmatprep.subr.mxu0 0.0
      %1018 = vmatpush1.msra.mxu0 0.0
      %1019 = vmatprep.subr.mxu0 0.0
      %1020 = vmatpush1.msra.mxu0 0.0
      %1021 = vmatprep.subr.mxu0 %v923
      %1022 = vmatpush1.msra.mxu0 %v922
      %1023 = vmatprep.subr.mxu0 %v921
      %1024 = vmatpush1.msra.mxu0 %v920
      %1025 = vmatprep.subr.mxu0 %v919
      %1026 = vmatpush1.msra.mxu0 %v918
      %1027 = vmatprep.subr.mxu0 %v917
      %1028 = vmatpush1.msra.mxu0 %v916
      %1029 = vmatprep.subr.mxu0 %v915
      %1030 = vmatpush1.msra.mxu0 %v914
      %1031 = vmatprep.subr.mxu0 %v913
      %1032 = vmatpush1.msra.mxu0 %v912
      %1033 = vmatprep.subr.mxu0 %v911
      %1034 = vmatpush1.msra.mxu0 %v910
      %1035 = vmatprep.subr.mxu0 %v909
      %1036 = vmatpush1.msra.mxu0 %v908
      %1037 = vmatprep.subr.mxu0 %v907
      %1038 = vmatpush1.msra.mxu0 %v906
      %1039 = vmatprep.subr.mxu0 %v905
      %1040 = vmatpush1.msra.mxu0 %v904
      %1041 = vmatprep.subr.mxu0 %v903
      %1042 = vmatpush1.msra.mxu0 %v902
      %1043 = vmatprep.subr.mxu0 %v901
      %1044 = vmatpush1.msra.mxu0 %v900
      %1045 = vmatprep.subr.mxu0 0.0
      %1046 = vmatpush2.msra.mxu0 0.0
      %1047 = vmatprep.subr.mxu0 0.0
      %1048 = vmatpush2.msra.mxu0 0.0
      %1049 = vmatprep.subr.mxu0 0.0
      %1050 = vmatpush2.msra.mxu0 0.0
      %1051 = vmatprep.subr.mxu0 0.0
      %1052 = vmatpush2.msra.mxu0 0.0
      %1053 = vmatprep.subr.mxu0 0.0
      %1054 = vmatpush2.msra.mxu0 0.0
      %1055 = vmatprep.subr.mxu0 0.0
      %1056 = vmatpush2.msra.mxu0 0.0
      %1057 = vmatprep.subr.mxu0 0.0
      %1058 = vmatpush2.msra.mxu0 0.0
      %1059 = vmatprep.subr.mxu0 0.0
      %1060 = vmatpush2.msra.mxu0 0.0
      %1061 = vmatprep.subr.mxu0 0.0
      %1062 = vmatpush2.msra.mxu0 0.0
      %1063 = vmatprep.subr.mxu0 0.0
      %1064 = vmatpush2.msra.mxu0 0.0
      %1065 = vmatprep.subr.mxu0 0.0
      %1066 = vmatpush2.msra.mxu0 0.0
      %1067 = vmatprep.subr.mxu0 0.0
      %1068 = vmatpush2.msra.mxu0 0.0
      %1069 = vmatprep.subr.mxu0 0.0
      %1070 = vmatpush2.msra.mxu0 0.0
      %1071 = vmatprep.subr.mxu0 0.0
      %1072 = vmatpush2.msra.mxu0 0.0
      %1073 = vmatprep.subr.mxu0 0.0
      %1074 = vmatpush2.msra.mxu0 0.0
      %1075 = vmatprep.subr.mxu0 0.0
      %1076 = vmatpush2.msra.mxu0 0.0
      %1077 = vmatprep.mubr.f32.mxu0 0.0
      %1078 = vmatmul.mubr.f32.gmra.mxu0 %v1008
      %v1079 = vpop.f32.mrf.mxu0
      %v1080 = vadd.f32 0.0, %v1079
      %v1081 = vpop.f32.mrf.mxu0
      %v1082 = vadd.f32 0.0, %v1081
      %1083 = vmatprep.mubr.f32.mxu0 0.0
      %1084 = vmatmul.mubr.f32.gmra.mxu0 %v1011
      %v1085 = vpop.f32.mrf.mxu0
      %v1086 = vadd.f32 0.0, %v1085
      %v1087 = vpop.f32.mrf.mxu0
      %v1088 = vadd.f32 0.0, %v1087
      %1089 = vdwg.mxu0
      %v1090 = vadd.f32 %v895, %v1080
      %v1091 = vadd.f32 %v896, %v1082
      %v1092 = vadd.f32 %v897, %v1086
      %v1093 = vadd.f32 %v898, %v1088
      %s1094 = scalar_lea.vmem %s2, 768
      %v1095 = vld [vmem:[%s1094] sm:$0xff]
      %v1096 = vld [vmem:[%s1094 + $0x8] sm:$0xff]
      %v1097 = vld [vmem:[%s1094 + $0x10] sm:$0xff]
      %v1098 = vld [vmem:[%s1094 + $0x18] sm:$0xff]
      %v1099 = vld [vmem:[%s1094 + $0x20] sm:$0xff]
      %v1100 = vld [vmem:[%s1094 + $0x28] sm:$0xff]
      %v1101 = vld [vmem:[%s1094 + $0x30] sm:$0xff]
      %v1102 = vld [vmem:[%s1094 + $0x38] sm:$0xff]
      %v1103 = vld [vmem:[%s1094 + $0x40] sm:$0xff]
      %v1104 = vld [vmem:[%s1094 + $0x48] sm:$0xff]
      %v1105 = vld [vmem:[%s1094 + $0x50] sm:$0xff]
      %v1106 = vld [vmem:[%s1094 + $0x58] sm:$0xff]
      %v1107 = vld [vmem:[%s1094 + $0x60] sm:$0xff]
      %v1108 = vld [vmem:[%s1094 + $0x68] sm:$0xff]
      %v1109 = vld [vmem:[%s1094 + $0x70] sm:$0xff]
      %v1110 = vld [vmem:[%s1094 + $0x78] sm:$0xff]
      %v1111 = vld [vmem:[%s1094 + $0x80] sm:$0xff]
      %v1112 = vld [vmem:[%s1094 + $0x88] sm:$0xff]
      %v1113 = vld [vmem:[%s1094 + $0x90] sm:$0xff]
      %v1114 = vld [vmem:[%s1094 + $0x98] sm:$0xff]
      %v1115 = vld [vmem:[%s1094 + $0xa0] sm:$0xff]
      %v1116 = vld [vmem:[%s1094 + $0xa8] sm:$0xff]
      %v1117 = vld [vmem:[%s1094 + $0xb0] sm:$0xff]
      %v1118 = vld [vmem:[%s1094 + $0xb8] sm:$0xff]
      %v1119 = vld [vmem:[%s318 + $0x2] sm:$0xff]
      %v1120 = vld [vmem:[%s318 + $0xa] sm:$0x3f]
      %1121 = vmatprep.subr.mxu0 0.0
      %1122 = vmatpush1.msra.mxu0 0.0
      %1123 = vmatprep.subr.mxu0 0.0
      %1124 = vmatpush1.msra.mxu0 0.0
      %1125 = vmatprep.subr.mxu0 0.0
      %1126 = vmatpush1.msra.mxu0 0.0
      %1127 = vmatprep.subr.mxu0 0.0
      %1128 = vmatpush1.msra.mxu0 0.0
      %1129 = vmatprep.subr.mxu0 %v1118
      %1130 = vmatpush1.msra.mxu0 %v1117
      %1131 = vmatprep.subr.mxu0 %v1116
      %1132 = vmatpush1.msra.mxu0 %v1115
      %1133 = vmatprep.subr.mxu0 %v1114
      %1134 = vmatpush1.msra.mxu0 %v1113
      %1135 = vmatprep.subr.mxu0 %v1112
      %1136 = vmatpush1.msra.mxu0 %v1111
      %1137 = vmatprep.subr.mxu0 %v1110
      %1138 = vmatpush1.msra.mxu0 %v1109
      %1139 = vmatprep.subr.mxu0 %v1108
      %1140 = vmatpush1.msra.mxu0 %v1107
      %1141 = vmatprep.subr.mxu0 %v1106
      %1142 = vmatpush1.msra.mxu0 %v1105
      %1143 = vmatprep.subr.mxu0 %v1104
      %1144 = vmatpush1.msra.mxu0 %v1103
      %1145 = vmatprep.subr.mxu0 %v1102
      %1146 = vmatpush1.msra.mxu0 %v1101
      %1147 = vmatprep.subr.mxu0 %v1100
      %1148 = vmatpush1.msra.mxu0 %v1099
      %1149 = vmatprep.subr.mxu0 %v1098
      %1150 = vmatpush1.msra.mxu0 %v1097
      %1151 = vmatprep.subr.mxu0 %v1096
      %1152 = vmatpush1.msra.mxu0 %v1095
      %1153 = vmatprep.subr.mxu0 0.0
      %1154 = vmatpush2.msra.mxu0 0.0
      %1155 = vmatprep.subr.mxu0 0.0
      %1156 = vmatpush2.msra.mxu0 0.0
      %1157 = vmatprep.subr.mxu0 0.0
      %1158 = vmatpush2.msra.mxu0 0.0
      %1159 = vmatprep.subr.mxu0 0.0
      %1160 = vmatpush2.msra.mxu0 0.0
      %1161 = vmatprep.subr.mxu0 0.0
      %1162 = vmatpush2.msra.mxu0 0.0
      %1163 = vmatprep.subr.mxu0 0.0
      %1164 = vmatpush2.msra.mxu0 0.0
      %1165 = vmatprep.subr.mxu0 0.0
      %1166 = vmatpush2.msra.mxu0 0.0
      %1167 = vmatprep.subr.mxu0 0.0
      %1168 = vmatpush2.msra.mxu0 0.0
      %1169 = vmatprep.subr.mxu0 0.0
      %1170 = vmatpush2.msra.mxu0 0.0
      %1171 = vmatprep.subr.mxu0 0.0
      %1172 = vmatpush2.msra.mxu0 0.0
      %1173 = vmatprep.subr.mxu0 0.0
      %1174 = vmatpush2.msra.mxu0 0.0
      %1175 = vmatprep.subr.mxu0 0.0
      %1176 = vmatpush2.msra.mxu0 0.0
      %1177 = vmatprep.subr.mxu0 0.0
      %1178 = vmatpush2.msra.mxu0 0.0
      %1179 = vmatprep.subr.mxu0 0.0
      %1180 = vmatpush2.msra.mxu0 0.0
      %1181 = vmatprep.subr.mxu0 0.0
      %1182 = vmatpush2.msra.mxu0 0.0
      %1183 = vmatprep.subr.mxu0 0.0
      %1184 = vmatpush2.msra.mxu0 0.0
      %1185 = vmatprep.mubr.f32.mxu0 0.0
      %1186 = vmatmul.mubr.f32.gmra.mxu0 %v1008
      %v1187 = vpop.f32.mrf.mxu0
      %v1188 = vadd.f32 0.0, %v1187
      %v1189 = vpop.f32.mrf.mxu0
      %v1190 = vadd.f32 0.0, %v1189
      %1191 = vmatprep.mubr.f32.mxu0 0.0
      %1192 = vmatmul.mubr.f32.gmra.mxu0 %v1011
      %v1193 = vpop.f32.mrf.mxu0
      %v1194 = vadd.f32 0.0, %v1193
      %v1195 = vpop.f32.mrf.mxu0
      %v1196 = vadd.f32 0.0, %v1195
      %1197 = vdwg.mxu0
      %v1198 = vadd.f32 %v1003, %v1188
      %v1199 = vadd.f32 %v1004, %v1190
      %v1200 = vadd.f32 %v1005, %v1194
      %v1201 = vadd.f32 %v1006, %v1196
      %v1203 = vsel %vm377, %v1119, 0
      %v1206 = vsel %vm377, %v1120, 0
      %1208 = vmatprep.subr.mxu0 0.0
      %1209 = vmatpush1.msra.mxu0 0.0
      %1210 = vmatprep.subr.mxu0 0.0
      %1211 = vmatpush1.msra.mxu0 0.0
      %1212 = vmatprep.subr.mxu0 0.0
      %1213 = vmatpush1.msra.mxu0 0.0
      %1214 = vmatprep.subr.mxu0 0.0
      %1215 = vmatpush1.msra.mxu0 0.0
      %1216 = vmatprep.subr.mxu0 %v1118
      %1217 = vmatpush1.msra.mxu0 %v1117
      %1218 = vmatprep.subr.mxu0 %v1116
      %1219 = vmatpush1.msra.mxu0 %v1115
      %1220 = vmatprep.subr.mxu0 %v1114
      %1221 = vmatpush1.msra.mxu0 %v1113
      %1222 = vmatprep.subr.mxu0 %v1112
      %1223 = vmatpush1.msra.mxu0 %v1111
      %1224 = vmatprep.subr.mxu0 %v1110
      %1225 = vmatpush1.msra.mxu0 %v1109
      %1226 = vmatprep.subr.mxu0 %v1108
      %1227 = vmatpush1.msra.mxu0 %v1107
      %1228 = vmatprep.subr.mxu0 %v1106
      %1229 = vmatpush1.msra.mxu0 %v1105
      %1230 = vmatprep.subr.mxu0 %v1104
      %1231 = vmatpush1.msra.mxu0 %v1103
      %1232 = vmatprep.subr.mxu0 %v1102
      %1233 = vmatpush1.msra.mxu0 %v1101
      %1234 = vmatprep.subr.mxu0 %v1100
      %1235 = vmatpush1.msra.mxu0 %v1099
      %1236 = vmatprep.subr.mxu0 %v1098
      %1237 = vmatpush1.msra.mxu0 %v1097
      %1238 = vmatprep.subr.mxu0 %v1096
      %1239 = vmatpush1.msra.mxu0 %v1095
      %1240 = vmatprep.subr.mxu0 0.0
      %1241 = vmatpush2.msra.mxu0 0.0
      %1242 = vmatprep.subr.mxu0 0.0
      %1243 = vmatpush2.msra.mxu0 0.0
      %1244 = vmatprep.subr.mxu0 0.0
      %1245 = vmatpush2.msra.mxu0 0.0
      %1246 = vmatprep.subr.mxu0 0.0
      %1247 = vmatpush2.msra.mxu0 0.0
      %1248 = vmatprep.subr.mxu0 0.0
      %1249 = vmatpush2.msra.mxu0 0.0
      %1250 = vmatprep.subr.mxu0 0.0
      %1251 = vmatpush2.msra.mxu0 0.0
      %1252 = vmatprep.subr.mxu0 0.0
      %1253 = vmatpush2.msra.mxu0 0.0
      %1254 = vmatprep.subr.mxu0 0.0
      %1255 = vmatpush2.msra.mxu0 0.0
      %1256 = vmatprep.subr.mxu0 0.0
      %1257 = vmatpush2.msra.mxu0 0.0
      %1258 = vmatprep.subr.mxu0 0.0
      %1259 = vmatpush2.msra.mxu0 0.0
      %1260 = vmatprep.subr.mxu0 0.0
      %1261 = vmatpush2.msra.mxu0 0.0
      %1262 = vmatprep.subr.mxu0 0.0
      %1263 = vmatpush2.msra.mxu0 0.0
      %1264 = vmatprep.subr.mxu0 0.0
      %1265 = vmatpush2.msra.mxu0 0.0
      %1266 = vmatprep.subr.mxu0 0.0
      %1267 = vmatpush2.msra.mxu0 0.0
      %1268 = vmatprep.subr.mxu0 0.0
      %1269 = vmatpush2.msra.mxu0 0.0
      %1270 = vmatprep.subr.mxu0 0.0
      %1271 = vmatpush2.msra.mxu0 0.0
      %1272 = vmatprep.mubr.f32.mxu0 0.0
      %1273 = vmatmul.mubr.f32.gmra.mxu0 %v1203
      %v1274 = vpop.f32.mrf.mxu0
      %v1275 = vadd.f32 0.0, %v1274
      %v1276 = vpop.f32.mrf.mxu0
      %v1277 = vadd.f32 0.0, %v1276
      %1278 = vmatprep.mubr.f32.mxu0 0.0
      %1279 = vmatmul.mubr.f32.gmra.mxu0 %v1206
      %v1280 = vpop.f32.mrf.mxu0
      %v1281 = vadd.f32 0.0, %v1280
      %v1282 = vpop.f32.mrf.mxu0
      %v1283 = vadd.f32 0.0, %v1282
      %1284 = vdwg.mxu0
      %v1285 = vadd.f32 %v1090, %v1275
      %v1286 = vadd.f32 %v1091, %v1277
      %v1287 = vadd.f32 %v1092, %v1281
      %v1288 = vadd.f32 %v1093, %v1283
      %v1289 = vld [vmem:[%s3] sm:$0x3]
      %v1291 = vlaneseq
      %v1292 = vshrl.u32 %v1291, 7
      %v1293 = vsub.s32 0, %v1292
      %v1294 = vrot.slane %v1289, %v1293
      %v1295 = vlaneseq
      %v1296 = vshrl.u32 %v1295, 7
      %v1297 = vsub.s32 1, %v1296
      %v1298 = vrot.slane %v1289, %v1297
      %v1301 = vadd.f32 %v1198, %v1294
      %v1302 = vadd.f32 %v1199, %v1298
      %v1303 = vadd.f32 %v1200, %v1294
      %v1304 = vadd.f32 %v1201, %v1298
      %v1305 = vmax.f32 %v1301, 0.0
      %v1306 = vmax.f32 %v1302, 0.0
      %v1307 = vmax.f32 %v1303, 0.0
      %v1308 = vmax.f32 %v1304, 0.0
      %1309 = vst [vmem:[#allocation2] sm:$0xff] %v1305
      %vm1310 = vcmask 326656
      %1311 = vst.msk [vmem:[#allocation2 + $0x8] sm:$0xff] %vm1310, %v1306
      %1312 = vst [vmem:[#allocation2 + $0x10] sm:$0x3f] %v1307
      %vm1313 = vcmask 324608
      %1314 = vst.msk [vmem:[#allocation2 + $0x18] sm:$0x3f] %vm1313, %v1308
      %v1315 = vld [vmem:[%s3] sm:$0x3]
      %v1317 = vlaneseq
      %v1318 = vshrl.u32 %v1317, 7
      %v1319 = vsub.s32 0, %v1318
      %v1320 = vrot.slane %v1315, %v1319
      %v1321 = vlaneseq
      %v1322 = vshrl.u32 %v1321, 7
      %v1323 = vsub.s32 1, %v1322
      %v1324 = vrot.slane %v1315, %v1323
      %v1327 = vadd.f32 %v1285, %v1320
      %v1328 = vadd.f32 %v1286, %v1324
      %v1329 = vadd.f32 %v1287, %v1320
      %v1330 = vadd.f32 %v1288, %v1324
      %v1331 = vmax.f32 %v1327, 0.0
      %v1332 = vmax.f32 %v1328, 0.0
      %v1333 = vmax.f32 %v1329, 0.0
      %v1334 = vmax.f32 %v1330, 0.0
      %1335 = vst [vmem:[#allocation3] sm:$0xff] %v1331
      %1336 = vst.msk [vmem:[#allocation3 + $0x8] sm:$0xff] %vm1310, %v1332
      %1337 = vst [vmem:[#allocation3 + $0x10] sm:$0x3f] %v1333
      %1338 = vst.msk [vmem:[#allocation3 + $0x18] sm:$0x3f] %vm1313, %v1334
      %v1339 = vld [vmem:[#allocation2] sm:$0xff]
      %v1340 = vld [vmem:[#allocation2 + $0x8] sm:$0xff]
      %v1341 = vld [vmem:[#allocation2 + $0x10] sm:$0x3]
      %v1342 = vld [vmem:[#allocation2 + $0x18] sm:$0x3]
      %v1343 = vld [vmem:[#allocation3] sm:$0xff]
      %v1344 = vld [vmem:[#allocation3 + $0x8] sm:$0xff]
      %v1345 = vld [vmem:[#allocation3 + $0x10] sm:$0x3]
      %v1346 = vld [vmem:[#allocation3 + $0x18] sm:$0x3]
      %v1347 = vadd.f32 %v1339, %v1343
      %v1348 = vadd.f32 %v1340, %v1344
      %v1349 = vadd.f32 %v1341, %v1345
      %v1350 = vadd.f32 %v1342, %v1346
      %v1351 = vld [vmem:[%s4] sm:$0xff]
      %v1352 = vld [vmem:[%s4 + $0x8] sm:$0xff]
      %v1353 = vld [vmem:[%s4 + $0x10] sm:$0xff]
      %v1354 = vld [vmem:[%s4 + $0x18] sm:$0xff]
      %v1355 = vld [vmem:[%s4 + $0x20] sm:$0xff]
      %v1356 = vld [vmem:[%s4 + $0x28] sm:$0xff]
      %v1357 = vld [vmem:[%s4 + $0x30] sm:$0xff]
      %v1358 = vld [vmem:[%s4 + $0x38] sm:$0xff]
      %v1359 = vld [vmem:[%s4 + $0x40] sm:$0xff]
      %v1360 = vld [vmem:[%s4 + $0x48] sm:$0xff]
      %v1361 = vld [vmem:[%s4 + $0x50] sm:$0xff]
      %v1362 = vld [vmem:[%s4 + $0x58] sm:$0xff]
      %v1363 = vld [vmem:[%s4 + $0x60] sm:$0xff]
      %v1364 = vld [vmem:[%s4 + $0x68] sm:$0xff]
      %v1365 = vld [vmem:[%s4 + $0x70] sm:$0xff]
      %v1366 = vld [vmem:[%s4 + $0x78] sm:$0xff]
      %v1367 = vld [vmem:[%s4 + $0x80] sm:$0xff]
      %v1368 = vld [vmem:[%s4 + $0x88] sm:$0xff]
      %v1369 = vld [vmem:[%s4 + $0x90] sm:$0xff]
      %v1370 = vld [vmem:[%s4 + $0x98] sm:$0xff]
      %v1371 = vld [vmem:[%s4 + $0xa0] sm:$0xff]
      %v1372 = vld [vmem:[%s4 + $0xa8] sm:$0xff]
      %v1373 = vld [vmem:[%s4 + $0xb0] sm:$0xff]
      %v1374 = vld [vmem:[%s4 + $0xb8] sm:$0xff]
      %v1375 = vld [vmem:[%s4 + $0xc0] sm:$0xff]
      %v1376 = vld [vmem:[%s4 + $0xc8] sm:$0xff]
      %v1377 = vld [vmem:[%s4 + $0xd0] sm:$0xff]
      %v1378 = vld [vmem:[%s4 + $0xd8] sm:$0xff]
      %v1379 = vld [vmem:[%s4 + $0xe0] sm:$0xff]
      %v1380 = vld [vmem:[%s4 + $0xe8] sm:$0xff]
      %v1381 = vld [vmem:[%s4 + $0xf0] sm:$0xff]
      %v1382 = vld [vmem:[%s4 + $0xf8] sm:$0xff]
      %v1383 = vld [vmem:[%s4 + $0x100] sm:$0xff]
      %v1384 = vld [vmem:[%s4 + $0x108] sm:$0xff]
      %v1385 = vld [vmem:[%s4 + $0x110] sm:$0xff]
      %v1386 = vld [vmem:[%s4 + $0x118] sm:$0xff]
      %v1387 = vld [vmem:[%s4 + $0x120] sm:$0xff]
      %v1388 = vld [vmem:[%s4 + $0x128] sm:$0xff]
      %v1389 = vld [vmem:[%s4 + $0x130] sm:$0xff]
      %v1390 = vld [vmem:[%s4 + $0x138] sm:$0xff]
      %v1391 = vld [vmem:[%s4 + $0x140] sm:$0xff]
      %v1392 = vld [vmem:[%s4 + $0x148] sm:$0xff]
      %v1393 = vld [vmem:[#allocation2] sm:$0xfe]
      %v1394 = vld [vmem:[#allocation2 + $0x8] sm:$0xfe]
      %v1395 = vld [vmem:[#allocation2 + $0x10] sm:$0x7]
      %v1396 = vld [vmem:[#allocation2 + $0x18] sm:$0x7]
      %v1397 = vld [vmem:[#allocation3] sm:$0xfe]
      %v1398 = vld [vmem:[#allocation3 + $0x8] sm:$0xfe]
      %v1399 = vld [vmem:[#allocation3 + $0x10] sm:$0x7]
      %v1400 = vld [vmem:[#allocation3 + $0x18] sm:$0x7]
      %v1401 = vadd.f32 %v1393, %v1397
      %v1402 = vadd.f32 %v1394, %v1398
      %v1403 = vadd.f32 %v1395, %v1399
      %v1404 = vadd.f32 %v1396, %v1400
      %s1405 = scalar_lea.vmem %s4, 336
      %v1406 = vld [vmem:[%s1405] sm:$0xff]
      %v1407 = vld [vmem:[%s1405 + $0x8] sm:$0xff]
      %v1408 = vld [vmem:[%s1405 + $0x10] sm:$0xff]
      %v1409 = vld [vmem:[%s1405 + $0x18] sm:$0xff]
      %v1410 = vld [vmem:[%s1405 + $0x20] sm:$0xff]
      %v1411 = vld [vmem:[%s1405 + $0x28] sm:$0xff]
      %v1412 = vld [vmem:[%s1405 + $0x30] sm:$0xff]
      %v1413 = vld [vmem:[%s1405 + $0x38] sm:$0xff]
      %v1414 = vld [vmem:[%s1405 + $0x40] sm:$0xff]
      %v1415 = vld [vmem:[%s1405 + $0x48] sm:$0xff]
      %v1416 = vld [vmem:[%s1405 + $0x50] sm:$0xff]
      %v1417 = vld [vmem:[%s1405 + $0x58] sm:$0xff]
      %v1418 = vld [vmem:[%s1405 + $0x60] sm:$0xff]
      %v1419 = vld [vmem:[%s1405 + $0x68] sm:$0xff]
      %v1420 = vld [vmem:[%s1405 + $0x70] sm:$0xff]
      %v1421 = vld [vmem:[%s1405 + $0x78] sm:$0xff]
      %v1422 = vld [vmem:[%s1405 + $0x80] sm:$0xff]
      %v1423 = vld [vmem:[%s1405 + $0x88] sm:$0xff]
      %v1424 = vld [vmem:[%s1405 + $0x90] sm:$0xff]
      %v1425 = vld [vmem:[%s1405 + $0x98] sm:$0xff]
      %v1426 = vld [vmem:[%s1405 + $0xa0] sm:$0xff]
      %v1427 = vld [vmem:[%s1405 + $0xa8] sm:$0xff]
      %v1428 = vld [vmem:[%s1405 + $0xb0] sm:$0xff]
      %v1429 = vld [vmem:[%s1405 + $0xb8] sm:$0xff]
      %v1430 = vld [vmem:[%s1405 + $0xc0] sm:$0xff]
      %v1431 = vld [vmem:[%s1405 + $0xc8] sm:$0xff]
      %v1432 = vld [vmem:[%s1405 + $0xd0] sm:$0xff]
      %v1433 = vld [vmem:[%s1405 + $0xd8] sm:$0xff]
      %v1434 = vld [vmem:[%s1405 + $0xe0] sm:$0xff]
      %v1435 = vld [vmem:[%s1405 + $0xe8] sm:$0xff]
      %v1436 = vld [vmem:[%s1405 + $0xf0] sm:$0xff]
      %v1437 = vld [vmem:[%s1405 + $0xf8] sm:$0xff]
      %v1438 = vld [vmem:[%s1405 + $0x100] sm:$0xff]
      %v1439 = vld [vmem:[%s1405 + $0x108] sm:$0xff]
      %v1440 = vld [vmem:[%s1405 + $0x110] sm:$0xff]
      %v1441 = vld [vmem:[%s1405 + $0x118] sm:$0xff]
      %v1442 = vld [vmem:[%s1405 + $0x120] sm:$0xff]
      %v1443 = vld [vmem:[%s1405 + $0x128] sm:$0xff]
      %v1444 = vld [vmem:[%s1405 + $0x130] sm:$0xff]
      %v1445 = vld [vmem:[%s1405 + $0x138] sm:$0xff]
      %v1446 = vld [vmem:[%s1405 + $0x140] sm:$0xff]
      %v1447 = vld [vmem:[%s1405 + $0x148] sm:$0xff]
      %vm1452 = vcmask 1046528
      %v1453 = vrot.slane %v1401, 1
      %v1454 = vrot.slane %v1403, 1
      %v1455 = vsel %vm1452, %v1453, %v1454
      %v1456 = vrot.slane %v1402, 1
      %v1457 = vrot.slane %v1404, 1
      %v1458 = vsel %vm1452, %v1456, %v1457
      %v1461 = vsel %vm1310, %v1458, 0
      %v1463 = vsel %vm1310, %v1457, 0
      %1465 = vmatprep.subr.mxu0 %v1437
      %1466 = vmatpush1.msra.mxu0 %v1436
      %1467 = vmatprep.subr.mxu0 %v1435
      %1468 = vmatpush1.msra.mxu0 %v1434
      %1469 = vmatprep.subr.mxu0 %v1433
      %1470 = vmatpush1.msra.mxu0 %v1432
      %1471 = vmatprep.subr.mxu0 %v1431
      %1472 = vmatpush1.msra.mxu0 %v1430
      %1473 = vmatprep.subr.mxu0 %v1429
      %1474 = vmatpush1.msra.mxu0 %v1428
      %1475 = vmatprep.subr.mxu0 %v1427
      %1476 = vmatpush1.msra.mxu0 %v1426
      %1477 = vmatprep.subr.mxu0 %v1425
      %1478 = vmatpush1.msra.mxu0 %v1424
      %1479 = vmatprep.subr.mxu0 %v1423
      %1480 = vmatpush1.msra.mxu0 %v1422
      %1481 = vmatprep.subr.mxu0 %v1421
      %1482 = vmatpush1.msra.mxu0 %v1420
      %1483 = vmatprep.subr.mxu0 %v1419
      %1484 = vmatpush1.msra.mxu0 %v1418
      %1485 = vmatprep.subr.mxu0 %v1417
      %1486 = vmatpush1.msra.mxu0 %v1416
      %1487 = vmatprep.subr.mxu0 %v1415
      %1488 = vmatpush1.msra.mxu0 %v1414
      %1489 = vmatprep.subr.mxu0 %v1413
      %1490 = vmatpush1.msra.mxu0 %v1412
      %1491 = vmatprep.subr.mxu0 %v1411
      %1492 = vmatpush1.msra.mxu0 %v1410
      %1493 = vmatprep.subr.mxu0 %v1409
      %1494 = vmatpush1.msra.mxu0 %v1408
      %1495 = vmatprep.subr.mxu0 %v1407
      %1496 = vmatpush1.msra.mxu0 %v1406
      %1497 = vmatprep.subr.mxu0 0.0
      %1498 = vmatpush2.msra.mxu0 0.0
      %1499 = vmatprep.subr.mxu0 0.0
      %1500 = vmatpush2.msra.mxu0 0.0
      %1501 = vmatprep.subr.mxu0 0.0
      %1502 = vmatpush2.msra.mxu0 0.0
      %1503 = vmatprep.subr.mxu0 0.0
      %1504 = vmatpush2.msra.mxu0 0.0
      %1505 = vmatprep.subr.mxu0 0.0
      %1506 = vmatpush2.msra.mxu0 0.0
      %1507 = vmatprep.subr.mxu0 0.0
      %1508 = vmatpush2.msra.mxu0 0.0
      %1509 = vmatprep.subr.mxu0 0.0
      %1510 = vmatpush2.msra.mxu0 0.0
      %1511 = vmatprep.subr.mxu0 0.0
      %1512 = vmatpush2.msra.mxu0 0.0
      %1513 = vmatprep.subr.mxu0 0.0
      %1514 = vmatpush2.msra.mxu0 0.0
      %1515 = vmatprep.subr.mxu0 0.0
      %1516 = vmatpush2.msra.mxu0 0.0
      %1517 = vmatprep.subr.mxu0 0.0
      %1518 = vmatpush2.msra.mxu0 0.0
      %1519 = vmatprep.subr.mxu0 %v1447
      %1520 = vmatpush2.msra.mxu0 %v1446
      %1521 = vmatprep.subr.mxu0 %v1445
      %1522 = vmatpush2.msra.mxu0 %v1444
      %1523 = vmatprep.subr.mxu0 %v1443
      %1524 = vmatpush2.msra.mxu0 %v1442
      %1525 = vmatprep.subr.mxu0 %v1441
      %1526 = vmatpush2.msra.mxu0 %v1440
      %1527 = vmatprep.subr.mxu0 %v1439
      %1528 = vmatpush2.msra.mxu0 %v1438
      %1529 = vmatprep.mubr.f32.mxu0 %v1461
      %1530 = vmatmul.mubr.f32.gmra.mxu0 %v1455
      %v1531 = vpop.f32.mrf.mxu0
      %v1532 = vadd.f32 0.0, %v1531
      %v1533 = vpop.f32.mrf.mxu0
      %v1534 = vadd.f32 0.0, %v1533
      %1535 = vmatprep.mubr.f32.mxu0 %v1463
      %1536 = vmatmul.mubr.f32.gmra.mxu0 %v1454
      %v1537 = vpop.f32.mrf.mxu0
      %v1538 = vadd.f32 0.0, %v1537
      %v1539 = vpop.f32.mrf.mxu0
      %v1540 = vadd.f32 0.0, %v1539
      %1541 = vdwg.mxu0
      %v1543 = vsel %vm1310, %v1348, 0
      %v1546 = vsel %vm1310, %v1350, 0
      %1548 = vmatprep.subr.mxu0 %v1382
      %1549 = vmatpush1.msra.mxu0 %v1381
      %1550 = vmatprep.subr.mxu0 %v1380
      %1551 = vmatpush1.msra.mxu0 %v1379
      %1552 = vmatprep.subr.mxu0 %v1378
      %1553 = vmatpush1.msra.mxu0 %v1377
      %1554 = vmatprep.subr.mxu0 %v1376
      %1555 = vmatpush1.msra.mxu0 %v1375
      %1556 = vmatprep.subr.mxu0 %v1374
      %1557 = vmatpush1.msra.mxu0 %v1373
      %1558 = vmatprep.subr.mxu0 %v1372
      %1559 = vmatpush1.msra.mxu0 %v1371
      %1560 = vmatprep.subr.mxu0 %v1370
      %1561 = vmatpush1.msra.mxu0 %v1369
      %1562 = vmatprep.subr.mxu0 %v1368
      %1563 = vmatpush1.msra.mxu0 %v1367
      %1564 = vmatprep.subr.mxu0 %v1366
      %1565 = vmatpush1.msra.mxu0 %v1365
      %1566 = vmatprep.subr.mxu0 %v1364
      %1567 = vmatpush1.msra.mxu0 %v1363
      %1568 = vmatprep.subr.mxu0 %v1362
      %1569 = vmatpush1.msra.mxu0 %v1361
      %1570 = vmatprep.subr.mxu0 %v1360
      %1571 = vmatpush1.msra.mxu0 %v1359
      %1572 = vmatprep.subr.mxu0 %v1358
      %1573 = vmatpush1.msra.mxu0 %v1357
      %1574 = vmatprep.subr.mxu0 %v1356
      %1575 = vmatpush1.msra.mxu0 %v1355
      %1576 = vmatprep.subr.mxu0 %v1354
      %1577 = vmatpush1.msra.mxu0 %v1353
      %1578 = vmatprep.subr.mxu0 %v1352
      %1579 = vmatpush1.msra.mxu0 %v1351
      %1580 = vmatprep.subr.mxu0 0.0
      %1581 = vmatpush2.msra.mxu0 0.0
      %1582 = vmatprep.subr.mxu0 0.0
      %1583 = vmatpush2.msra.mxu0 0.0
      %1584 = vmatprep.subr.mxu0 0.0
      %1585 = vmatpush2.msra.mxu0 0.0
      %1586 = vmatprep.subr.mxu0 0.0
      %1587 = vmatpush2.msra.mxu0 0.0
      %1588 = vmatprep.subr.mxu0 0.0
      %1589 = vmatpush2.msra.mxu0 0.0
      %1590 = vmatprep.subr.mxu0 0.0
      %1591 = vmatpush2.msra.mxu0 0.0
      %1592 = vmatprep.subr.mxu0 0.0
      %1593 = vmatpush2.msra.mxu0 0.0
      %1594 = vmatprep.subr.mxu0 0.0
      %1595 = vmatpush2.msra.mxu0 0.0
      %1596 = vmatprep.subr.mxu0 0.0
      %1597 = vmatpush2.msra.mxu0 0.0
      %1598 = vmatprep.subr.mxu0 0.0
      %1599 = vmatpush2.msra.mxu0 0.0
      %1600 = vmatprep.subr.mxu0 0.0
      %1601 = vmatpush2.msra.mxu0 0.0
      %1602 = vmatprep.subr.mxu0 %v1392
      %1603 = vmatpush2.msra.mxu0 %v1391
      %1604 = vmatprep.subr.mxu0 %v1390
      %1605 = vmatpush2.msra.mxu0 %v1389
      %1606 = vmatprep.subr.mxu0 %v1388
      %1607 = vmatpush2.msra.mxu0 %v1387
      %1608 = vmatprep.subr.mxu0 %v1386
      %1609 = vmatpush2.msra.mxu0 %v1385
      %1610 = vmatprep.subr.mxu0 %v1384
      %1611 = vmatpush2.msra.mxu0 %v1383
      %1612 = vmatprep.mubr.f32.mxu0 %v1543
      %1613 = vmatmul.mubr.f32.gmra.mxu0 %v1347
      %v1614 = vpop.f32.mrf.mxu0
      %v1615 = vadd.f32 %v1532, %v1614
      %v1616 = vpop.f32.mrf.mxu0
      %v1617 = vadd.f32 %v1534, %v1616
      %1618 = vmatprep.mubr.f32.mxu0 %v1546
      %1619 = vmatmul.mubr.f32.gmra.mxu0 %v1349
      %v1620 = vpop.f32.mrf.mxu0
      %v1621 = vadd.f32 %v1538, %v1620
      %v1622 = vpop.f32.mrf.mxu0
      %v1623 = vadd.f32 %v1540, %v1622
      %1624 = vdwg.mxu0
      %v1625 = vld [vmem:[#allocation2] sm:$0xfc]
      %v1626 = vld [vmem:[#allocation2 + $0x8] sm:$0xfc]
      %v1627 = vld [vmem:[#allocation2 + $0x10] sm:$0xf]
      %v1628 = vld [vmem:[#allocation2 + $0x18] sm:$0xf]
      %v1629 = vld [vmem:[#allocation3] sm:$0xfc]
      %v1630 = vld [vmem:[#allocation3 + $0x8] sm:$0xfc]
      %v1631 = vld [vmem:[#allocation3 + $0x10] sm:$0xf]
      %v1632 = vld [vmem:[#allocation3 + $0x18] sm:$0xf]
      %v1633 = vadd.f32 %v1625, %v1629
      %v1634 = vadd.f32 %v1626, %v1630
      %v1635 = vadd.f32 %v1627, %v1631
      %v1636 = vadd.f32 %v1628, %v1632
      %s1637 = scalar_lea.vmem %s4, 672
      %v1638 = vld [vmem:[%s1637] sm:$0xff]
      %v1639 = vld [vmem:[%s1637 + $0x8] sm:$0xff]
      %v1640 = vld [vmem:[%s1637 + $0x10] sm:$0xff]
      %v1641 = vld [vmem:[%s1637 + $0x18] sm:$0xff]
      %v1642 = vld [vmem:[%s1637 + $0x20] sm:$0xff]
      %v1643 = vld [vmem:[%s1637 + $0x28] sm:$0xff]
      %v1644 = vld [vmem:[%s1637 + $0x30] sm:$0xff]
      %v1645 = vld [vmem:[%s1637 + $0x38] sm:$0xff]
      %v1646 = vld [vmem:[%s1637 + $0x40] sm:$0xff]
      %v1647 = vld [vmem:[%s1637 + $0x48] sm:$0xff]
      %v1648 = vld [vmem:[%s1637 + $0x50] sm:$0xff]
      %v1649 = vld [vmem:[%s1637 + $0x58] sm:$0xff]
      %v1650 = vld [vmem:[%s1637 + $0x60] sm:$0xff]
      %v1651 = vld [vmem:[%s1637 + $0x68] sm:$0xff]
      %v1652 = vld [vmem:[%s1637 + $0x70] sm:$0xff]
      %v1653 = vld [vmem:[%s1637 + $0x78] sm:$0xff]
      %v1654 = vld [vmem:[%s1637 + $0x80] sm:$0xff]
      %v1655 = vld [vmem:[%s1637 + $0x88] sm:$0xff]
      %v1656 = vld [vmem:[%s1637 + $0x90] sm:$0xff]
      %v1657 = vld [vmem:[%s1637 + $0x98] sm:$0xff]
      %v1658 = vld [vmem:[%s1637 + $0xa0] sm:$0xff]
      %v1659 = vld [vmem:[%s1637 + $0xa8] sm:$0xff]
      %v1660 = vld [vmem:[%s1637 + $0xb0] sm:$0xff]
      %v1661 = vld [vmem:[%s1637 + $0xb8] sm:$0xff]
      %v1662 = vld [vmem:[%s1637 + $0xc0] sm:$0xff]
      %v1663 = vld [vmem:[%s1637 + $0xc8] sm:$0xff]
      %v1664 = vld [vmem:[%s1637 + $0xd0] sm:$0xff]
      %v1665 = vld [vmem:[%s1637 + $0xd8] sm:$0xff]
      %v1666 = vld [vmem:[%s1637 + $0xe0] sm:$0xff]
      %v1667 = vld [vmem:[%s1637 + $0xe8] sm:$0xff]
      %v1668 = vld [vmem:[%s1637 + $0xf0] sm:$0xff]
      %v1669 = vld [vmem:[%s1637 + $0xf8] sm:$0xff]
      %v1670 = vld [vmem:[%s1637 + $0x100] sm:$0xff]
      %v1671 = vld [vmem:[%s1637 + $0x108] sm:$0xff]
      %v1672 = vld [vmem:[%s1637 + $0x110] sm:$0xff]
      %v1673 = vld [vmem:[%s1637 + $0x118] sm:$0xff]
      %v1674 = vld [vmem:[%s1637 + $0x120] sm:$0xff]
      %v1675 = vld [vmem:[%s1637 + $0x128] sm:$0xff]
      %v1676 = vld [vmem:[%s1637 + $0x130] sm:$0xff]
      %v1677 = vld [vmem:[%s1637 + $0x138] sm:$0xff]
      %v1678 = vld [vmem:[%s1637 + $0x140] sm:$0xff]
      %v1679 = vld [vmem:[%s1637 + $0x148] sm:$0xff]
      %vm1684 = vcmask 1045504
      %v1685 = vrot.slane %v1633, 2
      %v1686 = vrot.slane %v1635, 2
      %v1687 = vsel %vm1684, %v1685, %v1686
      %v1688 = vrot.slane %v1634, 2
      %v1689 = vrot.slane %v1636, 2
      %v1690 = vsel %vm1684, %v1688, %v1689
      %v1693 = vsel %vm1310, %v1690, 0
      %v1695 = vsel %vm1310, %v1689, 0
      %1697 = vmatprep.subr.mxu0 %v1669
      %1698 = vmatpush1.msra.mxu0 %v1668
      %1699 = vmatprep.subr.mxu0 %v1667
      %1700 = vmatpush1.msra.mxu0 %v1666
      %1701 = vmatprep.subr.mxu0 %v1665
      %1702 = vmatpush1.msra.mxu0 %v1664
      %1703 = vmatprep.subr.mxu0 %v1663
      %1704 = vmatpush1.msra.mxu0 %v1662
      %1705 = vmatprep.subr.mxu0 %v1661
      %1706 = vmatpush1.msra.mxu0 %v1660
      %1707 = vmatprep.subr.mxu0 %v1659
      %1708 = vmatpush1.msra.mxu0 %v1658
      %1709 = vmatprep.subr.mxu0 %v1657
      %1710 = vmatpush1.msra.mxu0 %v1656
      %1711 = vmatprep.subr.mxu0 %v1655
      %1712 = vmatpush1.msra.mxu0 %v1654
      %1713 = vmatprep.subr.mxu0 %v1653
      %1714 = vmatpush1.msra.mxu0 %v1652
      %1715 = vmatprep.subr.mxu0 %v1651
      %1716 = vmatpush1.msra.mxu0 %v1650
      %1717 = vmatprep.subr.mxu0 %v1649
      %1718 = vmatpush1.msra.mxu0 %v1648
      %1719 = vmatprep.subr.mxu0 %v1647
      %1720 = vmatpush1.msra.mxu0 %v1646
      %1721 = vmatprep.subr.mxu0 %v1645
      %1722 = vmatpush1.msra.mxu0 %v1644
      %1723 = vmatprep.subr.mxu0 %v1643
      %1724 = vmatpush1.msra.mxu0 %v1642
      %1725 = vmatprep.subr.mxu0 %v1641
      %1726 = vmatpush1.msra.mxu0 %v1640
      %1727 = vmatprep.subr.mxu0 %v1639
      %1728 = vmatpush1.msra.mxu0 %v1638
      %1729 = vmatprep.subr.mxu0 0.0
      %1730 = vmatpush2.msra.mxu0 0.0
      %1731 = vmatprep.subr.mxu0 0.0
      %1732 = vmatpush2.msra.mxu0 0.0
      %1733 = vmatprep.subr.mxu0 0.0
      %1734 = vmatpush2.msra.mxu0 0.0
      %1735 = vmatprep.subr.mxu0 0.0
      %1736 = vmatpush2.msra.mxu0 0.0
      %1737 = vmatprep.subr.mxu0 0.0
      %1738 = vmatpush2.msra.mxu0 0.0
      %1739 = vmatprep.subr.mxu0 0.0
      %1740 = vmatpush2.msra.mxu0 0.0
      %1741 = vmatprep.subr.mxu0 0.0
      %1742 = vmatpush2.msra.mxu0 0.0
      %1743 = vmatprep.subr.mxu0 0.0
      %1744 = vmatpush2.msra.mxu0 0.0
      %1745 = vmatprep.subr.mxu0 0.0
      %1746 = vmatpush2.msra.mxu0 0.0
      %1747 = vmatprep.subr.mxu0 0.0
      %1748 = vmatpush2.msra.mxu0 0.0
      %1749 = vmatprep.subr.mxu0 0.0
      %1750 = vmatpush2.msra.mxu0 0.0
      %1751 = vmatprep.subr.mxu0 %v1679
      %1752 = vmatpush2.msra.mxu0 %v1678
      %1753 = vmatprep.subr.mxu0 %v1677
      %1754 = vmatpush2.msra.mxu0 %v1676
      %1755 = vmatprep.subr.mxu0 %v1675
      %1756 = vmatpush2.msra.mxu0 %v1674
      %1757 = vmatprep.subr.mxu0 %v1673
      %1758 = vmatpush2.msra.mxu0 %v1672
      %1759 = vmatprep.subr.mxu0 %v1671
      %1760 = vmatpush2.msra.mxu0 %v1670
      %1761 = vmatprep.mubr.f32.mxu0 %v1693
      %1762 = vmatmul.mubr.f32.gmra.mxu0 %v1687
      %v1763 = vpop.f32.mrf.mxu0
      %v1764 = vadd.f32 0.0, %v1763
      %v1765 = vpop.f32.mrf.mxu0
      %v1766 = vadd.f32 0.0, %v1765
      %1767 = vmatprep.mubr.f32.mxu0 %v1695
      %1768 = vmatmul.mubr.f32.gmra.mxu0 %v1686
      %v1769 = vpop.f32.mrf.mxu0
      %v1770 = vadd.f32 0.0, %v1769
      %v1771 = vpop.f32.mrf.mxu0
      %v1772 = vadd.f32 0.0, %v1771
      %1773 = vdwg.mxu0
      %v1774 = vadd.f32 %v1615, %v1764
      %v1775 = vadd.f32 %v1617, %v1766
      %v1776 = vadd.f32 %v1621, %v1770
      %v1777 = vadd.f32 %v1623, %v1772
      %v1778 = vld [vmem:[#allocation2] sm:$0xf8]
      %v1779 = vld [vmem:[#allocation2 + $0x8] sm:$0xf8]
      %v1780 = vld [vmem:[#allocation2 + $0x10] sm:$0x1f]
      %v1781 = vld [vmem:[#allocation2 + $0x18] sm:$0x1f]
      %v1782 = vld [vmem:[#allocation3] sm:$0xf8]
      %v1783 = vld [vmem:[#allocation3 + $0x8] sm:$0xf8]
      %v1784 = vld [vmem:[#allocation3 + $0x10] sm:$0x1f]
      %v1785 = vld [vmem:[#allocation3 + $0x18] sm:$0x1f]
      %v1786 = vadd.f32 %v1778, %v1782
      %v1787 = vadd.f32 %v1779, %v1783
      %v1788 = vadd.f32 %v1780, %v1784
      %v1789 = vadd.f32 %v1781, %v1785
      %s1790 = scalar_lea.vmem %s4, 1008
      %v1791 = vld [vmem:[%s1790] sm:$0xff]
      %v1792 = vld [vmem:[%s1790 + $0x8] sm:$0xff]
      %v1793 = vld [vmem:[%s1790 + $0x10] sm:$0xff]
      %v1794 = vld [vmem:[%s1790 + $0x18] sm:$0xff]
      %v1795 = vld [vmem:[%s1790 + $0x20] sm:$0xff]
      %v1796 = vld [vmem:[%s1790 + $0x28] sm:$0xff]
      %v1797 = vld [vmem:[%s1790 + $0x30] sm:$0xff]
      %v1798 = vld [vmem:[%s1790 + $0x38] sm:$0xff]
      %v1799 = vld [vmem:[%s1790 + $0x40] sm:$0xff]
      %v1800 = vld [vmem:[%s1790 + $0x48] sm:$0xff]
      %v1801 = vld [vmem:[%s1790 + $0x50] sm:$0xff]
      %v1802 = vld [vmem:[%s1790 + $0x58] sm:$0xff]
      %v1803 = vld [vmem:[%s1790 + $0x60] sm:$0xff]
      %v1804 = vld [vmem:[%s1790 + $0x68] sm:$0xff]
      %v1805 = vld [vmem:[%s1790 + $0x70] sm:$0xff]
      %v1806 = vld [vmem:[%s1790 + $0x78] sm:$0xff]
      %v1807 = vld [vmem:[%s1790 + $0x80] sm:$0xff]
      %v1808 = vld [vmem:[%s1790 + $0x88] sm:$0xff]
      %v1809 = vld [vmem:[%s1790 + $0x90] sm:$0xff]
      %v1810 = vld [vmem:[%s1790 + $0x98] sm:$0xff]
      %v1811 = vld [vmem:[%s1790 + $0xa0] sm:$0xff]
      %v1812 = vld [vmem:[%s1790 + $0xa8] sm:$0xff]
      %v1813 = vld [vmem:[%s1790 + $0xb0] sm:$0xff]
      %v1814 = vld [vmem:[%s1790 + $0xb8] sm:$0xff]
      %v1815 = vld [vmem:[%s1790 + $0xc0] sm:$0xff]
      %v1816 = vld [vmem:[%s1790 + $0xc8] sm:$0xff]
      %v1817 = vld [vmem:[%s1790 + $0xd0] sm:$0xff]
      %v1818 = vld [vmem:[%s1790 + $0xd8] sm:$0xff]
      %v1819 = vld [vmem:[%s1790 + $0xe0] sm:$0xff]
      %v1820 = vld [vmem:[%s1790 + $0xe8] sm:$0xff]
      %v1821 = vld [vmem:[%s1790 + $0xf0] sm:$0xff]
      %v1822 = vld [vmem:[%s1790 + $0xf8] sm:$0xff]
      %v1823 = vld [vmem:[%s1790 + $0x100] sm:$0xff]
      %v1824 = vld [vmem:[%s1790 + $0x108] sm:$0xff]
      %v1825 = vld [vmem:[%s1790 + $0x110] sm:$0xff]
      %v1826 = vld [vmem:[%s1790 + $0x118] sm:$0xff]
      %v1827 = vld [vmem:[%s1790 + $0x120] sm:$0xff]
      %v1828 = vld [vmem:[%s1790 + $0x128] sm:$0xff]
      %v1829 = vld [vmem:[%s1790 + $0x130] sm:$0xff]
      %v1830 = vld [vmem:[%s1790 + $0x138] sm:$0xff]
      %v1831 = vld [vmem:[%s1790 + $0x140] sm:$0xff]
      %v1832 = vld [vmem:[%s1790 + $0x148] sm:$0xff]
      %vm1837 = vcmask 1044480
      %v1838 = vrot.slane %v1786, 3
      %v1839 = vrot.slane %v1788, 3
      %v1840 = vsel %vm1837, %v1838, %v1839
      %v1841 = vrot.slane %v1787, 3
      %v1842 = vrot.slane %v1789, 3
      %v1843 = vsel %vm1837, %v1841, %v1842
      %v1846 = vsel %vm1310, %v1843, 0
      %v1848 = vsel %vm1310, %v1842, 0
      %1850 = vmatprep.subr.mxu0 %v1822
      %1851 = vmatpush1.msra.mxu0 %v1821
      %1852 = vmatprep.subr.mxu0 %v1820
      %1853 = vmatpush1.msra.mxu0 %v1819
      %1854 = vmatprep.subr.mxu0 %v1818
      %1855 = vmatpush1.msra.mxu0 %v1817
      %1856 = vmatprep.subr.mxu0 %v1816
      %1857 = vmatpush1.msra.mxu0 %v1815
      %1858 = vmatprep.subr.mxu0 %v1814
      %1859 = vmatpush1.msra.mxu0 %v1813
      %1860 = vmatprep.subr.mxu0 %v1812
      %1861 = vmatpush1.msra.mxu0 %v1811
      %1862 = vmatprep.subr.mxu0 %v1810
      %1863 = vmatpush1.msra.mxu0 %v1809
      %1864 = vmatprep.subr.mxu0 %v1808
      %1865 = vmatpush1.msra.mxu0 %v1807
      %1866 = vmatprep.subr.mxu0 %v1806
      %1867 = vmatpush1.msra.mxu0 %v1805
      %1868 = vmatprep.subr.mxu0 %v1804
      %1869 = vmatpush1.msra.mxu0 %v1803
      %1870 = vmatprep.subr.mxu0 %v1802
      %1871 = vmatpush1.msra.mxu0 %v1801
      %1872 = vmatprep.subr.mxu0 %v1800
      %1873 = vmatpush1.msra.mxu0 %v1799
      %1874 = vmatprep.subr.mxu0 %v1798
      %1875 = vmatpush1.msra.mxu0 %v1797
      %1876 = vmatprep.subr.mxu0 %v1796
      %1877 = vmatpush1.msra.mxu0 %v1795
      %1878 = vmatprep.subr.mxu0 %v1794
      %1879 = vmatpush1.msra.mxu0 %v1793
      %1880 = vmatprep.subr.mxu0 %v1792
      %1881 = vmatpush1.msra.mxu0 %v1791
      %1882 = vmatprep.subr.mxu0 0.0
      %1883 = vmatpush2.msra.mxu0 0.0
      %1884 = vmatprep.subr.mxu0 0.0
      %1885 = vmatpush2.msra.mxu0 0.0
      %1886 = vmatprep.subr.mxu0 0.0
      %1887 = vmatpush2.msra.mxu0 0.0
      %1888 = vmatprep.subr.mxu0 0.0
      %1889 = vmatpush2.msra.mxu0 0.0
      %1890 = vmatprep.subr.mxu0 0.0
      %1891 = vmatpush2.msra.mxu0 0.0
      %1892 = vmatprep.subr.mxu0 0.0
      %1893 = vmatpush2.msra.mxu0 0.0
      %1894 = vmatprep.subr.mxu0 0.0
      %1895 = vmatpush2.msra.mxu0 0.0
      %1896 = vmatprep.subr.mxu0 0.0
      %1897 = vmatpush2.msra.mxu0 0.0
      %1898 = vmatprep.subr.mxu0 0.0
      %1899 = vmatpush2.msra.mxu0 0.0
      %1900 = vmatprep.subr.mxu0 0.0
      %1901 = vmatpush2.msra.mxu0 0.0
      %1902 = vmatprep.subr.mxu0 0.0
      %1903 = vmatpush2.msra.mxu0 0.0
      %1904 = vmatprep.subr.mxu0 %v1832
      %1905 = vmatpush2.msra.mxu0 %v1831
      %1906 = vmatprep.subr.mxu0 %v1830
      %1907 = vmatpush2.msra.mxu0 %v1829
      %1908 = vmatprep.subr.mxu0 %v1828
      %1909 = vmatpush2.msra.mxu0 %v1827
      %1910 = vmatprep.subr.mxu0 %v1826
      %1911 = vmatpush2.msra.mxu0 %v1825
      %1912 = vmatprep.subr.mxu0 %v1824
      %1913 = vmatpush2.msra.mxu0 %v1823
      %1914 = vmatprep.mubr.f32.mxu0 %v1846
      %1915 = vmatmul.mubr.f32.gmra.mxu0 %v1840
      %v1916 = vpop.f32.mrf.mxu0
      %v1917 = vadd.f32 0.0, %v1916
      %v1918 = vpop.f32.mrf.mxu0
      %v1919 = vadd.f32 0.0, %v1918
      %1920 = vmatprep.mubr.f32.mxu0 %v1848
      %1921 = vmatmul.mubr.f32.gmra.mxu0 %v1839
      %v1922 = vpop.f32.mrf.mxu0
      %v1923 = vadd.f32 0.0, %v1922
      %v1924 = vpop.f32.mrf.mxu0
      %v1925 = vadd.f32 0.0, %v1924
      %1926 = vdwg.mxu0
      %v1927 = vadd.f32 %v1774, %v1917
      %v1928 = vadd.f32 %v1775, %v1919
      %v1929 = vadd.f32 %v1776, %v1923
      %v1930 = vadd.f32 %v1777, %v1925
      %v1931 = vld [vmem:[#allocation2] sm:$0xf0]
      %v1932 = vld [vmem:[#allocation2 + $0x8] sm:$0xf0]
      %v1933 = vld [vmem:[#allocation2 + $0x10] sm:$0x3f]
      %v1934 = vld [vmem:[#allocation2 + $0x18] sm:$0x3f]
      %v1935 = vld [vmem:[#allocation3] sm:$0xf0]
      %v1936 = vld [vmem:[#allocation3 + $0x8] sm:$0xf0]
      %v1937 = vld [vmem:[#allocation3 + $0x10] sm:$0x3f]
      %v1938 = vld [vmem:[#allocation3 + $0x18] sm:$0x3f]
      %v1939 = vadd.f32 %v1931, %v1935
      %v1940 = vadd.f32 %v1932, %v1936
      %v1941 = vadd.f32 %v1933, %v1937
      %v1942 = vadd.f32 %v1934, %v1938
      %s1943 = scalar_lea.vmem %s4, 1344
      %v1944 = vld [vmem:[%s1943] sm:$0xff]
      %v1945 = vld [vmem:[%s1943 + $0x8] sm:$0xff]
      %v1946 = vld [vmem:[%s1943 + $0x10] sm:$0xff]
      %v1947 = vld [vmem:[%s1943 + $0x18] sm:$0xff]
      %v1948 = vld [vmem:[%s1943 + $0x20] sm:$0xff]
      %v1949 = vld [vmem:[%s1943 + $0x28] sm:$0xff]
      %v1950 = vld [vmem:[%s1943 + $0x30] sm:$0xff]
      %v1951 = vld [vmem:[%s1943 + $0x38] sm:$0xff]
      %v1952 = vld [vmem:[%s1943 + $0x40] sm:$0xff]
      %v1953 = vld [vmem:[%s1943 + $0x48] sm:$0xff]
      %v1954 = vld [vmem:[%s1943 + $0x50] sm:$0xff]
      %v1955 = vld [vmem:[%s1943 + $0x58] sm:$0xff]
      %v1956 = vld [vmem:[%s1943 + $0x60] sm:$0xff]
      %v1957 = vld [vmem:[%s1943 + $0x68] sm:$0xff]
      %v1958 = vld [vmem:[%s1943 + $0x70] sm:$0xff]
      %v1959 = vld [vmem:[%s1943 + $0x78] sm:$0xff]
      %v1960 = vld [vmem:[%s1943 + $0x80] sm:$0xff]
      %v1961 = vld [vmem:[%s1943 + $0x88] sm:$0xff]
      %v1962 = vld [vmem:[%s1943 + $0x90] sm:$0xff]
      %v1963 = vld [vmem:[%s1943 + $0x98] sm:$0xff]
      %v1964 = vld [vmem:[%s1943 + $0xa0] sm:$0xff]
      %v1965 = vld [vmem:[%s1943 + $0xa8] sm:$0xff]
      %v1966 = vld [vmem:[%s1943 + $0xb0] sm:$0xff]
      %v1967 = vld [vmem:[%s1943 + $0xb8] sm:$0xff]
      %v1968 = vld [vmem:[%s1943 + $0xc0] sm:$0xff]
      %v1969 = vld [vmem:[%s1943 + $0xc8] sm:$0xff]
      %v1970 = vld [vmem:[%s1943 + $0xd0] sm:$0xff]
      %v1971 = vld [vmem:[%s1943 + $0xd8] sm:$0xff]
      %v1972 = vld [vmem:[%s1943 + $0xe0] sm:$0xff]
      %v1973 = vld [vmem:[%s1943 + $0xe8] sm:$0xff]
      %v1974 = vld [vmem:[%s1943 + $0xf0] sm:$0xff]
      %v1975 = vld [vmem:[%s1943 + $0xf8] sm:$0xff]
      %v1976 = vld [vmem:[%s1943 + $0x100] sm:$0xff]
      %v1977 = vld [vmem:[%s1943 + $0x108] sm:$0xff]
      %v1978 = vld [vmem:[%s1943 + $0x110] sm:$0xff]
      %v1979 = vld [vmem:[%s1943 + $0x118] sm:$0xff]
      %v1980 = vld [vmem:[%s1943 + $0x120] sm:$0xff]
      %v1981 = vld [vmem:[%s1943 + $0x128] sm:$0xff]
      %v1982 = vld [vmem:[%s1943 + $0x130] sm:$0xff]
      %v1983 = vld [vmem:[%s1943 + $0x138] sm:$0xff]
      %v1984 = vld [vmem:[%s1943 + $0x140] sm:$0xff]
      %v1985 = vld [vmem:[%s1943 + $0x148] sm:$0xff]
      %vm1990 = vcmask 1043456
      %v1991 = vrot.slane %v1939, 4
      %v1992 = vrot.slane %v1941, 4
      %v1993 = vsel %vm1990, %v1991, %v1992
      %v1994 = vrot.slane %v1940, 4
      %v1995 = vrot.slane %v1942, 4
      %v1996 = vsel %vm1990, %v1994, %v1995
      %v1999 = vsel %vm1310, %v1996, 0
      %v2001 = vsel %vm1310, %v1995, 0
      %2003 = vmatprep.subr.mxu0 %v1975
      %2004 = vmatpush1.msra.mxu0 %v1974
      %2005 = vmatprep.subr.mxu0 %v1973
      %2006 = vmatpush1.msra.mxu0 %v1972
      %2007 = vmatprep.subr.mxu0 %v1971
      %2008 = vmatpush1.msra.mxu0 %v1970
      %2009 = vmatprep.subr.mxu0 %v1969
      %2010 = vmatpush1.msra.mxu0 %v1968
      %2011 = vmatprep.subr.mxu0 %v1967
      %2012 = vmatpush1.msra.mxu0 %v1966
      %2013 = vmatprep.subr.mxu0 %v1965
      %2014 = vmatpush1.msra.mxu0 %v1964
      %2015 = vmatprep.subr.mxu0 %v1963
      %2016 = vmatpush1.msra.mxu0 %v1962
      %2017 = vmatprep.subr.mxu0 %v1961
      %2018 = vmatpush1.msra.mxu0 %v1960
      %2019 = vmatprep.subr.mxu0 %v1959
      %2020 = vmatpush1.msra.mxu0 %v1958
      %2021 = vmatprep.subr.mxu0 %v1957
      %2022 = vmatpush1.msra.mxu0 %v1956
      %2023 = vmatprep.subr.mxu0 %v1955
      %2024 = vmatpush1.msra.mxu0 %v1954
      %2025 = vmatprep.subr.mxu0 %v1953
      %2026 = vmatpush1.msra.mxu0 %v1952
      %2027 = vmatprep.subr.mxu0 %v1951
      %2028 = vmatpush1.msra.mxu0 %v1950
      %2029 = vmatprep.subr.mxu0 %v1949
      %2030 = vmatpush1.msra.mxu0 %v1948
      %2031 = vmatprep.subr.mxu0 %v1947
      %2032 = vmatpush1.msra.mxu0 %v1946
      %2033 = vmatprep.subr.mxu0 %v1945
      %2034 = vmatpush1.msra.mxu0 %v1944
      %2035 = vmatprep.subr.mxu0 0.0
      %2036 = vmatpush2.msra.mxu0 0.0
      %2037 = vmatprep.subr.mxu0 0.0
      %2038 = vmatpush2.msra.mxu0 0.0
      %2039 = vmatprep.subr.mxu0 0.0
      %2040 = vmatpush2.msra.mxu0 0.0
      %2041 = vmatprep.subr.mxu0 0.0
      %2042 = vmatpush2.msra.mxu0 0.0
      %2043 = vmatprep.subr.mxu0 0.0
      %2044 = vmatpush2.msra.mxu0 0.0
      %2045 = vmatprep.subr.mxu0 0.0
      %2046 = vmatpush2.msra.mxu0 0.0
      %2047 = vmatprep.subr.mxu0 0.0
      %2048 = vmatpush2.msra.mxu0 0.0
      %2049 = vmatprep.subr.mxu0 0.0
      %2050 = vmatpush2.msra.mxu0 0.0
      %2051 = vmatprep.subr.mxu0 0.0
      %2052 = vmatpush2.msra.mxu0 0.0
      %2053 = vmatprep.subr.mxu0 0.0
      %2054 = vmatpush2.msra.mxu0 0.0
      %2055 = vmatprep.subr.mxu0 0.0
      %2056 = vmatpush2.msra.mxu0 0.0
      %2057 = vmatprep.subr.mxu0 %v1985
      %2058 = vmatpush2.msra.mxu0 %v1984
      %2059 = vmatprep.subr.mxu0 %v1983
      %2060 = vmatpush2.msra.mxu0 %v1982
      %2061 = vmatprep.subr.mxu0 %v1981
      %2062 = vmatpush2.msra.mxu0 %v1980
      %2063 = vmatprep.subr.mxu0 %v1979
      %2064 = vmatpush2.msra.mxu0 %v1978
      %2065 = vmatprep.subr.mxu0 %v1977
      %2066 = vmatpush2.msra.mxu0 %v1976
      %2067 = vmatprep.mubr.f32.mxu0 %v1999
      %2068 = vmatmul.mubr.f32.gmra.mxu0 %v1993
      %v2069 = vpop.f32.mrf.mxu0
      %v2070 = vadd.f32 0.0, %v2069
      %v2071 = vpop.f32.mrf.mxu0
      %v2072 = vadd.f32 0.0, %v2071
      %2073 = vmatprep.mubr.f32.mxu0 %v2001
      %2074 = vmatmul.mubr.f32.gmra.mxu0 %v1992
      %v2075 = vpop.f32.mrf.mxu0
      %v2076 = vadd.f32 0.0, %v2075
      %v2077 = vpop.f32.mrf.mxu0
      %v2078 = vadd.f32 0.0, %v2077
      %2079 = vdwg.mxu0
      %v2080 = vadd.f32 %v1927, %v2070
      %v2081 = vadd.f32 %v1928, %v2072
      %v2082 = vadd.f32 %v1929, %v2076
      %v2083 = vadd.f32 %v1930, %v2078
      %v2084 = vld [vmem:[%s5] sm:$0x3]
      %v2086 = vlaneseq
      %v2087 = vshrl.u32 %v2086, 7
      %v2088 = vsub.s32 0, %v2087
      %v2089 = vrot.slane %v2084, %v2088
      %v2090 = vlaneseq
      %v2091 = vshrl.u32 %v2090, 7
      %v2092 = vsub.s32 1, %v2091
      %v2093 = vrot.slane %v2084, %v2092
      %v2096 = vadd.f32 %v2080, %v2089
      %v2097 = vadd.f32 %v2081, %v2093
      %v2098 = vadd.f32 %v2082, %v2089
      %v2099 = vadd.f32 %v2083, %v2093
      %v2100 = vmax.f32 %v2096, 0.0
      %v2101 = vmax.f32 %v2097, 0.0
      %v2102 = vmax.f32 %v2098, 0.0
      %v2103 = vmax.f32 %v2099, 0.0
      %2104 = vst [vmem:[#allocation4] sm:$0xff] %v2100
      %vm2105 = vcmask 261120
      %2106 = vst.msk [vmem:[#allocation4 + $0x8] sm:$0xff] %vm2105, %v2101
      %2107 = vst [vmem:[#allocation4 + $0x10] sm:$0x3] %v2102
      %vm2108 = vcmask 254976
      %2109 = vst.msk [vmem:[#allocation4 + $0x18] sm:$0x3] %vm2108, %v2103
      %v2110 = vld [vmem:[#allocation4] ss:$8 sm:$0x3]
      %s2111 = scalar_lea.vmem [#allocation4], 1
      %v2112 = vld [vmem:[%s2111] ss:$8 sm:$0x3]
      %v2113 = vadd.f32 %v2110, %v2112
      %v2114 = vld [vmem:[%s6] sm:$0xff]
      %v2115 = vld [vmem:[%s6 + $0x8] sm:$0xff]
      %v2116 = vld [vmem:[%s6 + $0x10] sm:$0xff]
      %v2117 = vld [vmem:[%s6 + $0x18] sm:$0xff]
      %v2118 = vld [vmem:[%s6 + $0x20] sm:$0xff]
      %v2119 = vld [vmem:[%s6 + $0x28] sm:$0xff]
      %v2120 = vld [vmem:[%s6 + $0x30] sm:$0xff]
      %v2121 = vld [vmem:[%s6 + $0x38] sm:$0xff]
      %v2122 = vld [vmem:[%s6 + $0x40] sm:$0xff]
      %v2123 = vld [vmem:[%s6 + $0x48] sm:$0xff]
      %v2124 = vld [vmem:[%s6 + $0x50] sm:$0xff]
      %v2125 = vld [vmem:[%s6 + $0x58] sm:$0xff]
      %v2126 = vld [vmem:[%s6 + $0x60] sm:$0xff]
      %v2127 = vld [vmem:[%s6 + $0x68] sm:$0xff]
      %v2128 = vld [vmem:[%s6 + $0x70] sm:$0xff]
      %v2129 = vld [vmem:[%s6 + $0x78] sm:$0xff]
      %v2130 = vld [vmem:[%s6 + $0x80] sm:$0xff]
      %v2131 = vld [vmem:[%s6 + $0x88] sm:$0xff]
      %v2132 = vld [vmem:[%s6 + $0x90] sm:$0xff]
      %v2133 = vld [vmem:[%s6 + $0x98] sm:$0xff]
      %s2134 = scalar_lea.vmem [#allocation4], 2
      %v2135 = vld [vmem:[%s2134] ss:$8 sm:$0x3]
      %s2136 = scalar_lea.vmem [#allocation4], 3
      %v2137 = vld [vmem:[%s2136] ss:$8 sm:$0x3]
      %v2138 = vadd.f32 %v2135, %v2137
      %s2139 = scalar_lea.vmem %s6, 160
      %v2140 = vld [vmem:[%s2139] sm:$0xff]
      %v2141 = vld [vmem:[%s2139 + $0x8] sm:$0xff]
      %v2142 = vld [vmem:[%s2139 + $0x10] sm:$0xff]
      %v2143 = vld [vmem:[%s2139 + $0x18] sm:$0xff]
      %v2144 = vld [vmem:[%s2139 + $0x20] sm:$0xff]
      %v2145 = vld [vmem:[%s2139 + $0x28] sm:$0xff]
      %v2146 = vld [vmem:[%s2139 + $0x30] sm:$0xff]
      %v2147 = vld [vmem:[%s2139 + $0x38] sm:$0xff]
      %v2148 = vld [vmem:[%s2139 + $0x40] sm:$0xff]
      %v2149 = vld [vmem:[%s2139 + $0x48] sm:$0xff]
      %v2150 = vld [vmem:[%s2139 + $0x50] sm:$0xff]
      %v2151 = vld [vmem:[%s2139 + $0x58] sm:$0xff]
      %v2152 = vld [vmem:[%s2139 + $0x60] sm:$0xff]
      %v2153 = vld [vmem:[%s2139 + $0x68] sm:$0xff]
      %v2154 = vld [vmem:[%s2139 + $0x70] sm:$0xff]
      %v2155 = vld [vmem:[%s2139 + $0x78] sm:$0xff]
      %v2156 = vld [vmem:[%s2139 + $0x80] sm:$0xff]
      %v2157 = vld [vmem:[%s2139 + $0x88] sm:$0xff]
      %v2158 = vld [vmem:[%s2139 + $0x90] sm:$0xff]
      %v2159 = vld [vmem:[%s2139 + $0x98] sm:$0xff]
      %v2161 = vlaneseq
      %v2162 = vshrl.u32 %v2161, 7
      %v2163 = vsub.s32 0, %v2162
      %v2164 = vrot.slane %v2138, %v2163
      %v2165 = vlaneseq
      %v2166 = vshrl.u32 %v2165, 7
      %v2167 = vsub.s32 1, %v2166
      %v2168 = vrot.slane %v2138, %v2167
      %v2170 = vsel %vm2105, %v2168, 0
      %2172 = vmatprep.subr.mxu0 0.0
      %2173 = vmatpush1.msra.mxu0 %v2155
      %2174 = vmatprep.subr.mxu0 0.0
      %2175 = vmatpush1.msra.mxu0 %v2154
      %2176 = vmatprep.subr.mxu0 0.0
      %2177 = vmatpush1.msra.mxu0 %v2153
      %2178 = vmatprep.subr.mxu0 0.0
      %2179 = vmatpush1.msra.mxu0 %v2152
      %2180 = vmatprep.subr.mxu0 0.0
      %2181 = vmatpush1.msra.mxu0 %v2151
      %2182 = vmatprep.subr.mxu0 0.0
      %2183 = vmatpush1.msra.mxu0 %v2150
      %2184 = vmatprep.subr.mxu0 0.0
      %2185 = vmatpush1.msra.mxu0 %v2149
      %2186 = vmatprep.subr.mxu0 0.0
      %2187 = vmatpush1.msra.mxu0 %v2148
      %2188 = vmatprep.subr.mxu0 0.0
      %2189 = vmatpush1.msra.mxu0 %v2147
      %2190 = vmatprep.subr.mxu0 0.0
      %2191 = vmatpush1.msra.mxu0 %v2146
      %2192 = vmatprep.subr.mxu0 0.0
      %2193 = vmatpush1.msra.mxu0 %v2145
      %2194 = vmatprep.subr.mxu0 0.0
      %2195 = vmatpush1.msra.mxu0 %v2144
      %2196 = vmatprep.subr.mxu0 0.0
      %2197 = vmatpush1.msra.mxu0 %v2143
      %2198 = vmatprep.subr.mxu0 0.0
      %2199 = vmatpush1.msra.mxu0 %v2142
      %2200 = vmatprep.subr.mxu0 0.0
      %2201 = vmatpush1.msra.mxu0 %v2141
      %2202 = vmatprep.subr.mxu0 0.0
      %2203 = vmatpush1.msra.mxu0 %v2140
      %2204 = vmatprep.subr.mxu0 0.0
      %2205 = vmatpush2.msra.mxu0 0.0
      %2206 = vmatprep.subr.mxu0 0.0
      %2207 = vmatpush2.msra.mxu0 0.0
      %2208 = vmatprep.subr.mxu0 0.0
      %2209 = vmatpush2.msra.mxu0 0.0
      %2210 = vmatprep.subr.mxu0 0.0
      %2211 = vmatpush2.msra.mxu0 0.0
      %2212 = vmatprep.subr.mxu0 0.0
      %2213 = vmatpush2.msra.mxu0 0.0
      %2214 = vmatprep.subr.mxu0 0.0
      %2215 = vmatpush2.msra.mxu0 0.0
      %2216 = vmatprep.subr.mxu0 0.0
      %2217 = vmatpush2.msra.mxu0 0.0
      %2218 = vmatprep.subr.mxu0 0.0
      %2219 = vmatpush2.msra.mxu0 0.0
      %2220 = vmatprep.subr.mxu0 0.0
      %2221 = vmatpush2.msra.mxu0 0.0
      %2222 = vmatprep.subr.mxu0 0.0
      %2223 = vmatpush2.msra.mxu0 0.0
      %2224 = vmatprep.subr.mxu0 0.0
      %2225 = vmatpush2.msra.mxu0 0.0
      %2226 = vmatprep.subr.mxu0 0.0
      %2227 = vmatpush2.msra.mxu0 0.0
      %2228 = vmatprep.subr.mxu0 0.0
      %2229 = vmatpush2.msra.mxu0 %v2159
      %2230 = vmatprep.subr.mxu0 0.0
      %2231 = vmatpush2.msra.mxu0 %v2158
      %2232 = vmatprep.subr.mxu0 0.0
      %2233 = vmatpush2.msra.mxu0 %v2157
      %2234 = vmatprep.subr.mxu0 0.0
      %2235 = vmatpush2.msra.mxu0 %v2156
      %2236 = vmatprep.mubr.f32.mxu0 %v2170
      %2237 = vmatmul.mubr.f32.gmra.mxu0 %v2164
      %v2238 = vpop.f32.mrf.mxu0
      %v2239 = vadd.f32 0.0, %v2238
      %v2240 = vpop.f32.mrf.mxu0
      %2241 = vdwg.mxu0
      %v2243 = vlaneseq
      %v2244 = vshrl.u32 %v2243, 7
      %v2245 = vsub.s32 0, %v2244
      %v2246 = vrot.slane %v2113, %v2245
      %v2247 = vlaneseq
      %v2248 = vshrl.u32 %v2247, 7
      %v2249 = vsub.s32 1, %v2248
      %v2250 = vrot.slane %v2113, %v2249
      %v2252 = vsel %vm2105, %v2250, 0
      %2254 = vmatprep.subr.mxu0 0.0
      %2255 = vmatpush1.msra.mxu0 %v2129
      %2256 = vmatprep.subr.mxu0 0.0
      %2257 = vmatpush1.msra.mxu0 %v2128
      %2258 = vmatprep.subr.mxu0 0.0
      %2259 = vmatpush1.msra.mxu0 %v2127
      %2260 = vmatprep.subr.mxu0 0.0
      %2261 = vmatpush1.msra.mxu0 %v2126
      %2262 = vmatprep.subr.mxu0 0.0
      %2263 = vmatpush1.msra.mxu0 %v2125
      %2264 = vmatprep.subr.mxu0 0.0
      %2265 = vmatpush1.msra.mxu0 %v2124
      %2266 = vmatprep.subr.mxu0 0.0
      %2267 = vmatpush1.msra.mxu0 %v2123
      %2268 = vmatprep.subr.mxu0 0.0
      %2269 = vmatpush1.msra.mxu0 %v2122
      %2270 = vmatprep.subr.mxu0 0.0
      %2271 = vmatpush1.msra.mxu0 %v2121
      %2272 = vmatprep.subr.mxu0 0.0
      %2273 = vmatpush1.msra.mxu0 %v2120
      %2274 = vmatprep.subr.mxu0 0.0
      %2275 = vmatpush1.msra.mxu0 %v2119
      %2276 = vmatprep.subr.mxu0 0.0
      %2277 = vmatpush1.msra.mxu0 %v2118
      %2278 = vmatprep.subr.mxu0 0.0
      %2279 = vmatpush1.msra.mxu0 %v2117
      %2280 = vmatprep.subr.mxu0 0.0
      %2281 = vmatpush1.msra.mxu0 %v2116
      %2282 = vmatprep.subr.mxu0 0.0
      %2283 = vmatpush1.msra.mxu0 %v2115
      %2284 = vmatprep.subr.mxu0 0.0
      %2285 = vmatpush1.msra.mxu0 %v2114
      %2286 = vmatprep.subr.mxu0 0.0
      %2287 = vmatpush2.msra.mxu0 0.0
      %2288 = vmatprep.subr.mxu0 0.0
      %2289 = vmatpush2.msra.mxu0 0.0
      %2290 = vmatprep.subr.mxu0 0.0
      %2291 = vmatpush2.msra.mxu0 0.0
      %2292 = vmatprep.subr.mxu0 0.0
      %2293 = vmatpush2.msra.mxu0 0.0
      %2294 = vmatprep.subr.mxu0 0.0
      %2295 = vmatpush2.msra.mxu0 0.0
      %2296 = vmatprep.subr.mxu0 0.0
      %2297 = vmatpush2.msra.mxu0 0.0
      %2298 = vmatprep.subr.mxu0 0.0
      %2299 = vmatpush2.msra.mxu0 0.0
      %2300 = vmatprep.subr.mxu0 0.0
      %2301 = vmatpush2.msra.mxu0 0.0
      %2302 = vmatprep.subr.mxu0 0.0
      %2303 = vmatpush2.msra.mxu0 0.0
      %2304 = vmatprep.subr.mxu0 0.0
      %2305 = vmatpush2.msra.mxu0 0.0
      %2306 = vmatprep.subr.mxu0 0.0
      %2307 = vmatpush2.msra.mxu0 0.0
      %2308 = vmatprep.subr.mxu0 0.0
      %2309 = vmatpush2.msra.mxu0 0.0
      %2310 = vmatprep.subr.mxu0 0.0
      %2311 = vmatpush2.msra.mxu0 %v2133
      %2312 = vmatprep.subr.mxu0 0.0
      %2313 = vmatpush2.msra.mxu0 %v2132
      %2314 = vmatprep.subr.mxu0 0.0
      %2315 = vmatpush2.msra.mxu0 %v2131
      %2316 = vmatprep.subr.mxu0 0.0
      %2317 = vmatpush2.msra.mxu0 %v2130
      %2318 = vmatprep.mubr.f32.mxu0 %v2252
      %2319 = vmatmul.mubr.f32.gmra.mxu0 %v2246
      %v2320 = vpop.f32.mrf.mxu0
      %v2321 = vadd.f32 %v2239, %v2320
      %v2322 = vpop.f32.mrf.mxu0
      %2323 = vdwg.mxu0
      %s2324 = scalar_lea.vmem [#allocation4], 4
      %v2325 = vld [vmem:[%s2324] ss:$8 sm:$0x3]
      %s2326 = scalar_lea.vmem [#allocation4], 5
      %v2327 = vld [vmem:[%s2326] ss:$8 sm:$0x3]
      %v2328 = vadd.f32 %v2325, %v2327
      %s2329 = scalar_lea.vmem %s6, 320
      %v2330 = vld [vmem:[%s2329] sm:$0xff]
      %v2331 = vld [vmem:[%s2329 + $0x8] sm:$0xff]
      %v2332 = vld [vmem:[%s2329 + $0x10] sm:$0xff]
      %v2333 = vld [vmem:[%s2329 + $0x18] sm:$0xff]
      %v2334 = vld [vmem:[%s2329 + $0x20] sm:$0xff]
      %v2335 = vld [vmem:[%s2329 + $0x28] sm:$0xff]
      %v2336 = vld [vmem:[%s2329 + $0x30] sm:$0xff]
      %v2337 = vld [vmem:[%s2329 + $0x38] sm:$0xff]
      %v2338 = vld [vmem:[%s2329 + $0x40] sm:$0xff]
      %v2339 = vld [vmem:[%s2329 + $0x48] sm:$0xff]
      %v2340 = vld [vmem:[%s2329 + $0x50] sm:$0xff]
      %v2341 = vld [vmem:[%s2329 + $0x58] sm:$0xff]
      %v2342 = vld [vmem:[%s2329 + $0x60] sm:$0xff]
      %v2343 = vld [vmem:[%s2329 + $0x68] sm:$0xff]
      %v2344 = vld [vmem:[%s2329 + $0x70] sm:$0xff]
      %v2345 = vld [vmem:[%s2329 + $0x78] sm:$0xff]
      %v2346 = vld [vmem:[%s2329 + $0x80] sm:$0xff]
      %v2347 = vld [vmem:[%s2329 + $0x88] sm:$0xff]
      %v2348 = vld [vmem:[%s2329 + $0x90] sm:$0xff]
      %v2349 = vld [vmem:[%s2329 + $0x98] sm:$0xff]
      %v2351 = vlaneseq
      %v2352 = vshrl.u32 %v2351, 7
      %v2353 = vsub.s32 0, %v2352
      %v2354 = vrot.slane %v2328, %v2353
      %v2355 = vlaneseq
      %v2356 = vshrl.u32 %v2355, 7
      %v2357 = vsub.s32 1, %v2356
      %v2358 = vrot.slane %v2328, %v2357
      %v2360 = vsel %vm2105, %v2358, 0
      %2362 = vmatprep.subr.mxu0 0.0
      %2363 = vmatpush1.msra.mxu0 %v2345
      %2364 = vmatprep.subr.mxu0 0.0
      %2365 = vmatpush1.msra.mxu0 %v2344
      %2366 = vmatprep.subr.mxu0 0.0
      %2367 = vmatpush1.msra.mxu0 %v2343
      %2368 = vmatprep.subr.mxu0 0.0
      %2369 = vmatpush1.msra.mxu0 %v2342
      %2370 = vmatprep.subr.mxu0 0.0
      %2371 = vmatpush1.msra.mxu0 %v2341
      %2372 = vmatprep.subr.mxu0 0.0
      %2373 = vmatpush1.msra.mxu0 %v2340
      %2374 = vmatprep.subr.mxu0 0.0
      %2375 = vmatpush1.msra.mxu0 %v2339
      %2376 = vmatprep.subr.mxu0 0.0
      %2377 = vmatpush1.msra.mxu0 %v2338
      %2378 = vmatprep.subr.mxu0 0.0
      %2379 = vmatpush1.msra.mxu0 %v2337
      %2380 = vmatprep.subr.mxu0 0.0
      %2381 = vmatpush1.msra.mxu0 %v2336
      %2382 = vmatprep.subr.mxu0 0.0
      %2383 = vmatpush1.msra.mxu0 %v2335
      %2384 = vmatprep.subr.mxu0 0.0
      %2385 = vmatpush1.msra.mxu0 %v2334
      %2386 = vmatprep.subr.mxu0 0.0
      %2387 = vmatpush1.msra.mxu0 %v2333
      %2388 = vmatprep.subr.mxu0 0.0
      %2389 = vmatpush1.msra.mxu0 %v2332
      %2390 = vmatprep.subr.mxu0 0.0
      %2391 = vmatpush1.msra.mxu0 %v2331
      %2392 = vmatprep.subr.mxu0 0.0
      %2393 = vmatpush1.msra.mxu0 %v2330
      %2394 = vmatprep.subr.mxu0 0.0
      %2395 = vmatpush2.msra.mxu0 0.0
      %2396 = vmatprep.subr.mxu0 0.0
      %2397 = vmatpush2.msra.mxu0 0.0
      %2398 = vmatprep.subr.mxu0 0.0
      %2399 = vmatpush2.msra.mxu0 0.0
      %2400 = vmatprep.subr.mxu0 0.0
      %2401 = vmatpush2.msra.mxu0 0.0
      %2402 = vmatprep.subr.mxu0 0.0
      %2403 = vmatpush2.msra.mxu0 0.0
      %2404 = vmatprep.subr.mxu0 0.0
      %2405 = vmatpush2.msra.mxu0 0.0
      %2406 = vmatprep.subr.mxu0 0.0
      %2407 = vmatpush2.msra.mxu0 0.0
      %2408 = vmatprep.subr.mxu0 0.0
      %2409 = vmatpush2.msra.mxu0 0.0
      %2410 = vmatprep.subr.mxu0 0.0
      %2411 = vmatpush2.msra.mxu0 0.0
      %2412 = vmatprep.subr.mxu0 0.0
      %2413 = vmatpush2.msra.mxu0 0.0
      %2414 = vmatprep.subr.mxu0 0.0
      %2415 = vmatpush2.msra.mxu0 0.0
      %2416 = vmatprep.subr.mxu0 0.0
      %2417 = vmatpush2.msra.mxu0 0.0
      %2418 = vmatprep.subr.mxu0 0.0
      %2419 = vmatpush2.msra.mxu0 %v2349
      %2420 = vmatprep.subr.mxu0 0.0
      %2421 = vmatpush2.msra.mxu0 %v2348
      %2422 = vmatprep.subr.mxu0 0.0
      %2423 = vmatpush2.msra.mxu0 %v2347
      %2424 = vmatprep.subr.mxu0 0.0
      %2425 = vmatpush2.msra.mxu0 %v2346
      %2426 = vmatprep.mubr.f32.mxu0 %v2360
      %2427 = vmatmul.mubr.f32.gmra.mxu0 %v2354
      %v2428 = vpop.f32.mrf.mxu0
      %v2429 = vadd.f32 0.0, %v2428
      %v2430 = vpop.f32.mrf.mxu0
      %2431 = vdwg.mxu0
      %v2432 = vadd.f32 %v2321, %v2429
      %s2433 = scalar_lea.vmem [#allocation4], 6
      %v2434 = vld [vmem:[%s2433] ss:$8 sm:$0x3]
      %s2435 = scalar_lea.vmem [#allocation4], 7
      %v2436 = vld [vmem:[%s2435] ss:$8 sm:$0x3]
      %v2437 = vadd.f32 %v2434, %v2436
      %s2438 = scalar_lea.vmem %s6, 480
      %v2439 = vld [vmem:[%s2438] sm:$0xff]
      %v2440 = vld [vmem:[%s2438 + $0x8] sm:$0xff]
      %v2441 = vld [vmem:[%s2438 + $0x10] sm:$0xff]
      %v2442 = vld [vmem:[%s2438 + $0x18] sm:$0xff]
      %v2443 = vld [vmem:[%s2438 + $0x20] sm:$0xff]
      %v2444 = vld [vmem:[%s2438 + $0x28] sm:$0xff]
      %v2445 = vld [vmem:[%s2438 + $0x30] sm:$0xff]
      %v2446 = vld [vmem:[%s2438 + $0x38] sm:$0xff]
      %v2447 = vld [vmem:[%s2438 + $0x40] sm:$0xff]
      %v2448 = vld [vmem:[%s2438 + $0x48] sm:$0xff]
      %v2449 = vld [vmem:[%s2438 + $0x50] sm:$0xff]
      %v2450 = vld [vmem:[%s2438 + $0x58] sm:$0xff]
      %v2451 = vld [vmem:[%s2438 + $0x60] sm:$0xff]
      %v2452 = vld [vmem:[%s2438 + $0x68] sm:$0xff]
      %v2453 = vld [vmem:[%s2438 + $0x70] sm:$0xff]
      %v2454 = vld [vmem:[%s2438 + $0x78] sm:$0xff]
      %v2455 = vld [vmem:[%s2438 + $0x80] sm:$0xff]
      %v2456 = vld [vmem:[%s2438 + $0x88] sm:$0xff]
      %v2457 = vld [vmem:[%s2438 + $0x90] sm:$0xff]
      %v2458 = vld [vmem:[%s2438 + $0x98] sm:$0xff]
      %v2460 = vlaneseq
      %v2461 = vshrl.u32 %v2460, 7
      %v2462 = vsub.s32 0, %v2461
      %v2463 = vrot.slane %v2437, %v2462
      %v2464 = vlaneseq
      %v2465 = vshrl.u32 %v2464, 7
      %v2466 = vsub.s32 1, %v2465
      %v2467 = vrot.slane %v2437, %v2466
      %v2469 = vsel %vm2105, %v2467, 0
      %2471 = vmatprep.subr.mxu0 0.0
      %2472 = vmatpush1.msra.mxu0 %v2454
      %2473 = vmatprep.subr.mxu0 0.0
      %2474 = vmatpush1.msra.mxu0 %v2453
      %2475 = vmatprep.subr.mxu0 0.0
      %2476 = vmatpush1.msra.mxu0 %v2452
      %2477 = vmatprep.subr.mxu0 0.0
      %2478 = vmatpush1.msra.mxu0 %v2451
      %2479 = vmatprep.subr.mxu0 0.0
      %2480 = vmatpush1.msra.mxu0 %v2450
      %2481 = vmatprep.subr.mxu0 0.0
      %2482 = vmatpush1.msra.mxu0 %v2449
      %2483 = vmatprep.subr.mxu0 0.0
      %2484 = vmatpush1.msra.mxu0 %v2448
      %2485 = vmatprep.subr.mxu0 0.0
      %2486 = vmatpush1.msra.mxu0 %v2447
      %2487 = vmatprep.subr.mxu0 0.0
      %2488 = vmatpush1.msra.mxu0 %v2446
      %2489 = vmatprep.subr.mxu0 0.0
      %2490 = vmatpush1.msra.mxu0 %v2445
      %2491 = vmatprep.subr.mxu0 0.0
      %2492 = vmatpush1.msra.mxu0 %v2444
      %2493 = vmatprep.subr.mxu0 0.0
      %2494 = vmatpush1.msra.mxu0 %v2443
      %2495 = vmatprep.subr.mxu0 0.0
      %2496 = vmatpush1.msra.mxu0 %v2442
      %2497 = vmatprep.subr.mxu0 0.0
      %2498 = vmatpush1.msra.mxu0 %v2441
      %2499 = vmatprep.subr.mxu0 0.0
      %2500 = vmatpush1.msra.mxu0 %v2440
      %2501 = vmatprep.subr.mxu0 0.0
      %2502 = vmatpush1.msra.mxu0 %v2439
      %2503 = vmatprep.subr.mxu0 0.0
      %2504 = vmatpush2.msra.mxu0 0.0
      %2505 = vmatprep.subr.mxu0 0.0
      %2506 = vmatpush2.msra.mxu0 0.0
      %2507 = vmatprep.subr.mxu0 0.0
      %2508 = vmatpush2.msra.mxu0 0.0
      %2509 = vmatprep.subr.mxu0 0.0
      %2510 = vmatpush2.msra.mxu0 0.0
      %2511 = vmatprep.subr.mxu0 0.0
      %2512 = vmatpush2.msra.mxu0 0.0
      %2513 = vmatprep.subr.mxu0 0.0
      %2514 = vmatpush2.msra.mxu0 0.0
      %2515 = vmatprep.subr.mxu0 0.0
      %2516 = vmatpush2.msra.mxu0 0.0
      %2517 = vmatprep.subr.mxu0 0.0
      %2518 = vmatpush2.msra.mxu0 0.0
      %2519 = vmatprep.subr.mxu0 0.0
      %2520 = vmatpush2.msra.mxu0 0.0
      %2521 = vmatprep.subr.mxu0 0.0
      %2522 = vmatpush2.msra.mxu0 0.0
      %2523 = vmatprep.subr.mxu0 0.0
      %2524 = vmatpush2.msra.mxu0 0.0
      %2525 = vmatprep.subr.mxu0 0.0
      %2526 = vmatpush2.msra.mxu0 0.0
      %2527 = vmatprep.subr.mxu0 0.0
      %2528 = vmatpush2.msra.mxu0 %v2458
      %2529 = vmatprep.subr.mxu0 0.0
      %2530 = vmatpush2.msra.mxu0 %v2457
      %2531 = vmatprep.subr.mxu0 0.0
      %2532 = vmatpush2.msra.mxu0 %v2456
      %2533 = vmatprep.subr.mxu0 0.0
      %2534 = vmatpush2.msra.mxu0 %v2455
      %2535 = vmatprep.mubr.f32.mxu0 %v2469
      %2536 = vmatmul.mubr.f32.gmra.mxu0 %v2463
      %v2537 = vpop.f32.mrf.mxu0
      %v2538 = vadd.f32 0.0, %v2537
      %v2539 = vpop.f32.mrf.mxu0
      %2540 = vdwg.mxu0
      %v2541 = vadd.f32 %v2432, %v2538
      %s2542 = scalar_lea.vmem [#allocation4], 16
      %v2543 = vld [vmem:[%s2542] ss:$8 sm:$0x3]
      %s2544 = scalar_lea.vmem [#allocation4], 17
      %v2545 = vld [vmem:[%s2544] ss:$8 sm:$0x3]
      %v2546 = vadd.f32 %v2543, %v2545
      %s2547 = scalar_lea.vmem %s6, 640
      %v2548 = vld [vmem:[%s2547] sm:$0xff]
      %v2549 = vld [vmem:[%s2547 + $0x8] sm:$0xff]
      %v2550 = vld [vmem:[%s2547 + $0x10] sm:$0xff]
      %v2551 = vld [vmem:[%s2547 + $0x18] sm:$0xff]
      %v2552 = vld [vmem:[%s2547 + $0x20] sm:$0xff]
      %v2553 = vld [vmem:[%s2547 + $0x28] sm:$0xff]
      %v2554 = vld [vmem:[%s2547 + $0x30] sm:$0xff]
      %v2555 = vld [vmem:[%s2547 + $0x38] sm:$0xff]
      %v2556 = vld [vmem:[%s2547 + $0x40] sm:$0xff]
      %v2557 = vld [vmem:[%s2547 + $0x48] sm:$0xff]
      %v2558 = vld [vmem:[%s2547 + $0x50] sm:$0xff]
      %v2559 = vld [vmem:[%s2547 + $0x58] sm:$0xff]
      %v2560 = vld [vmem:[%s2547 + $0x60] sm:$0xff]
      %v2561 = vld [vmem:[%s2547 + $0x68] sm:$0xff]
      %v2562 = vld [vmem:[%s2547 + $0x70] sm:$0xff]
      %v2563 = vld [vmem:[%s2547 + $0x78] sm:$0xff]
      %v2564 = vld [vmem:[%s2547 + $0x80] sm:$0xff]
      %v2565 = vld [vmem:[%s2547 + $0x88] sm:$0xff]
      %v2566 = vld [vmem:[%s2547 + $0x90] sm:$0xff]
      %v2567 = vld [vmem:[%s2547 + $0x98] sm:$0xff]
      %v2569 = vlaneseq
      %v2570 = vshrl.u32 %v2569, 7
      %v2571 = vsub.s32 0, %v2570
      %v2572 = vrot.slane %v2546, %v2571
      %v2573 = vlaneseq
      %v2574 = vshrl.u32 %v2573, 7
      %v2575 = vsub.s32 1, %v2574
      %v2576 = vrot.slane %v2546, %v2575
      %v2578 = vsel %vm2105, %v2576, 0
      %2580 = vmatprep.subr.mxu0 0.0
      %2581 = vmatpush1.msra.mxu0 %v2563
      %2582 = vmatprep.subr.mxu0 0.0
      %2583 = vmatpush1.msra.mxu0 %v2562
      %2584 = vmatprep.subr.mxu0 0.0
      %2585 = vmatpush1.msra.mxu0 %v2561
      %2586 = vmatprep.subr.mxu0 0.0
      %2587 = vmatpush1.msra.mxu0 %v2560
      %2588 = vmatprep.subr.mxu0 0.0
      %2589 = vmatpush1.msra.mxu0 %v2559
      %2590 = vmatprep.subr.mxu0 0.0
      %2591 = vmatpush1.msra.mxu0 %v2558
      %2592 = vmatprep.subr.mxu0 0.0
      %2593 = vmatpush1.msra.mxu0 %v2557
      %2594 = vmatprep.subr.mxu0 0.0
      %2595 = vmatpush1.msra.mxu0 %v2556
      %2596 = vmatprep.subr.mxu0 0.0
      %2597 = vmatpush1.msra.mxu0 %v2555
      %2598 = vmatprep.subr.mxu0 0.0
      %2599 = vmatpush1.msra.mxu0 %v2554
      %2600 = vmatprep.subr.mxu0 0.0
      %2601 = vmatpush1.msra.mxu0 %v2553
      %2602 = vmatprep.subr.mxu0 0.0
      %2603 = vmatpush1.msra.mxu0 %v2552
      %2604 = vmatprep.subr.mxu0 0.0
      %2605 = vmatpush1.msra.mxu0 %v2551
      %2606 = vmatprep.subr.mxu0 0.0
      %2607 = vmatpush1.msra.mxu0 %v2550
      %2608 = vmatprep.subr.mxu0 0.0
      %2609 = vmatpush1.msra.mxu0 %v2549
      %2610 = vmatprep.subr.mxu0 0.0
      %2611 = vmatpush1.msra.mxu0 %v2548
      %2612 = vmatprep.subr.mxu0 0.0
      %2613 = vmatpush2.msra.mxu0 0.0
      %2614 = vmatprep.subr.mxu0 0.0
      %2615 = vmatpush2.msra.mxu0 0.0
      %2616 = vmatprep.subr.mxu0 0.0
      %2617 = vmatpush2.msra.mxu0 0.0
      %2618 = vmatprep.subr.mxu0 0.0
      %2619 = vmatpush2.msra.mxu0 0.0
      %2620 = vmatprep.subr.mxu0 0.0
      %2621 = vmatpush2.msra.mxu0 0.0
      %2622 = vmatprep.subr.mxu0 0.0
      %2623 = vmatpush2.msra.mxu0 0.0
      %2624 = vmatprep.subr.mxu0 0.0
      %2625 = vmatpush2.msra.mxu0 0.0
      %2626 = vmatprep.subr.mxu0 0.0
      %2627 = vmatpush2.msra.mxu0 0.0
      %2628 = vmatprep.subr.mxu0 0.0
      %2629 = vmatpush2.msra.mxu0 0.0
      %2630 = vmatprep.subr.mxu0 0.0
      %2631 = vmatpush2.msra.mxu0 0.0
      %2632 = vmatprep.subr.mxu0 0.0
      %2633 = vmatpush2.msra.mxu0 0.0
      %2634 = vmatprep.subr.mxu0 0.0
      %2635 = vmatpush2.msra.mxu0 0.0
      %2636 = vmatprep.subr.mxu0 0.0
      %2637 = vmatpush2.msra.mxu0 %v2567
      %2638 = vmatprep.subr.mxu0 0.0
      %2639 = vmatpush2.msra.mxu0 %v2566
      %2640 = vmatprep.subr.mxu0 0.0
      %2641 = vmatpush2.msra.mxu0 %v2565
      %2642 = vmatprep.subr.mxu0 0.0
      %2643 = vmatpush2.msra.mxu0 %v2564
      %2644 = vmatprep.mubr.f32.mxu0 %v2578
      %2645 = vmatmul.mubr.f32.gmra.mxu0 %v2572
      %v2646 = vpop.f32.mrf.mxu0
      %v2647 = vadd.f32 0.0, %v2646
      %v2648 = vpop.f32.mrf.mxu0
      %2649 = vdwg.mxu0
      %v2650 = vadd.f32 %v2541, %v2647
      %v2651 = vld [vmem:[%s7] sm:$0x1]
      %v2652 = vadd.f32 %v2650, %v2651
      %v2653 = vmax.f32 %v2652, 0.0
      %2654 = vst [vmem:[%s321] sm:$0x1] %v2653
      %p2655 = scmp.lt.s32.totalorder %s19, 1
      %s2656 = scalar_select %p2655, %s19, 1
      %s2657 = scalar_lea.vmem %s8, %s2656
      // Predicated region
      $region53: #{lenet_forward.1} parent=51 // pred_check
        %p2658 = pneg %p215
      $region54: #{lenet_forward.1} parent=51 // pred_check_branch
        %2660 = sbr.rel (%p2658) target = $region56
      $region55: #{lenet_forward.1} parent=51 // pred_region
        _
      $region56: #{lenet_forward.1} parent=51 // pred_fallthru
        _
    $region52: #{lenet_forward.1} parent=5 // pred_fallthru
      _
    %p2661 = scmp.le.s32.totalorder 2, %s14
    // Predicated region
    $region57: #{lenet_forward.1} parent=5 // pred_check
      %p2662 = pneg %p2661
    $region58: #{lenet_forward.1} parent=5 // pred_check_branch
      %2664 = sbr.rel (%p2662) target = $region60
    $region59: #{lenet_forward.1} parent=5 // pred_region
      %s2665 = ssub.s32 %s14, 2
      // Predicated region
      $region61: #{lenet_forward.1} parent=59 // pred_check
        %p2666 = pneg %p221
      $region62: #{lenet_forward.1} parent=59 // pred_check_branch
        %2668 = sbr.rel (%p2666) target = $region64
      $region63: #{lenet_forward.1} parent=59 // pred_region
        %p2669 = scmp.lt.s32.totalorder %s20, 1
        %s2670 = scalar_select %p2669, %s20, 1
        %s2671 = scalar_lea.vmem %s8, %s2670
      $region64: #{lenet_forward.1} parent=59 // pred_fallthru
        _
    $region60: #{lenet_forward.1} parent=5 // pred_fallthru
      _
  $region6: #{lenet_forward.1} parent=0 // loop_footer
    %s18 = sadd.s32 1, %s14
  $region7: #{lenet_forward.1} parent=0 // loop_footer_branch
    %13 = sbr.rel target = $region3
  $region8: #{lenet_forward.1} parent=0 // loop_exit
    _

</llo_original>
